<compile_context>
chip_gen: v5e
topology: v5e:2x2
jax: 0.10.0
libtpu: 0.0.40
codegen_flags: <defaults>
</compile_context>

<pallas_src>
import functools

import jax
import jax.numpy as jnp
from jax.experimental import pallas as pl
from jax.experimental.pallas import tpu as pltpu


def _st_gcn_kernel(x_ref, A_ref, ei_ref, wg_ref, bg_ref, s1_ref, b1_ref,
                   wt_ref, bt_ref, s2_ref, b2_ref, o_ref, hp_ref,
                   *, K, C_out, T, V, kt, pad):
    f32 = jnp.float32

    x2 = x_ref[...]                      # (C_in, T*V)   lanes = (t, v), v minor
    wA = ei_ref[...] * A_ref[...]        # (K, V, V)     edge-importance-weighted adjacency
    wg = wg_ref[...]                     # (K*C_out, C_in)
    bg = bg_ref[...]                     # (K*C_out, 1)
    s1, b1 = s1_ref[...], b1_ref[...]    # (C_out, 1)    folded BatchNorm1 (inference)
    wt = wt_ref[...]                     # (kt, C_out, C_out)
    bt = bt_ref[...]                     # (C_out, 1)
    s2, b2 = s2_ref[...], b2_ref[...]    # (C_out, 1)    folded BatchNorm2 (inference)

    # ---- GCN 1x1 channel conv: one MXU matmul over all (t, v) positions ----
    y = jnp.dot(wg, x2, preferred_element_type=f32) + bg         # (K*C_out, T*V)

    # Zero the temporal-padding halo of the TCN input scratch.
    hp_ref[...] = jnp.zeros_like(hp_ref)

    # ---- adjacency contraction + BN1 + ReLU (per time step, MXU) ----
    for t in range(T):
        y_t = y[:, t * V:(t + 1) * V]                            # (K*C_out, V)
        z_t = jnp.zeros((C_out, V), f32)
        for k in range(K):
            z_t = z_t + jnp.dot(y_t[k * C_out:(k + 1) * C_out, :], wA[k],
                                preferred_element_type=f32)      # (C_out, V)
        hp_ref[pad + t] = jnp.maximum(z_t * s1 + b1, 0.0)

    # ---- temporal conv (kt, 1) + BN2 + identity residual + ReLU ----
    for t in range(T):
        acc = jnp.zeros((C_out, V), f32)
        for dt in range(kt):
            acc = acc + jnp.dot(wt[dt], hp_ref[t + dt],
                                preferred_element_type=f32)      # (C_out, V)
        o_t = (acc + bt) * s2 + b2
        o_t = o_t + x2[:, t * V:(t + 1) * V]                     # res = x (IdenLayer)
        o_ref[t] = jnp.maximum(o_t, 0.0)


def st_gcn_block_forward(x, A, params, *, eps=1e-5):
    """Pallas forward of st_gcn_block (inference, identity-residual configuration)."""
    N, C_in, T, V = x.shape
    K = A.shape[0]
    KC, C_in_w = params["w_gcn"].shape
    C_out = KC // K
    kt = params["w_tcn"].shape[2]
    pad = (kt - 1) // 2
    assert C_in_w == C_in and C_out == C_in, "identity residual requires C_in == C_out"

    f32 = jnp.float32
    # Fold inference BatchNorm into per-channel scale/bias.
    s1 = params["bn1_gamma"] / jnp.sqrt(params["bn1_var"] + eps)
    b1 = params["bn1_beta"] - params["bn1_mean"] * s1
    s2 = params["bn2_gamma"] / jnp.sqrt(params["bn2_var"] + eps)
    b2 = params["bn2_beta"] - params["bn2_mean"] * s2

    x2 = x.reshape(N, C_in, T * V).astype(f32)                       # lane-dense input
    wt = jnp.transpose(params["w_tcn"], (2, 0, 1)).astype(f32)       # (kt, C_out, C_out)
    col = lambda v: v.astype(f32).reshape(-1, 1)

    kernel = functools.partial(_st_gcn_kernel, K=K, C_out=C_out, T=T, V=V,
                               kt=kt, pad=pad)

    out = pl.pallas_call(
        kernel,
        out_shape=jax.ShapeDtypeStruct((N, T, C_out, V), f32),
        grid_spec=pltpu.PrefetchScalarGridSpec(
            num_scalar_prefetch=0,
            grid=(N,),
            in_specs=[
                pl.BlockSpec((None, C_in, T * V), lambda n: (n, 0, 0)),   # x
                pl.BlockSpec((K, V, V), lambda n: (0, 0, 0)),             # A
                pl.BlockSpec((K, V, V), lambda n: (0, 0, 0)),             # edge importance
                pl.BlockSpec((KC, C_in), lambda n: (0, 0)),               # gcn 1x1 weight
                pl.BlockSpec((KC, 1), lambda n: (0, 0)),                  # gcn bias
                pl.BlockSpec((C_out, 1), lambda n: (0, 0)),               # BN1 scale
                pl.BlockSpec((C_out, 1), lambda n: (0, 0)),               # BN1 bias
                pl.BlockSpec((kt, C_out, C_out), lambda n: (0, 0, 0)),    # tcn weight
                pl.BlockSpec((C_out, 1), lambda n: (0, 0)),               # tcn bias
                pl.BlockSpec((C_out, 1), lambda n: (0, 0)),               # BN2 scale
                pl.BlockSpec((C_out, 1), lambda n: (0, 0)),               # BN2 bias
            ],
            out_specs=pl.BlockSpec((None, T, C_out, V), lambda n: (n, 0, 0, 0)),
            scratch_shapes=[pltpu.VMEM((T + 2 * pad, C_out, V), f32)],
        ),
        compiler_params=pltpu.CompilerParams(
            dimension_semantics=("parallel",)),
    )(
        x2, A.astype(f32), params["edge_importance"].astype(f32),
        params["w_gcn"].astype(f32), col(params["b_gcn"]),
        col(s1), col(b1), wt, col(params["b_tcn"]), col(s2), col(b2),
    )
    # Kernel writes (N, T, C_out, V); return PyTorch's (N, C_out, T, V) layout.
    return jnp.transpose(out, (0, 2, 1, 3))


def st_gcn_block_reference(x, A, params, *, eps=1e-5):
    """Pure-JAX reference mirroring the PyTorch module (inference)."""
    N, C_in, T, V = x.shape
    K = A.shape[0]
    C_out = params["w_gcn"].shape[0] // K
    kt = params["w_tcn"].shape[2]
    pad = (kt - 1) // 2
    hi = jax.lax.Precision.HIGHEST

    wA = params["edge_importance"] * A
    res = x                                                      # IdenLayer

    y = jnp.einsum("oc,nctv->notv", params["w_gcn"], x, precision=hi)
    y = y + params["b_gcn"][None, :, None, None]
    y = y.reshape(N, K, C_out, T, V)
    z = jnp.einsum("nkctv,kvw->nctw", y, wA, precision=hi)

    def bn(u, g, b, m, v):
        return ((u - m[None, :, None, None]) / jnp.sqrt(v + eps)[None, :, None, None]
                * g[None, :, None, None] + b[None, :, None, None])

    h = jnp.maximum(bn(z, params["bn1_gamma"], params["bn1_beta"],
                       params["bn1_mean"], params["bn1_var"]), 0.0)
    hp = jnp.pad(h, ((0, 0), (0, 0), (pad, pad), (0, 0)))
    o = params["b_tcn"][None, :, None, None]
    for dt in range(kt):
        o = o + jnp.einsum("oc,nctv->notv", params["w_tcn"][:, :, dt],
                           hp[:, :, dt:dt + T, :], precision=hi)
    o = bn(o, params["bn2_gamma"], params["bn2_beta"],
           params["bn2_mean"], params["bn2_var"])
    return jnp.maximum(o + res, 0.0)                             # Dropout = identity (eval)


if __name__ == "__main__":
    key = jax.random.PRNGKey(0)
    ks = jax.random.split(key, 15)

    # Small shapes consistent with st_gcn_block: x (N, C_in, T, V), A (K, V, V),
    # kernel_size = (kt, K) = (3, 3), stride = 1, residual = True (identity path).
    N, C, T, V, K, kt = 2, 32, 8, 16, 3, 3

    x = jax.random.normal(ks[0], (N, C, T, V), jnp.float32)
    A = jax.random.uniform(ks[1], (K, V, V), jnp.float32)

    params = {
        "edge_importance": 1.0 + 0.1 * jax.random.normal(ks[2], (K, V, V), jnp.float32),
        "w_gcn": 0.1 * jax.random.normal(ks[3], (K * C, C), jnp.float32),
        "b_gcn": 0.1 * jax.random.normal(ks[4], (K * C,), jnp.float32),
        "bn1_gamma": 1.0 + 0.1 * jax.random.normal(ks[5], (C,), jnp.float32),
        "bn1_beta": 0.1 * jax.random.normal(ks[6], (C,), jnp.float32),
        "bn1_mean": 0.1 * jax.random.normal(ks[7], (C,), jnp.float32),
        "bn1_var": jax.random.uniform(ks[8], (C,), jnp.float32, 0.5, 1.5),
        "w_tcn": 0.1 * jax.random.normal(ks[9], (C, C, kt), jnp.float32),
        "b_tcn": 0.1 * jax.random.normal(ks[10], (C,), jnp.float32),
        "bn2_gamma": 1.0 + 0.1 * jax.random.normal(ks[11], (C,), jnp.float32),
        "bn2_beta": 0.1 * jax.random.normal(ks[12], (C,), jnp.float32),
        "bn2_mean": 0.1 * jax.random.normal(ks[13], (C,), jnp.float32),
        "bn2_var": jax.random.uniform(ks[14], (C,), jnp.float32, 0.5, 1.5),
    }

    out = jax.jit(st_gcn_block_forward)(x, A, params)
    out = jax.block_until_ready(out)

    ref = st_gcn_block_reference(x, A, params)
    assert out.shape == (N, C, T, V) and out.shape == ref.shape
    err = float(jnp.max(jnp.abs(out - ref)))
    assert err < 5e-2, f"kernel/reference mismatch: max abs err = {err}"

    print("KERNEL_OK")
</pallas_src>

<mosaic_0001>
module attributes {stable_mosaic.version = 11 : i64} {
  func.func @_st_gcn_kernel(%arg0: i32, %arg1: memref<1x32x128xf32, #tpu.memory_space<vmem>>, %arg2: memref<3x16x16xf32, #tpu.memory_space<vmem>>, %arg3: memref<3x16x16xf32, #tpu.memory_space<vmem>>, %arg4: memref<96x32xf32, #tpu.memory_space<vmem>>, %arg5: memref<96x1xf32, #tpu.memory_space<vmem>>, %arg6: memref<32x1xf32, #tpu.memory_space<vmem>>, %arg7: memref<32x1xf32, #tpu.memory_space<vmem>>, %arg8: memref<3x32x32xf32, #tpu.memory_space<vmem>>, %arg9: memref<32x1xf32, #tpu.memory_space<vmem>>, %arg10: memref<32x1xf32, #tpu.memory_space<vmem>>, %arg11: memref<32x1xf32, #tpu.memory_space<vmem>>, %arg12: memref<1x8x32x16xf32, #tpu.memory_space<vmem>>, %arg13: memref<10x32x16xf32, #tpu.memory_space<vmem>>) attributes {dimension_semantics = [#tpu.dimension_semantics<parallel>], iteration_bounds = array<i64: 2>, scalar_prefetch = 0 : i64, scratch_operands = 1 : i64, tpu.core_type = #tpu.core_type<tc>, window_params = [{transform_indices = @transform_0, window_bounds = array<i64: 1, 32, 128>}, {pipeline_mode = #tpu.pipeline_mode<synchronous>, transform_indices = @transform_1, window_bounds = array<i64: 3, 16, 16>}, {pipeline_mode = #tpu.pipeline_mode<synchronous>, transform_indices = @transform_2, window_bounds = array<i64: 3, 16, 16>}, {pipeline_mode = #tpu.pipeline_mode<synchronous>, transform_indices = @transform_3, window_bounds = array<i64: 96, 32>}, {pipeline_mode = #tpu.pipeline_mode<synchronous>, transform_indices = @transform_4, window_bounds = array<i64: 96, 1>}, {pipeline_mode = #tpu.pipeline_mode<synchronous>, transform_indices = @transform_5, window_bounds = array<i64: 32, 1>}, {pipeline_mode = #tpu.pipeline_mode<synchronous>, transform_indices = @transform_6, window_bounds = array<i64: 32, 1>}, {pipeline_mode = #tpu.pipeline_mode<synchronous>, transform_indices = @transform_7, window_bounds = array<i64: 3, 32, 32>}, {pipeline_mode = #tpu.pipeline_mode<synchronous>, transform_indices = @transform_8, window_bounds = array<i64: 32, 1>}, {pipeline_mode = #tpu.pipeline_mode<synchronous>, transform_indices = @transform_9, window_bounds = array<i64: 32, 1>}, {pipeline_mode = #tpu.pipeline_mode<synchronous>, transform_indices = @transform_10, window_bounds = array<i64: 32, 1>}, {transform_indices = @transform_11, window_bounds = array<i64: 1, 8, 32, 16>}]} {
    %c0 = arith.constant 0 : index
    %c0_0 = arith.constant 0 : index
    %c0_1 = arith.constant 0 : index
    %0 = vector.load %arg1[%c0, %c0_0, %c0_1] : memref<1x32x128xf32, #tpu.memory_space<vmem>>, vector<1x32x128xf32>
    %1 = vector.shape_cast %0 : vector<1x32x128xf32> to vector<32x128xf32>
    %c0_2 = arith.constant 0 : index
    %c0_3 = arith.constant 0 : index
    %c0_4 = arith.constant 0 : index
    %2 = vector.load %arg3[%c0_2, %c0_3, %c0_4] : memref<3x16x16xf32, #tpu.memory_space<vmem>>, vector<3x16x16xf32>
    %c0_5 = arith.constant 0 : index
    %c0_6 = arith.constant 0 : index
    %c0_7 = arith.constant 0 : index
    %3 = vector.load %arg2[%c0_5, %c0_6, %c0_7] : memref<3x16x16xf32, #tpu.memory_space<vmem>>, vector<3x16x16xf32>
    %4 = arith.mulf %2, %3 : vector<3x16x16xf32>
    %c0_8 = arith.constant 0 : index
    %c0_9 = arith.constant 0 : index
    %5 = vector.load %arg4[%c0_8, %c0_9] : memref<96x32xf32, #tpu.memory_space<vmem>>, vector<96x32xf32>
    %c0_10 = arith.constant 0 : index
    %c0_11 = arith.constant 0 : index
    %6 = vector.load %arg5[%c0_10, %c0_11] : memref<96x1xf32, #tpu.memory_space<vmem>>, vector<96x1xf32>
    %c0_12 = arith.constant 0 : index
    %c0_13 = arith.constant 0 : index
    %7 = vector.load %arg6[%c0_12, %c0_13] : memref<32x1xf32, #tpu.memory_space<vmem>>, vector<32x1xf32>
    %c0_14 = arith.constant 0 : index
    %c0_15 = arith.constant 0 : index
    %8 = vector.load %arg7[%c0_14, %c0_15] : memref<32x1xf32, #tpu.memory_space<vmem>>, vector<32x1xf32>
    %c0_16 = arith.constant 0 : index
    %c0_17 = arith.constant 0 : index
    %c0_18 = arith.constant 0 : index
    %9 = vector.load %arg8[%c0_16, %c0_17, %c0_18] : memref<3x32x32xf32, #tpu.memory_space<vmem>>, vector<3x32x32xf32>
    %c0_19 = arith.constant 0 : index
    %c0_20 = arith.constant 0 : index
    %10 = vector.load %arg9[%c0_19, %c0_20] : memref<32x1xf32, #tpu.memory_space<vmem>>, vector<32x1xf32>
    %c0_21 = arith.constant 0 : index
    %c0_22 = arith.constant 0 : index
    %11 = vector.load %arg10[%c0_21, %c0_22] : memref<32x1xf32, #tpu.memory_space<vmem>>, vector<32x1xf32>
    %c0_23 = arith.constant 0 : index
    %c0_24 = arith.constant 0 : index
    %12 = vector.load %arg11[%c0_23, %c0_24] : memref<32x1xf32, #tpu.memory_space<vmem>>, vector<32x1xf32>
    %cst = arith.constant dense<0.000000e+00> : vector<96x128xf32>
    %13 = tpu.matmul %5, %1, %cst {dimension_numbers = #tpu.dot_dimension_numbers<[1], [0], [0], [1], [0, 0, 1, 1], [], []>} : vector<96x32xf32>, vector<32x128xf32>, vector<96x128xf32> -> vector<96x128xf32>
    %14 = vector.broadcast %6 : vector<96x1xf32> to vector<96x128xf32>
    %15 = arith.addf %13, %14 : vector<96x128xf32>
    %cst_25 = arith.constant 0.000000e+00 : f32
    %16 = vector.broadcast %cst_25 : f32 to vector<10x32x16xf32>
    %c0_26 = arith.constant 0 : index
    %c0_27 = arith.constant 0 : index
    %c0_28 = arith.constant 0 : index
    %17 = vector.load %arg13[%c0_26, %c0_27, %c0_28] : memref<10x32x16xf32, #tpu.memory_space<vmem>>, vector<10x32x16xf32>
    tpu.vector_store %arg13[%c0_26, %c0_27, %c0_28], %16 {strides = array<i32>} : memref<10x32x16xf32, #tpu.memory_space<vmem>>, vector<10x32x16xf32>,
    %18 = vector.extract_strided_slice %15 {offsets = [0, 0], sizes = [96, 16], strides = [1, 1]} : vector<96x128xf32> to vector<96x16xf32>
    %cst_29 = arith.constant 0.000000e+00 : f32
    %19 = vector.broadcast %cst_29 : f32 to vector<32x16xf32>
    %20 = vector.extract_strided_slice %18 {offsets = [0, 0], sizes = [32, 16], strides = [1, 1]} : vector<96x16xf32> to vector<32x16xf32>
    %21 = vector.extract_strided_slice %4 {offsets = [0, 0, 0], sizes = [1, 16, 16], strides = [1, 1, 1]} : vector<3x16x16xf32> to vector<1x16x16xf32>
    %22 = vector.shape_cast %21 : vector<1x16x16xf32> to vector<16x16xf32>
    %cst_30 = arith.constant dense<0.000000e+00> : vector<32x16xf32>
    %23 = tpu.matmul %20, %22, %cst_30 {dimension_numbers = #tpu.dot_dimension_numbers<[1], [0], [0], [1], [0, 0, 1, 1], [], []>} : vector<32x16xf32>, vector<16x16xf32>, vector<32x16xf32> -> vector<32x16xf32>
    %24 = arith.addf %19, %23 : vector<32x16xf32>
    %25 = vector.extract_strided_slice %18 {offsets = [32, 0], sizes = [32, 16], strides = [1, 1]} : vector<96x16xf32> to vector<32x16xf32>
    %26 = vector.extract_strided_slice %4 {offsets = [1, 0, 0], sizes = [1, 16, 16], strides = [1, 1, 1]} : vector<3x16x16xf32> to vector<1x16x16xf32>
    %27 = vector.shape_cast %26 : vector<1x16x16xf32> to vector<16x16xf32>
    %cst_31 = arith.constant dense<0.000000e+00> : vector<32x16xf32>
    %28 = tpu.matmul %25, %27, %cst_31 {dimension_numbers = #tpu.dot_dimension_numbers<[1], [0], [0], [1], [0, 0, 1, 1], [], []>} : vector<32x16xf32>, vector<16x16xf32>, vector<32x16xf32> -> vector<32x16xf32>
    %29 = arith.addf %24, %28 : vector<32x16xf32>
    %30 = vector.extract_strided_slice %18 {offsets = [64, 0], sizes = [32, 16], strides = [1, 1]} : vector<96x16xf32> to vector<32x16xf32>
    %31 = vector.extract_strided_slice %4 {offsets = [2, 0, 0], sizes = [1, 16, 16], strides = [1, 1, 1]} : vector<3x16x16xf32> to vector<1x16x16xf32>
    %32 = vector.shape_cast %31 : vector<1x16x16xf32> to vector<16x16xf32>
    %cst_32 = arith.constant dense<0.000000e+00> : vector<32x16xf32>
    %33 = tpu.matmul %30, %32, %cst_32 {dimension_numbers = #tpu.dot_dimension_numbers<[1], [0], [0], [1], [0, 0, 1, 1], [], []>} : vector<32x16xf32>, vector<16x16xf32>, vector<32x16xf32> -> vector<32x16xf32>
    %34 = arith.addf %29, %33 : vector<32x16xf32>
    %35 = vector.broadcast %7 : vector<32x1xf32> to vector<32x16xf32>
    %36 = arith.mulf %34, %35 : vector<32x16xf32>
    %37 = vector.broadcast %8 : vector<32x1xf32> to vector<32x16xf32>
    %38 = arith.addf %36, %37 : vector<32x16xf32>
    %cst_33 = arith.constant 0.000000e+00 : f32
    %39 = vector.broadcast %cst_33 : f32 to vector<32x16xf32>
    %40 = arith.maximumf %38, %39 : vector<32x16xf32>
    %c1 = arith.constant 1 : index
    %c0_34 = arith.constant 0 : index
    %c0_35 = arith.constant 0 : index
    %41 = vector.load %arg13[%c1, %c0_34, %c0_35] : memref<10x32x16xf32, #tpu.memory_space<vmem>>, vector<1x32x16xf32>
    %42 = vector.shape_cast %41 : vector<1x32x16xf32> to vector<32x16xf32>
    %43 = vector.shape_cast %40 : vector<32x16xf32> to vector<1x32x16xf32>
    tpu.vector_store %arg13[%c1, %c0_34, %c0_35], %43 {strides = array<i32>} : memref<10x32x16xf32, #tpu.memory_space<vmem>>, vector<1x32x16xf32>,
    %44 = vector.extract_strided_slice %15 {offsets = [0, 16], sizes = [96, 16], strides = [1, 1]} : vector<96x128xf32> to vector<96x16xf32>
    %cst_36 = arith.constant 0.000000e+00 : f32
    %45 = vector.broadcast %cst_36 : f32 to vector<32x16xf32>
    %46 = vector.extract_strided_slice %44 {offsets = [0, 0], sizes = [32, 16], strides = [1, 1]} : vector<96x16xf32> to vector<32x16xf32>
    %47 = vector.extract_strided_slice %4 {offsets = [0, 0, 0], sizes = [1, 16, 16], strides = [1, 1, 1]} : vector<3x16x16xf32> to vector<1x16x16xf32>
    %48 = vector.shape_cast %47 : vector<1x16x16xf32> to vector<16x16xf32>
    %cst_37 = arith.constant dense<0.000000e+00> : vector<32x16xf32>
    %49 = tpu.matmul %46, %48, %cst_37 {dimension_numbers = #tpu.dot_dimension_numbers<[1], [0], [0], [1], [0, 0, 1, 1], [], []>} : vector<32x16xf32>, vector<16x16xf32>, vector<32x16xf32> -> vector<32x16xf32>
    %50 = arith.addf %45, %49 : vector<32x16xf32>
    %51 = vector.extract_strided_slice %44 {offsets = [32, 0], sizes = [32, 16], strides = [1, 1]} : vector<96x16xf32> to vector<32x16xf32>
    %52 = vector.extract_strided_slice %4 {offsets = [1, 0, 0], sizes = [1, 16, 16], strides = [1, 1, 1]} : vector<3x16x16xf32> to vector<1x16x16xf32>
    %53 = vector.shape_cast %52 : vector<1x16x16xf32> to vector<16x16xf32>
    %cst_38 = arith.constant dense<0.000000e+00> : vector<32x16xf32>
    %54 = tpu.matmul %51, %53, %cst_38 {dimension_numbers = #tpu.dot_dimension_numbers<[1], [0], [0], [1], [0, 0, 1, 1], [], []>} : vector<32x16xf32>, vector<16x16xf32>, vector<32x16xf32> -> vector<32x16xf32>
    %55 = arith.addf %50, %54 : vector<32x16xf32>
    %56 = vector.extract_strided_slice %44 {offsets = [64, 0], sizes = [32, 16], strides = [1, 1]} : vector<96x16xf32> to vector<32x16xf32>
    %57 = vector.extract_strided_slice %4 {offsets = [2, 0, 0], sizes = [1, 16, 16], strides = [1, 1, 1]} : vector<3x16x16xf32> to vector<1x16x16xf32>
    %58 = vector.shape_cast %57 : vector<1x16x16xf32> to vector<16x16xf32>
    %cst_39 = arith.constant dense<0.000000e+00> : vector<32x16xf32>
    %59 = tpu.matmul %56, %58, %cst_39 {dimension_numbers = #tpu.dot_dimension_numbers<[1], [0], [0], [1], [0, 0, 1, 1], [], []>} : vector<32x16xf32>, vector<16x16xf32>, vector<32x16xf32> -> vector<32x16xf32>
    %60 = arith.addf %55, %59 : vector<32x16xf32>
    %61 = vector.broadcast %7 : vector<32x1xf32> to vector<32x16xf32>
    %62 = arith.mulf %60, %61 : vector<32x16xf32>
    %63 = vector.broadcast %8 : vector<32x1xf32> to vector<32x16xf32>
    %64 = arith.addf %62, %63 : vector<32x16xf32>
    %cst_40 = arith.constant 0.000000e+00 : f32
    %65 = vector.broadcast %cst_40 : f32 to vector<32x16xf32>
    %66 = arith.maximumf %64, %65 : vector<32x16xf32>
    %c2 = arith.constant 2 : index
    %c0_41 = arith.constant 0 : index
    %c0_42 = arith.constant 0 : index
    %67 = vector.load %arg13[%c2, %c0_41, %c0_42] : memref<10x32x16xf32, #tpu.memory_space<vmem>>, vector<1x32x16xf32>
    %68 = vector.shape_cast %67 : vector<1x32x16xf32> to vector<32x16xf32>
    %69 = vector.shape_cast %66 : vector<32x16xf32> to vector<1x32x16xf32>
    tpu.vector_store %arg13[%c2, %c0_41, %c0_42], %69 {strides = array<i32>} : memref<10x32x16xf32, #tpu.memory_space<vmem>>, vector<1x32x16xf32>,
    %70 = vector.extract_strided_slice %15 {offsets = [0, 32], sizes = [96, 16], strides = [1, 1]} : vector<96x128xf32> to vector<96x16xf32>
    %cst_43 = arith.constant 0.000000e+00 : f32
    %71 = vector.broadcast %cst_43 : f32 to vector<32x16xf32>
    %72 = vector.extract_strided_slice %70 {offsets = [0, 0], sizes = [32, 16], strides = [1, 1]} : vector<96x16xf32> to vector<32x16xf32>
    %73 = vector.extract_strided_slice %4 {offsets = [0, 0, 0], sizes = [1, 16, 16], strides = [1, 1, 1]} : vector<3x16x16xf32> to vector<1x16x16xf32>
    %74 = vector.shape_cast %73 : vector<1x16x16xf32> to vector<16x16xf32>
    %cst_44 = arith.constant dense<0.000000e+00> : vector<32x16xf32>
    %75 = tpu.matmul %72, %74, %cst_44 {dimension_numbers = #tpu.dot_dimension_numbers<[1], [0], [0], [1], [0, 0, 1, 1], [], []>} : vector<32x16xf32>, vector<16x16xf32>, vector<32x16xf32> -> vector<32x16xf32>
    %76 = arith.addf %71, %75 : vector<32x16xf32>
    %77 = vector.extract_strided_slice %70 {offsets = [32, 0], sizes = [32, 16], strides = [1, 1]} : vector<96x16xf32> to vector<32x16xf32>
    %78 = vector.extract_strided_slice %4 {offsets = [1, 0, 0], sizes = [1, 16, 16], strides = [1, 1, 1]} : vector<3x16x16xf32> to vector<1x16x16xf32>
    %79 = vector.shape_cast %78 : vector<1x16x16xf32> to vector<16x16xf32>
    %cst_45 = arith.constant dense<0.000000e+00> : vector<32x16xf32>
    %80 = tpu.matmul %77, %79, %cst_45 {dimension_numbers = #tpu.dot_dimension_numbers<[1], [0], [0], [1], [0, 0, 1, 1], [], []>} : vector<32x16xf32>, vector<16x16xf32>, vector<32x16xf32> -> vector<32x16xf32>
    %81 = arith.addf %76, %80 : vector<32x16xf32>
    %82 = vector.extract_strided_slice %70 {offsets = [64, 0], sizes = [32, 16], strides = [1, 1]} : vector<96x16xf32> to vector<32x16xf32>
    %83 = vector.extract_strided_slice %4 {offsets = [2, 0, 0], sizes = [1, 16, 16], strides = [1, 1, 1]} : vector<3x16x16xf32> to vector<1x16x16xf32>
    %84 = vector.shape_cast %83 : vector<1x16x16xf32> to vector<16x16xf32>
    %cst_46 = arith.constant dense<0.000000e+00> : vector<32x16xf32>
    %85 = tpu.matmul %82, %84, %cst_46 {dimension_numbers = #tpu.dot_dimension_numbers<[1], [0], [0], [1], [0, 0, 1, 1], [], []>} : vector<32x16xf32>, vector<16x16xf32>, vector<32x16xf32> -> vector<32x16xf32>
    %86 = arith.addf %81, %85 : vector<32x16xf32>
    %87 = vector.broadcast %7 : vector<32x1xf32> to vector<32x16xf32>
    %88 = arith.mulf %86, %87 : vector<32x16xf32>
    %89 = vector.broadcast %8 : vector<32x1xf32> to vector<32x16xf32>
    %90 = arith.addf %88, %89 : vector<32x16xf32>
    %cst_47 = arith.constant 0.000000e+00 : f32
    %91 = vector.broadcast %cst_47 : f32 to vector<32x16xf32>
    %92 = arith.maximumf %90, %91 : vector<32x16xf32>
    %c3 = arith.constant 3 : index
    %c0_48 = arith.constant 0 : index
    %c0_49 = arith.constant 0 : index
    %93 = vector.load %arg13[%c3, %c0_48, %c0_49] : memref<10x32x16xf32, #tpu.memory_space<vmem>>, vector<1x32x16xf32>
    %94 = vector.shape_cast %93 : vector<1x32x16xf32> to vector<32x16xf32>
    %95 = vector.shape_cast %92 : vector<32x16xf32> to vector<1x32x16xf32>
    tpu.vector_store %arg13[%c3, %c0_48, %c0_49], %95 {strides = array<i32>} : memref<10x32x16xf32, #tpu.memory_space<vmem>>, vector<1x32x16xf32>,
    %96 = vector.extract_strided_slice %15 {offsets = [0, 48], sizes = [96, 16], strides = [1, 1]} : vector<96x128xf32> to vector<96x16xf32>
    %cst_50 = arith.constant 0.000000e+00 : f32
    %97 = vector.broadcast %cst_50 : f32 to vector<32x16xf32>
    %98 = vector.extract_strided_slice %96 {offsets = [0, 0], sizes = [32, 16], strides = [1, 1]} : vector<96x16xf32> to vector<32x16xf32>
    %99 = vector.extract_strided_slice %4 {offsets = [0, 0, 0], sizes = [1, 16, 16], strides = [1, 1, 1]} : vector<3x16x16xf32> to vector<1x16x16xf32>
    %100 = vector.shape_cast %99 : vector<1x16x16xf32> to vector<16x16xf32>
    %cst_51 = arith.constant dense<0.000000e+00> : vector<32x16xf32>
    %101 = tpu.matmul %98, %100, %cst_51 {dimension_numbers = #tpu.dot_dimension_numbers<[1], [0], [0], [1], [0, 0, 1, 1], [], []>} : vector<32x16xf32>, vector<16x16xf32>, vector<32x16xf32> -> vector<32x16xf32>
    %102 = arith.addf %97, %101 : vector<32x16xf32>
    %103 = vector.extract_strided_slice %96 {offsets = [32, 0], sizes = [32, 16], strides = [1, 1]} : vector<96x16xf32> to vector<32x16xf32>
    %104 = vector.extract_strided_slice %4 {offsets = [1, 0, 0], sizes = [1, 16, 16], strides = [1, 1, 1]} : vector<3x16x16xf32> to vector<1x16x16xf32>
    %105 = vector.shape_cast %104 : vector<1x16x16xf32> to vector<16x16xf32>
    %cst_52 = arith.constant dense<0.000000e+00> : vector<32x16xf32>
    %106 = tpu.matmul %103, %105, %cst_52 {dimension_numbers = #tpu.dot_dimension_numbers<[1], [0], [0], [1], [0, 0, 1, 1], [], []>} : vector<32x16xf32>, vector<16x16xf32>, vector<32x16xf32> -> vector<32x16xf32>
    %107 = arith.addf %102, %106 : vector<32x16xf32>
    %108 = vector.extract_strided_slice %96 {offsets = [64, 0], sizes = [32, 16], strides = [1, 1]} : vector<96x16xf32> to vector<32x16xf32>
    %109 = vector.extract_strided_slice %4 {offsets = [2, 0, 0], sizes = [1, 16, 16], strides = [1, 1, 1]} : vector<3x16x16xf32> to vector<1x16x16xf32>
    %110 = vector.shape_cast %109 : vector<1x16x16xf32> to vector<16x16xf32>
    %cst_53 = arith.constant dense<0.000000e+00> : vector<32x16xf32>
    %111 = tpu.matmul %108, %110, %cst_53 {dimension_numbers = #tpu.dot_dimension_numbers<[1], [0], [0], [1], [0, 0, 1, 1], [], []>} : vector<32x16xf32>, vector<16x16xf32>, vector<32x16xf32> -> vector<32x16xf32>
    %112 = arith.addf %107, %111 : vector<32x16xf32>
    %113 = vector.broadcast %7 : vector<32x1xf32> to vector<32x16xf32>
    %114 = arith.mulf %112, %113 : vector<32x16xf32>
    %115 = vector.broadcast %8 : vector<32x1xf32> to vector<32x16xf32>
    %116 = arith.addf %114, %115 : vector<32x16xf32>
    %cst_54 = arith.constant 0.000000e+00 : f32
    %117 = vector.broadcast %cst_54 : f32 to vector<32x16xf32>
    %118 = arith.maximumf %116, %117 : vector<32x16xf32>
    %c4 = arith.constant 4 : index
    %c0_55 = arith.constant 0 : index
    %c0_56 = arith.constant 0 : index
    %119 = vector.load %arg13[%c4, %c0_55, %c0_56] : memref<10x32x16xf32, #tpu.memory_space<vmem>>, vector<1x32x16xf32>
    %120 = vector.shape_cast %119 : vector<1x32x16xf32> to vector<32x16xf32>
    %121 = vector.shape_cast %118 : vector<32x16xf32> to vector<1x32x16xf32>
    tpu.vector_store %arg13[%c4, %c0_55, %c0_56], %121 {strides = array<i32>} : memref<10x32x16xf32, #tpu.memory_space<vmem>>, vector<1x32x16xf32>,
    %122 = vector.extract_strided_slice %15 {offsets = [0, 64], sizes = [96, 16], strides = [1, 1]} : vector<96x128xf32> to vector<96x16xf32>
    %cst_57 = arith.constant 0.000000e+00 : f32
    %123 = vector.broadcast %cst_57 : f32 to vector<32x16xf32>
    %124 = vector.extract_strided_slice %122 {offsets = [0, 0], sizes = [32, 16], strides = [1, 1]} : vector<96x16xf32> to vector<32x16xf32>
    %125 = vector.extract_strided_slice %4 {offsets = [0, 0, 0], sizes = [1, 16, 16], strides = [1, 1, 1]} : vector<3x16x16xf32> to vector<1x16x16xf32>
    %126 = vector.shape_cast %125 : vector<1x16x16xf32> to vector<16x16xf32>
    %cst_58 = arith.constant dense<0.000000e+00> : vector<32x16xf32>
    %127 = tpu.matmul %124, %126, %cst_58 {dimension_numbers = #tpu.dot_dimension_numbers<[1], [0], [0], [1], [0, 0, 1, 1], [], []>} : vector<32x16xf32>, vector<16x16xf32>, vector<32x16xf32> -> vector<32x16xf32>
    %128 = arith.addf %123, %127 : vector<32x16xf32>
    %129 = vector.extract_strided_slice %122 {offsets = [32, 0], sizes = [32, 16], strides = [1, 1]} : vector<96x16xf32> to vector<32x16xf32>
    %130 = vector.extract_strided_slice %4 {offsets = [1, 0, 0], sizes = [1, 16, 16], strides = [1, 1, 1]} : vector<3x16x16xf32> to vector<1x16x16xf32>
    %131 = vector.shape_cast %130 : vector<1x16x16xf32> to vector<16x16xf32>
    %cst_59 = arith.constant dense<0.000000e+00> : vector<32x16xf32>
    %132 = tpu.matmul %129, %131, %cst_59 {dimension_numbers = #tpu.dot_dimension_numbers<[1], [0], [0], [1], [0, 0, 1, 1], [], []>} : vector<32x16xf32>, vector<16x16xf32>, vector<32x16xf32> -> vector<32x16xf32>
    %133 = arith.addf %128, %132 : vector<32x16xf32>
    %134 = vector.extract_strided_slice %122 {offsets = [64, 0], sizes = [32, 16], strides = [1, 1]} : vector<96x16xf32> to vector<32x16xf32>
    %135 = vector.extract_strided_slice %4 {offsets = [2, 0, 0], sizes = [1, 16, 16], strides = [1, 1, 1]} : vector<3x16x16xf32> to vector<1x16x16xf32>
    %136 = vector.shape_cast %135 : vector<1x16x16xf32> to vector<16x16xf32>
    %cst_60 = arith.constant dense<0.000000e+00> : vector<32x16xf32>
    %137 = tpu.matmul %134, %136, %cst_60 {dimension_numbers = #tpu.dot_dimension_numbers<[1], [0], [0], [1], [0, 0, 1, 1], [], []>} : vector<32x16xf32>, vector<16x16xf32>, vector<32x16xf32> -> vector<32x16xf32>
    %138 = arith.addf %133, %137 : vector<32x16xf32>
    %139 = vector.broadcast %7 : vector<32x1xf32> to vector<32x16xf32>
    %140 = arith.mulf %138, %139 : vector<32x16xf32>
    %141 = vector.broadcast %8 : vector<32x1xf32> to vector<32x16xf32>
    %142 = arith.addf %140, %141 : vector<32x16xf32>
    %cst_61 = arith.constant 0.000000e+00 : f32
    %143 = vector.broadcast %cst_61 : f32 to vector<32x16xf32>
    %144 = arith.maximumf %142, %143 : vector<32x16xf32>
    %c5 = arith.constant 5 : index
    %c0_62 = arith.constant 0 : index
    %c0_63 = arith.constant 0 : index
    %145 = vector.load %arg13[%c5, %c0_62, %c0_63] : memref<10x32x16xf32, #tpu.memory_space<vmem>>, vector<1x32x16xf32>
    %146 = vector.shape_cast %145 : vector<1x32x16xf32> to vector<32x16xf32>
    %147 = vector.shape_cast %144 : vector<32x16xf32> to vector<1x32x16xf32>
    tpu.vector_store %arg13[%c5, %c0_62, %c0_63], %147 {strides = array<i32>} : memref<10x32x16xf32, #tpu.memory_space<vmem>>, vector<1x32x16xf32>,
    %148 = vector.extract_strided_slice %15 {offsets = [0, 80], sizes = [96, 16], strides = [1, 1]} : vector<96x128xf32> to vector<96x16xf32>
    %cst_64 = arith.constant 0.000000e+00 : f32
    %149 = vector.broadcast %cst_64 : f32 to vector<32x16xf32>
    %150 = vector.extract_strided_slice %148 {offsets = [0, 0], sizes = [32, 16], strides = [1, 1]} : vector<96x16xf32> to vector<32x16xf32>
    %151 = vector.extract_strided_slice %4 {offsets = [0, 0, 0], sizes = [1, 16, 16], strides = [1, 1, 1]} : vector<3x16x16xf32> to vector<1x16x16xf32>
    %152 = vector.shape_cast %151 : vector<1x16x16xf32> to vector<16x16xf32>
    %cst_65 = arith.constant dense<0.000000e+00> : vector<32x16xf32>
    %153 = tpu.matmul %150, %152, %cst_65 {dimension_numbers = #tpu.dot_dimension_numbers<[1], [0], [0], [1], [0, 0, 1, 1], [], []>} : vector<32x16xf32>, vector<16x16xf32>, vector<32x16xf32> -> vector<32x16xf32>
    %154 = arith.addf %149, %153 : vector<32x16xf32>
    %155 = vector.extract_strided_slice %148 {offsets = [32, 0], sizes = [32, 16], strides = [1, 1]} : vector<96x16xf32> to vector<32x16xf32>
    %156 = vector.extract_strided_slice %4 {offsets = [1, 0, 0], sizes = [1, 16, 16], strides = [1, 1, 1]} : vector<3x16x16xf32> to vector<1x16x16xf32>
    %157 = vector.shape_cast %156 : vector<1x16x16xf32> to vector<16x16xf32>
    %cst_66 = arith.constant dense<0.000000e+00> : vector<32x16xf32>
    %158 = tpu.matmul %155, %157, %cst_66 {dimension_numbers = #tpu.dot_dimension_numbers<[1], [0], [0], [1], [0, 0, 1, 1], [], []>} : vector<32x16xf32>, vector<16x16xf32>, vector<32x16xf32> -> vector<32x16xf32>
    %159 = arith.addf %154, %158 : vector<32x16xf32>
    %160 = vector.extract_strided_slice %148 {offsets = [64, 0], sizes = [32, 16], strides = [1, 1]} : vector<96x16xf32> to vector<32x16xf32>
    %161 = vector.extract_strided_slice %4 {offsets = [2, 0, 0], sizes = [1, 16, 16], strides = [1, 1, 1]} : vector<3x16x16xf32> to vector<1x16x16xf32>
    %162 = vector.shape_cast %161 : vector<1x16x16xf32> to vector<16x16xf32>
    %cst_67 = arith.constant dense<0.000000e+00> : vector<32x16xf32>
    %163 = tpu.matmul %160, %162, %cst_67 {dimension_numbers = #tpu.dot_dimension_numbers<[1], [0], [0], [1], [0, 0, 1, 1], [], []>} : vector<32x16xf32>, vector<16x16xf32>, vector<32x16xf32> -> vector<32x16xf32>
    %164 = arith.addf %159, %163 : vector<32x16xf32>
    %165 = vector.broadcast %7 : vector<32x1xf32> to vector<32x16xf32>
    %166 = arith.mulf %164, %165 : vector<32x16xf32>
    %167 = vector.broadcast %8 : vector<32x1xf32> to vector<32x16xf32>
    %168 = arith.addf %166, %167 : vector<32x16xf32>
    %cst_68 = arith.constant 0.000000e+00 : f32
    %169 = vector.broadcast %cst_68 : f32 to vector<32x16xf32>
    %170 = arith.maximumf %168, %169 : vector<32x16xf32>
    %c6 = arith.constant 6 : index
    %c0_69 = arith.constant 0 : index
    %c0_70 = arith.constant 0 : index
    %171 = vector.load %arg13[%c6, %c0_69, %c0_70] : memref<10x32x16xf32, #tpu.memory_space<vmem>>, vector<1x32x16xf32>
    %172 = vector.shape_cast %171 : vector<1x32x16xf32> to vector<32x16xf32>
    %173 = vector.shape_cast %170 : vector<32x16xf32> to vector<1x32x16xf32>
    tpu.vector_store %arg13[%c6, %c0_69, %c0_70], %173 {strides = array<i32>} : memref<10x32x16xf32, #tpu.memory_space<vmem>>, vector<1x32x16xf32>,
    %174 = vector.extract_strided_slice %15 {offsets = [0, 96], sizes = [96, 16], strides = [1, 1]} : vector<96x128xf32> to vector<96x16xf32>
    %cst_71 = arith.constant 0.000000e+00 : f32
    %175 = vector.broadcast %cst_71 : f32 to vector<32x16xf32>
    %176 = vector.extract_strided_slice %174 {offsets = [0, 0], sizes = [32, 16], strides = [1, 1]} : vector<96x16xf32> to vector<32x16xf32>
    %177 = vector.extract_strided_slice %4 {offsets = [0, 0, 0], sizes = [1, 16, 16], strides = [1, 1, 1]} : vector<3x16x16xf32> to vector<1x16x16xf32>
    %178 = vector.shape_cast %177 : vector<1x16x16xf32> to vector<16x16xf32>
    %cst_72 = arith.constant dense<0.000000e+00> : vector<32x16xf32>
    %179 = tpu.matmul %176, %178, %cst_72 {dimension_numbers = #tpu.dot_dimension_numbers<[1], [0], [0], [1], [0, 0, 1, 1], [], []>} : vector<32x16xf32>, vector<16x16xf32>, vector<32x16xf32> -> vector<32x16xf32>
    %180 = arith.addf %175, %179 : vector<32x16xf32>
    %181 = vector.extract_strided_slice %174 {offsets = [32, 0], sizes = [32, 16], strides = [1, 1]} : vector<96x16xf32> to vector<32x16xf32>
    %182 = vector.extract_strided_slice %4 {offsets = [1, 0, 0], sizes = [1, 16, 16], strides = [1, 1, 1]} : vector<3x16x16xf32> to vector<1x16x16xf32>
    %183 = vector.shape_cast %182 : vector<1x16x16xf32> to vector<16x16xf32>
    %cst_73 = arith.constant dense<0.000000e+00> : vector<32x16xf32>
    %184 = tpu.matmul %181, %183, %cst_73 {dimension_numbers = #tpu.dot_dimension_numbers<[1], [0], [0], [1], [0, 0, 1, 1], [], []>} : vector<32x16xf32>, vector<16x16xf32>, vector<32x16xf32> -> vector<32x16xf32>
    %185 = arith.addf %180, %184 : vector<32x16xf32>
    %186 = vector.extract_strided_slice %174 {offsets = [64, 0], sizes = [32, 16], strides = [1, 1]} : vector<96x16xf32> to vector<32x16xf32>
    %187 = vector.extract_strided_slice %4 {offsets = [2, 0, 0], sizes = [1, 16, 16], strides = [1, 1, 1]} : vector<3x16x16xf32> to vector<1x16x16xf32>
    %188 = vector.shape_cast %187 : vector<1x16x16xf32> to vector<16x16xf32>
    %cst_74 = arith.constant dense<0.000000e+00> : vector<32x16xf32>
    %189 = tpu.matmul %186, %188, %cst_74 {dimension_numbers = #tpu.dot_dimension_numbers<[1], [0], [0], [1], [0, 0, 1, 1], [], []>} : vector<32x16xf32>, vector<16x16xf32>, vector<32x16xf32> -> vector<32x16xf32>
    %190 = arith.addf %185, %189 : vector<32x16xf32>
    %191 = vector.broadcast %7 : vector<32x1xf32> to vector<32x16xf32>
    %192 = arith.mulf %190, %191 : vector<32x16xf32>
    %193 = vector.broadcast %8 : vector<32x1xf32> to vector<32x16xf32>
    %194 = arith.addf %192, %193 : vector<32x16xf32>
    %cst_75 = arith.constant 0.000000e+00 : f32
    %195 = vector.broadcast %cst_75 : f32 to vector<32x16xf32>
    %196 = arith.maximumf %194, %195 : vector<32x16xf32>
    %c7 = arith.constant 7 : index
    %c0_76 = arith.constant 0 : index
    %c0_77 = arith.constant 0 : index
    %197 = vector.load %arg13[%c7, %c0_76, %c0_77] : memref<10x32x16xf32, #tpu.memory_space<vmem>>, vector<1x32x16xf32>
    %198 = vector.shape_cast %197 : vector<1x32x16xf32> to vector<32x16xf32>
    %199 = vector.shape_cast %196 : vector<32x16xf32> to vector<1x32x16xf32>
    tpu.vector_store %arg13[%c7, %c0_76, %c0_77], %199 {strides = array<i32>} : memref<10x32x16xf32, #tpu.memory_space<vmem>>, vector<1x32x16xf32>,
    %200 = vector.extract_strided_slice %15 {offsets = [0, 112], sizes = [96, 16], strides = [1, 1]} : vector<96x128xf32> to vector<96x16xf32>
    %cst_78 = arith.constant 0.000000e+00 : f32
    %201 = vector.broadcast %cst_78 : f32 to vector<32x16xf32>
    %202 = vector.extract_strided_slice %200 {offsets = [0, 0], sizes = [32, 16], strides = [1, 1]} : vector<96x16xf32> to vector<32x16xf32>
    %203 = vector.extract_strided_slice %4 {offsets = [0, 0, 0], sizes = [1, 16, 16], strides = [1, 1, 1]} : vector<3x16x16xf32> to vector<1x16x16xf32>
    %204 = vector.shape_cast %203 : vector<1x16x16xf32> to vector<16x16xf32>
    %cst_79 = arith.constant dense<0.000000e+00> : vector<32x16xf32>
    %205 = tpu.matmul %202, %204, %cst_79 {dimension_numbers = #tpu.dot_dimension_numbers<[1], [0], [0], [1], [0, 0, 1, 1], [], []>} : vector<32x16xf32>, vector<16x16xf32>, vector<32x16xf32> -> vector<32x16xf32>
    %206 = arith.addf %201, %205 : vector<32x16xf32>
    %207 = vector.extract_strided_slice %200 {offsets = [32, 0], sizes = [32, 16], strides = [1, 1]} : vector<96x16xf32> to vector<32x16xf32>
    %208 = vector.extract_strided_slice %4 {offsets = [1, 0, 0], sizes = [1, 16, 16], strides = [1, 1, 1]} : vector<3x16x16xf32> to vector<1x16x16xf32>
    %209 = vector.shape_cast %208 : vector<1x16x16xf32> to vector<16x16xf32>
    %cst_80 = arith.constant dense<0.000000e+00> : vector<32x16xf32>
    %210 = tpu.matmul %207, %209, %cst_80 {dimension_numbers = #tpu.dot_dimension_numbers<[1], [0], [0], [1], [0, 0, 1, 1], [], []>} : vector<32x16xf32>, vector<16x16xf32>, vector<32x16xf32> -> vector<32x16xf32>
    %211 = arith.addf %206, %210 : vector<32x16xf32>
    %212 = vector.extract_strided_slice %200 {offsets = [64, 0], sizes = [32, 16], strides = [1, 1]} : vector<96x16xf32> to vector<32x16xf32>
    %213 = vector.extract_strided_slice %4 {offsets = [2, 0, 0], sizes = [1, 16, 16], strides = [1, 1, 1]} : vector<3x16x16xf32> to vector<1x16x16xf32>
    %214 = vector.shape_cast %213 : vector<1x16x16xf32> to vector<16x16xf32>
    %cst_81 = arith.constant dense<0.000000e+00> : vector<32x16xf32>
    %215 = tpu.matmul %212, %214, %cst_81 {dimension_numbers = #tpu.dot_dimension_numbers<[1], [0], [0], [1], [0, 0, 1, 1], [], []>} : vector<32x16xf32>, vector<16x16xf32>, vector<32x16xf32> -> vector<32x16xf32>
    %216 = arith.addf %211, %215 : vector<32x16xf32>
    %217 = vector.broadcast %7 : vector<32x1xf32> to vector<32x16xf32>
    %218 = arith.mulf %216, %217 : vector<32x16xf32>
    %219 = vector.broadcast %8 : vector<32x1xf32> to vector<32x16xf32>
    %220 = arith.addf %218, %219 : vector<32x16xf32>
    %cst_82 = arith.constant 0.000000e+00 : f32
    %221 = vector.broadcast %cst_82 : f32 to vector<32x16xf32>
    %222 = arith.maximumf %220, %221 : vector<32x16xf32>
    %c8 = arith.constant 8 : index
    %c0_83 = arith.constant 0 : index
    %c0_84 = arith.constant 0 : index
    %223 = vector.load %arg13[%c8, %c0_83, %c0_84] : memref<10x32x16xf32, #tpu.memory_space<vmem>>, vector<1x32x16xf32>
    %224 = vector.shape_cast %223 : vector<1x32x16xf32> to vector<32x16xf32>
    %225 = vector.shape_cast %222 : vector<32x16xf32> to vector<1x32x16xf32>
    tpu.vector_store %arg13[%c8, %c0_83, %c0_84], %225 {strides = array<i32>} : memref<10x32x16xf32, #tpu.memory_space<vmem>>, vector<1x32x16xf32>,
    %cst_85 = arith.constant 0.000000e+00 : f32
    %226 = vector.broadcast %cst_85 : f32 to vector<32x16xf32>
    %227 = vector.extract_strided_slice %9 {offsets = [0, 0, 0], sizes = [1, 32, 32], strides = [1, 1, 1]} : vector<3x32x32xf32> to vector<1x32x32xf32>
    %228 = vector.shape_cast %227 : vector<1x32x32xf32> to vector<32x32xf32>
    %c0_86 = arith.constant 0 : index
    %c0_87 = arith.constant 0 : index
    %c0_88 = arith.constant 0 : index
    %229 = vector.load %arg13[%c0_86, %c0_87, %c0_88] : memref<10x32x16xf32, #tpu.memory_space<vmem>>, vector<1x32x16xf32>
    %230 = vector.shape_cast %229 : vector<1x32x16xf32> to vector<32x16xf32>
    %cst_89 = arith.constant dense<0.000000e+00> : vector<32x16xf32>
    %231 = tpu.matmul %228, %230, %cst_89 {dimension_numbers = #tpu.dot_dimension_numbers<[1], [0], [0], [1], [0, 0, 1, 1], [], []>} : vector<32x32xf32>, vector<32x16xf32>, vector<32x16xf32> -> vector<32x16xf32>
    %232 = arith.addf %226, %231 : vector<32x16xf32>
    %233 = vector.extract_strided_slice %9 {offsets = [1, 0, 0], sizes = [1, 32, 32], strides = [1, 1, 1]} : vector<3x32x32xf32> to vector<1x32x32xf32>
    %234 = vector.shape_cast %233 : vector<1x32x32xf32> to vector<32x32xf32>
    %c1_90 = arith.constant 1 : index
    %c0_91 = arith.constant 0 : index
    %c0_92 = arith.constant 0 : index
    %235 = vector.load %arg13[%c1_90, %c0_91, %c0_92] : memref<10x32x16xf32, #tpu.memory_space<vmem>>, vector<1x32x16xf32>
    %236 = vector.shape_cast %235 : vector<1x32x16xf32> to vector<32x16xf32>
    %cst_93 = arith.constant dense<0.000000e+00> : vector<32x16xf32>
    %237 = tpu.matmul %234, %236, %cst_93 {dimension_numbers = #tpu.dot_dimension_numbers<[1], [0], [0], [1], [0, 0, 1, 1], [], []>} : vector<32x32xf32>, vector<32x16xf32>, vector<32x16xf32> -> vector<32x16xf32>
    %238 = arith.addf %232, %237 : vector<32x16xf32>
    %239 = vector.extract_strided_slice %9 {offsets = [2, 0, 0], sizes = [1, 32, 32], strides = [1, 1, 1]} : vector<3x32x32xf32> to vector<1x32x32xf32>
    %240 = vector.shape_cast %239 : vector<1x32x32xf32> to vector<32x32xf32>
    %c2_94 = arith.constant 2 : index
    %c0_95 = arith.constant 0 : index
    %c0_96 = arith.constant 0 : index
    %241 = vector.load %arg13[%c2_94, %c0_95, %c0_96] : memref<10x32x16xf32, #tpu.memory_space<vmem>>, vector<1x32x16xf32>
    %242 = vector.shape_cast %241 : vector<1x32x16xf32> to vector<32x16xf32>
    %cst_97 = arith.constant dense<0.000000e+00> : vector<32x16xf32>
    %243 = tpu.matmul %240, %242, %cst_97 {dimension_numbers = #tpu.dot_dimension_numbers<[1], [0], [0], [1], [0, 0, 1, 1], [], []>} : vector<32x32xf32>, vector<32x16xf32>, vector<32x16xf32> -> vector<32x16xf32>
    %244 = arith.addf %238, %243 : vector<32x16xf32>
    %245 = vector.broadcast %10 : vector<32x1xf32> to vector<32x16xf32>
    %246 = arith.addf %244, %245 : vector<32x16xf32>
    %247 = vector.broadcast %11 : vector<32x1xf32> to vector<32x16xf32>
    %248 = arith.mulf %246, %247 : vector<32x16xf32>
    %249 = vector.broadcast %12 : vector<32x1xf32> to vector<32x16xf32>
    %250 = arith.addf %248, %249 : vector<32x16xf32>
    %251 = vector.extract_strided_slice %1 {offsets = [0, 0], sizes = [32, 16], strides = [1, 1]} : vector<32x128xf32> to vector<32x16xf32>
    %252 = arith.addf %250, %251 : vector<32x16xf32>
    %cst_98 = arith.constant 0.000000e+00 : f32
    %253 = vector.broadcast %cst_98 : f32 to vector<32x16xf32>
    %254 = arith.maximumf %252, %253 : vector<32x16xf32>
    %c0_99 = arith.constant 0 : index
    %c0_100 = arith.constant 0 : index
    %c0_101 = arith.constant 0 : index
    %c0_102 = arith.constant 0 : index
    %255 = vector.load %arg12[%c0_99, %c0_100, %c0_101, %c0_102] : memref<1x8x32x16xf32, #tpu.memory_space<vmem>>, vector<1x1x32x16xf32>
    %256 = vector.shape_cast %255 : vector<1x1x32x16xf32> to vector<32x16xf32>
    %257 = vector.shape_cast %254 : vector<32x16xf32> to vector<1x1x32x16xf32>
    tpu.vector_store %arg12[%c0_99, %c0_100, %c0_101, %c0_102], %257 {strides = array<i32>} : memref<1x8x32x16xf32, #tpu.memory_space<vmem>>, vector<1x1x32x16xf32>,
    %cst_103 = arith.constant 0.000000e+00 : f32
    %258 = vector.broadcast %cst_103 : f32 to vector<32x16xf32>
    %259 = vector.extract_strided_slice %9 {offsets = [0, 0, 0], sizes = [1, 32, 32], strides = [1, 1, 1]} : vector<3x32x32xf32> to vector<1x32x32xf32>
    %260 = vector.shape_cast %259 : vector<1x32x32xf32> to vector<32x32xf32>
    %c1_104 = arith.constant 1 : index
    %c0_105 = arith.constant 0 : index
    %c0_106 = arith.constant 0 : index
    %261 = vector.load %arg13[%c1_104, %c0_105, %c0_106] : memref<10x32x16xf32, #tpu.memory_space<vmem>>, vector<1x32x16xf32>
    %262 = vector.shape_cast %261 : vector<1x32x16xf32> to vector<32x16xf32>
    %cst_107 = arith.constant dense<0.000000e+00> : vector<32x16xf32>
    %263 = tpu.matmul %260, %262, %cst_107 {dimension_numbers = #tpu.dot_dimension_numbers<[1], [0], [0], [1], [0, 0, 1, 1], [], []>} : vector<32x32xf32>, vector<32x16xf32>, vector<32x16xf32> -> vector<32x16xf32>
    %264 = arith.addf %258, %263 : vector<32x16xf32>
    %265 = vector.extract_strided_slice %9 {offsets = [1, 0, 0], sizes = [1, 32, 32], strides = [1, 1, 1]} : vector<3x32x32xf32> to vector<1x32x32xf32>
    %266 = vector.shape_cast %265 : vector<1x32x32xf32> to vector<32x32xf32>
    %c2_108 = arith.constant 2 : index
    %c0_109 = arith.constant 0 : index
    %c0_110 = arith.constant 0 : index
    %267 = vector.load %arg13[%c2_108, %c0_109, %c0_110] : memref<10x32x16xf32, #tpu.memory_space<vmem>>, vector<1x32x16xf32>
    %268 = vector.shape_cast %267 : vector<1x32x16xf32> to vector<32x16xf32>
    %cst_111 = arith.constant dense<0.000000e+00> : vector<32x16xf32>
    %269 = tpu.matmul %266, %268, %cst_111 {dimension_numbers = #tpu.dot_dimension_numbers<[1], [0], [0], [1], [0, 0, 1, 1], [], []>} : vector<32x32xf32>, vector<32x16xf32>, vector<32x16xf32> -> vector<32x16xf32>
    %270 = arith.addf %264, %269 : vector<32x16xf32>
    %271 = vector.extract_strided_slice %9 {offsets = [2, 0, 0], sizes = [1, 32, 32], strides = [1, 1, 1]} : vector<3x32x32xf32> to vector<1x32x32xf32>
    %272 = vector.shape_cast %271 : vector<1x32x32xf32> to vector<32x32xf32>
    %c3_112 = arith.constant 3 : index
    %c0_113 = arith.constant 0 : index
    %c0_114 = arith.constant 0 : index
    %273 = vector.load %arg13[%c3_112, %c0_113, %c0_114] : memref<10x32x16xf32, #tpu.memory_space<vmem>>, vector<1x32x16xf32>
    %274 = vector.shape_cast %273 : vector<1x32x16xf32> to vector<32x16xf32>
    %cst_115 = arith.constant dense<0.000000e+00> : vector<32x16xf32>
    %275 = tpu.matmul %272, %274, %cst_115 {dimension_numbers = #tpu.dot_dimension_numbers<[1], [0], [0], [1], [0, 0, 1, 1], [], []>} : vector<32x32xf32>, vector<32x16xf32>, vector<32x16xf32> -> vector<32x16xf32>
    %276 = arith.addf %270, %275 : vector<32x16xf32>
    %277 = vector.broadcast %10 : vector<32x1xf32> to vector<32x16xf32>
    %278 = arith.addf %276, %277 : vector<32x16xf32>
    %279 = vector.broadcast %11 : vector<32x1xf32> to vector<32x16xf32>
    %280 = arith.mulf %278, %279 : vector<32x16xf32>
    %281 = vector.broadcast %12 : vector<32x1xf32> to vector<32x16xf32>
    %282 = arith.addf %280, %281 : vector<32x16xf32>
    %283 = vector.extract_strided_slice %1 {offsets = [0, 16], sizes = [32, 16], strides = [1, 1]} : vector<32x128xf32> to vector<32x16xf32>
    %284 = arith.addf %282, %283 : vector<32x16xf32>
    %cst_116 = arith.constant 0.000000e+00 : f32
    %285 = vector.broadcast %cst_116 : f32 to vector<32x16xf32>
    %286 = arith.maximumf %284, %285 : vector<32x16xf32>
    %c0_117 = arith.constant 0 : index
    %c1_118 = arith.constant 1 : index
    %c0_119 = arith.constant 0 : index
    %c0_120 = arith.constant 0 : index
    %287 = vector.load %arg12[%c0_117, %c1_118, %c0_119, %c0_120] : memref<1x8x32x16xf32, #tpu.memory_space<vmem>>, vector<1x1x32x16xf32>
    %288 = vector.shape_cast %287 : vector<1x1x32x16xf32> to vector<32x16xf32>
    %289 = vector.shape_cast %286 : vector<32x16xf32> to vector<1x1x32x16xf32>
    tpu.vector_store %arg12[%c0_117, %c1_118, %c0_119, %c0_120], %289 {strides = array<i32>} : memref<1x8x32x16xf32, #tpu.memory_space<vmem>>, vector<1x1x32x16xf32>,
    %cst_121 = arith.constant 0.000000e+00 : f32
    %290 = vector.broadcast %cst_121 : f32 to vector<32x16xf32>
    %291 = vector.extract_strided_slice %9 {offsets = [0, 0, 0], sizes = [1, 32, 32], strides = [1, 1, 1]} : vector<3x32x32xf32> to vector<1x32x32xf32>
    %292 = vector.shape_cast %291 : vector<1x32x32xf32> to vector<32x32xf32>
    %c2_122 = arith.constant 2 : index
    %c0_123 = arith.constant 0 : index
    %c0_124 = arith.constant 0 : index
    %293 = vector.load %arg13[%c2_122, %c0_123, %c0_124] : memref<10x32x16xf32, #tpu.memory_space<vmem>>, vector<1x32x16xf32>
    %294 = vector.shape_cast %293 : vector<1x32x16xf32> to vector<32x16xf32>
    %cst_125 = arith.constant dense<0.000000e+00> : vector<32x16xf32>
    %295 = tpu.matmul %292, %294, %cst_125 {dimension_numbers = #tpu.dot_dimension_numbers<[1], [0], [0], [1], [0, 0, 1, 1], [], []>} : vector<32x32xf32>, vector<32x16xf32>, vector<32x16xf32> -> vector<32x16xf32>
    %296 = arith.addf %290, %295 : vector<32x16xf32>
    %297 = vector.extract_strided_slice %9 {offsets = [1, 0, 0], sizes = [1, 32, 32], strides = [1, 1, 1]} : vector<3x32x32xf32> to vector<1x32x32xf32>
    %298 = vector.shape_cast %297 : vector<1x32x32xf32> to vector<32x32xf32>
    %c3_126 = arith.constant 3 : index
    %c0_127 = arith.constant 0 : index
    %c0_128 = arith.constant 0 : index
    %299 = vector.load %arg13[%c3_126, %c0_127, %c0_128] : memref<10x32x16xf32, #tpu.memory_space<vmem>>, vector<1x32x16xf32>
    %300 = vector.shape_cast %299 : vector<1x32x16xf32> to vector<32x16xf32>
    %cst_129 = arith.constant dense<0.000000e+00> : vector<32x16xf32>
    %301 = tpu.matmul %298, %300, %cst_129 {dimension_numbers = #tpu.dot_dimension_numbers<[1], [0], [0], [1], [0, 0, 1, 1], [], []>} : vector<32x32xf32>, vector<32x16xf32>, vector<32x16xf32> -> vector<32x16xf32>
    %302 = arith.addf %296, %301 : vector<32x16xf32>
    %303 = vector.extract_strided_slice %9 {offsets = [2, 0, 0], sizes = [1, 32, 32], strides = [1, 1, 1]} : vector<3x32x32xf32> to vector<1x32x32xf32>
    %304 = vector.shape_cast %303 : vector<1x32x32xf32> to vector<32x32xf32>
    %c4_130 = arith.constant 4 : index
    %c0_131 = arith.constant 0 : index
    %c0_132 = arith.constant 0 : index
    %305 = vector.load %arg13[%c4_130, %c0_131, %c0_132] : memref<10x32x16xf32, #tpu.memory_space<vmem>>, vector<1x32x16xf32>
    %306 = vector.shape_cast %305 : vector<1x32x16xf32> to vector<32x16xf32>
    %cst_133 = arith.constant dense<0.000000e+00> : vector<32x16xf32>
    %307 = tpu.matmul %304, %306, %cst_133 {dimension_numbers = #tpu.dot_dimension_numbers<[1], [0], [0], [1], [0, 0, 1, 1], [], []>} : vector<32x32xf32>, vector<32x16xf32>, vector<32x16xf32> -> vector<32x16xf32>
    %308 = arith.addf %302, %307 : vector<32x16xf32>
    %309 = vector.broadcast %10 : vector<32x1xf32> to vector<32x16xf32>
    %310 = arith.addf %308, %309 : vector<32x16xf32>
    %311 = vector.broadcast %11 : vector<32x1xf32> to vector<32x16xf32>
    %312 = arith.mulf %310, %311 : vector<32x16xf32>
    %313 = vector.broadcast %12 : vector<32x1xf32> to vector<32x16xf32>
    %314 = arith.addf %312, %313 : vector<32x16xf32>
    %315 = vector.extract_strided_slice %1 {offsets = [0, 32], sizes = [32, 16], strides = [1, 1]} : vector<32x128xf32> to vector<32x16xf32>
    %316 = arith.addf %314, %315 : vector<32x16xf32>
    %cst_134 = arith.constant 0.000000e+00 : f32
    %317 = vector.broadcast %cst_134 : f32 to vector<32x16xf32>
    %318 = arith.maximumf %316, %317 : vector<32x16xf32>
    %c0_135 = arith.constant 0 : index
    %c2_136 = arith.constant 2 : index
    %c0_137 = arith.constant 0 : index
    %c0_138 = arith.constant 0 : index
    %319 = vector.load %arg12[%c0_135, %c2_136, %c0_137, %c0_138] : memref<1x8x32x16xf32, #tpu.memory_space<vmem>>, vector<1x1x32x16xf32>
    %320 = vector.shape_cast %319 : vector<1x1x32x16xf32> to vector<32x16xf32>
    %321 = vector.shape_cast %318 : vector<32x16xf32> to vector<1x1x32x16xf32>
    tpu.vector_store %arg12[%c0_135, %c2_136, %c0_137, %c0_138], %321 {strides = array<i32>} : memref<1x8x32x16xf32, #tpu.memory_space<vmem>>, vector<1x1x32x16xf32>,
    %cst_139 = arith.constant 0.000000e+00 : f32
    %322 = vector.broadcast %cst_139 : f32 to vector<32x16xf32>
    %323 = vector.extract_strided_slice %9 {offsets = [0, 0, 0], sizes = [1, 32, 32], strides = [1, 1, 1]} : vector<3x32x32xf32> to vector<1x32x32xf32>
    %324 = vector.shape_cast %323 : vector<1x32x32xf32> to vector<32x32xf32>
    %c3_140 = arith.constant 3 : index
    %c0_141 = arith.constant 0 : index
    %c0_142 = arith.constant 0 : index
    %325 = vector.load %arg13[%c3_140, %c0_141, %c0_142] : memref<10x32x16xf32, #tpu.memory_space<vmem>>, vector<1x32x16xf32>
    %326 = vector.shape_cast %325 : vector<1x32x16xf32> to vector<32x16xf32>
    %cst_143 = arith.constant dense<0.000000e+00> : vector<32x16xf32>
    %327 = tpu.matmul %324, %326, %cst_143 {dimension_numbers = #tpu.dot_dimension_numbers<[1], [0], [0], [1], [0, 0, 1, 1], [], []>} : vector<32x32xf32>, vector<32x16xf32>, vector<32x16xf32> -> vector<32x16xf32>
    %328 = arith.addf %322, %327 : vector<32x16xf32>
    %329 = vector.extract_strided_slice %9 {offsets = [1, 0, 0], sizes = [1, 32, 32], strides = [1, 1, 1]} : vector<3x32x32xf32> to vector<1x32x32xf32>
    %330 = vector.shape_cast %329 : vector<1x32x32xf32> to vector<32x32xf32>
    %c4_144 = arith.constant 4 : index
    %c0_145 = arith.constant 0 : index
    %c0_146 = arith.constant 0 : index
    %331 = vector.load %arg13[%c4_144, %c0_145, %c0_146] : memref<10x32x16xf32, #tpu.memory_space<vmem>>, vector<1x32x16xf32>
    %332 = vector.shape_cast %331 : vector<1x32x16xf32> to vector<32x16xf32>
    %cst_147 = arith.constant dense<0.000000e+00> : vector<32x16xf32>
    %333 = tpu.matmul %330, %332, %cst_147 {dimension_numbers = #tpu.dot_dimension_numbers<[1], [0], [0], [1], [0, 0, 1, 1], [], []>} : vector<32x32xf32>, vector<32x16xf32>, vector<32x16xf32> -> vector<32x16xf32>
    %334 = arith.addf %328, %333 : vector<32x16xf32>
    %335 = vector.extract_strided_slice %9 {offsets = [2, 0, 0], sizes = [1, 32, 32], strides = [1, 1, 1]} : vector<3x32x32xf32> to vector<1x32x32xf32>
    %336 = vector.shape_cast %335 : vector<1x32x32xf32> to vector<32x32xf32>
    %c5_148 = arith.constant 5 : index
    %c0_149 = arith.constant 0 : index
    %c0_150 = arith.constant 0 : index
    %337 = vector.load %arg13[%c5_148, %c0_149, %c0_150] : memref<10x32x16xf32, #tpu.memory_space<vmem>>, vector<1x32x16xf32>
    %338 = vector.shape_cast %337 : vector<1x32x16xf32> to vector<32x16xf32>
    %cst_151 = arith.constant dense<0.000000e+00> : vector<32x16xf32>
    %339 = tpu.matmul %336, %338, %cst_151 {dimension_numbers = #tpu.dot_dimension_numbers<[1], [0], [0], [1], [0, 0, 1, 1], [], []>} : vector<32x32xf32>, vector<32x16xf32>, vector<32x16xf32> -> vector<32x16xf32>
    %340 = arith.addf %334, %339 : vector<32x16xf32>
    %341 = vector.broadcast %10 : vector<32x1xf32> to vector<32x16xf32>
    %342 = arith.addf %340, %341 : vector<32x16xf32>
    %343 = vector.broadcast %11 : vector<32x1xf32> to vector<32x16xf32>
    %344 = arith.mulf %342, %343 : vector<32x16xf32>
    %345 = vector.broadcast %12 : vector<32x1xf32> to vector<32x16xf32>
    %346 = arith.addf %344, %345 : vector<32x16xf32>
    %347 = vector.extract_strided_slice %1 {offsets = [0, 48], sizes = [32, 16], strides = [1, 1]} : vector<32x128xf32> to vector<32x16xf32>
    %348 = arith.addf %346, %347 : vector<32x16xf32>
    %cst_152 = arith.constant 0.000000e+00 : f32
    %349 = vector.broadcast %cst_152 : f32 to vector<32x16xf32>
    %350 = arith.maximumf %348, %349 : vector<32x16xf32>
    %c0_153 = arith.constant 0 : index
    %c3_154 = arith.constant 3 : index
    %c0_155 = arith.constant 0 : index
    %c0_156 = arith.constant 0 : index
    %351 = vector.load %arg12[%c0_153, %c3_154, %c0_155, %c0_156] : memref<1x8x32x16xf32, #tpu.memory_space<vmem>>, vector<1x1x32x16xf32>
    %352 = vector.shape_cast %351 : vector<1x1x32x16xf32> to vector<32x16xf32>
    %353 = vector.shape_cast %350 : vector<32x16xf32> to vector<1x1x32x16xf32>
    tpu.vector_store %arg12[%c0_153, %c3_154, %c0_155, %c0_156], %353 {strides = array<i32>} : memref<1x8x32x16xf32, #tpu.memory_space<vmem>>, vector<1x1x32x16xf32>,
    %cst_157 = arith.constant 0.000000e+00 : f32
    %354 = vector.broadcast %cst_157 : f32 to vector<32x16xf32>
    %355 = vector.extract_strided_slice %9 {offsets = [0, 0, 0], sizes = [1, 32, 32], strides = [1, 1, 1]} : vector<3x32x32xf32> to vector<1x32x32xf32>
    %356 = vector.shape_cast %355 : vector<1x32x32xf32> to vector<32x32xf32>
    %c4_158 = arith.constant 4 : index
    %c0_159 = arith.constant 0 : index
    %c0_160 = arith.constant 0 : index
    %357 = vector.load %arg13[%c4_158, %c0_159, %c0_160] : memref<10x32x16xf32, #tpu.memory_space<vmem>>, vector<1x32x16xf32>
    %358 = vector.shape_cast %357 : vector<1x32x16xf32> to vector<32x16xf32>
    %cst_161 = arith.constant dense<0.000000e+00> : vector<32x16xf32>
    %359 = tpu.matmul %356, %358, %cst_161 {dimension_numbers = #tpu.dot_dimension_numbers<[1], [0], [0], [1], [0, 0, 1, 1], [], []>} : vector<32x32xf32>, vector<32x16xf32>, vector<32x16xf32> -> vector<32x16xf32>
    %360 = arith.addf %354, %359 : vector<32x16xf32>
    %361 = vector.extract_strided_slice %9 {offsets = [1, 0, 0], sizes = [1, 32, 32], strides = [1, 1, 1]} : vector<3x32x32xf32> to vector<1x32x32xf32>
    %362 = vector.shape_cast %361 : vector<1x32x32xf32> to vector<32x32xf32>
    %c5_162 = arith.constant 5 : index
    %c0_163 = arith.constant 0 : index
    %c0_164 = arith.constant 0 : index
    %363 = vector.load %arg13[%c5_162, %c0_163, %c0_164] : memref<10x32x16xf32, #tpu.memory_space<vmem>>, vector<1x32x16xf32>
    %364 = vector.shape_cast %363 : vector<1x32x16xf32> to vector<32x16xf32>
    %cst_165 = arith.constant dense<0.000000e+00> : vector<32x16xf32>
    %365 = tpu.matmul %362, %364, %cst_165 {dimension_numbers = #tpu.dot_dimension_numbers<[1], [0], [0], [1], [0, 0, 1, 1], [], []>} : vector<32x32xf32>, vector<32x16xf32>, vector<32x16xf32> -> vector<32x16xf32>
    %366 = arith.addf %360, %365 : vector<32x16xf32>
    %367 = vector.extract_strided_slice %9 {offsets = [2, 0, 0], sizes = [1, 32, 32], strides = [1, 1, 1]} : vector<3x32x32xf32> to vector<1x32x32xf32>
    %368 = vector.shape_cast %367 : vector<1x32x32xf32> to vector<32x32xf32>
    %c6_166 = arith.constant 6 : index
    %c0_167 = arith.constant 0 : index
    %c0_168 = arith.constant 0 : index
    %369 = vector.load %arg13[%c6_166, %c0_167, %c0_168] : memref<10x32x16xf32, #tpu.memory_space<vmem>>, vector<1x32x16xf32>
    %370 = vector.shape_cast %369 : vector<1x32x16xf32> to vector<32x16xf32>
    %cst_169 = arith.constant dense<0.000000e+00> : vector<32x16xf32>
    %371 = tpu.matmul %368, %370, %cst_169 {dimension_numbers = #tpu.dot_dimension_numbers<[1], [0], [0], [1], [0, 0, 1, 1], [], []>} : vector<32x32xf32>, vector<32x16xf32>, vector<32x16xf32> -> vector<32x16xf32>
    %372 = arith.addf %366, %371 : vector<32x16xf32>
    %373 = vector.broadcast %10 : vector<32x1xf32> to vector<32x16xf32>
    %374 = arith.addf %372, %373 : vector<32x16xf32>
    %375 = vector.broadcast %11 : vector<32x1xf32> to vector<32x16xf32>
    %376 = arith.mulf %374, %375 : vector<32x16xf32>
    %377 = vector.broadcast %12 : vector<32x1xf32> to vector<32x16xf32>
    %378 = arith.addf %376, %377 : vector<32x16xf32>
    %379 = vector.extract_strided_slice %1 {offsets = [0, 64], sizes = [32, 16], strides = [1, 1]} : vector<32x128xf32> to vector<32x16xf32>
    %380 = arith.addf %378, %379 : vector<32x16xf32>
    %cst_170 = arith.constant 0.000000e+00 : f32
    %381 = vector.broadcast %cst_170 : f32 to vector<32x16xf32>
    %382 = arith.maximumf %380, %381 : vector<32x16xf32>
    %c0_171 = arith.constant 0 : index
    %c4_172 = arith.constant 4 : index
    %c0_173 = arith.constant 0 : index
    %c0_174 = arith.constant 0 : index
    %383 = vector.load %arg12[%c0_171, %c4_172, %c0_173, %c0_174] : memref<1x8x32x16xf32, #tpu.memory_space<vmem>>, vector<1x1x32x16xf32>
    %384 = vector.shape_cast %383 : vector<1x1x32x16xf32> to vector<32x16xf32>
    %385 = vector.shape_cast %382 : vector<32x16xf32> to vector<1x1x32x16xf32>
    tpu.vector_store %arg12[%c0_171, %c4_172, %c0_173, %c0_174], %385 {strides = array<i32>} : memref<1x8x32x16xf32, #tpu.memory_space<vmem>>, vector<1x1x32x16xf32>,
    %cst_175 = arith.constant 0.000000e+00 : f32
    %386 = vector.broadcast %cst_175 : f32 to vector<32x16xf32>
    %387 = vector.extract_strided_slice %9 {offsets = [0, 0, 0], sizes = [1, 32, 32], strides = [1, 1, 1]} : vector<3x32x32xf32> to vector<1x32x32xf32>
    %388 = vector.shape_cast %387 : vector<1x32x32xf32> to vector<32x32xf32>
    %c5_176 = arith.constant 5 : index
    %c0_177 = arith.constant 0 : index
    %c0_178 = arith.constant 0 : index
    %389 = vector.load %arg13[%c5_176, %c0_177, %c0_178] : memref<10x32x16xf32, #tpu.memory_space<vmem>>, vector<1x32x16xf32>
    %390 = vector.shape_cast %389 : vector<1x32x16xf32> to vector<32x16xf32>
    %cst_179 = arith.constant dense<0.000000e+00> : vector<32x16xf32>
    %391 = tpu.matmul %388, %390, %cst_179 {dimension_numbers = #tpu.dot_dimension_numbers<[1], [0], [0], [1], [0, 0, 1, 1], [], []>} : vector<32x32xf32>, vector<32x16xf32>, vector<32x16xf32> -> vector<32x16xf32>
    %392 = arith.addf %386, %391 : vector<32x16xf32>
    %393 = vector.extract_strided_slice %9 {offsets = [1, 0, 0], sizes = [1, 32, 32], strides = [1, 1, 1]} : vector<3x32x32xf32> to vector<1x32x32xf32>
    %394 = vector.shape_cast %393 : vector<1x32x32xf32> to vector<32x32xf32>
    %c6_180 = arith.constant 6 : index
    %c0_181 = arith.constant 0 : index
    %c0_182 = arith.constant 0 : index
    %395 = vector.load %arg13[%c6_180, %c0_181, %c0_182] : memref<10x32x16xf32, #tpu.memory_space<vmem>>, vector<1x32x16xf32>
    %396 = vector.shape_cast %395 : vector<1x32x16xf32> to vector<32x16xf32>
    %cst_183 = arith.constant dense<0.000000e+00> : vector<32x16xf32>
    %397 = tpu.matmul %394, %396, %cst_183 {dimension_numbers = #tpu.dot_dimension_numbers<[1], [0], [0], [1], [0, 0, 1, 1], [], []>} : vector<32x32xf32>, vector<32x16xf32>, vector<32x16xf32> -> vector<32x16xf32>
    %398 = arith.addf %392, %397 : vector<32x16xf32>
    %399 = vector.extract_strided_slice %9 {offsets = [2, 0, 0], sizes = [1, 32, 32], strides = [1, 1, 1]} : vector<3x32x32xf32> to vector<1x32x32xf32>
    %400 = vector.shape_cast %399 : vector<1x32x32xf32> to vector<32x32xf32>
    %c7_184 = arith.constant 7 : index
    %c0_185 = arith.constant 0 : index
    %c0_186 = arith.constant 0 : index
    %401 = vector.load %arg13[%c7_184, %c0_185, %c0_186] : memref<10x32x16xf32, #tpu.memory_space<vmem>>, vector<1x32x16xf32>
    %402 = vector.shape_cast %401 : vector<1x32x16xf32> to vector<32x16xf32>
    %cst_187 = arith.constant dense<0.000000e+00> : vector<32x16xf32>
    %403 = tpu.matmul %400, %402, %cst_187 {dimension_numbers = #tpu.dot_dimension_numbers<[1], [0], [0], [1], [0, 0, 1, 1], [], []>} : vector<32x32xf32>, vector<32x16xf32>, vector<32x16xf32> -> vector<32x16xf32>
    %404 = arith.addf %398, %403 : vector<32x16xf32>
    %405 = vector.broadcast %10 : vector<32x1xf32> to vector<32x16xf32>
    %406 = arith.addf %404, %405 : vector<32x16xf32>
    %407 = vector.broadcast %11 : vector<32x1xf32> to vector<32x16xf32>
    %408 = arith.mulf %406, %407 : vector<32x16xf32>
    %409 = vector.broadcast %12 : vector<32x1xf32> to vector<32x16xf32>
    %410 = arith.addf %408, %409 : vector<32x16xf32>
    %411 = vector.extract_strided_slice %1 {offsets = [0, 80], sizes = [32, 16], strides = [1, 1]} : vector<32x128xf32> to vector<32x16xf32>
    %412 = arith.addf %410, %411 : vector<32x16xf32>
    %cst_188 = arith.constant 0.000000e+00 : f32
    %413 = vector.broadcast %cst_188 : f32 to vector<32x16xf32>
    %414 = arith.maximumf %412, %413 : vector<32x16xf32>
    %c0_189 = arith.constant 0 : index
    %c5_190 = arith.constant 5 : index
    %c0_191 = arith.constant 0 : index
    %c0_192 = arith.constant 0 : index
    %415 = vector.load %arg12[%c0_189, %c5_190, %c0_191, %c0_192] : memref<1x8x32x16xf32, #tpu.memory_space<vmem>>, vector<1x1x32x16xf32>
    %416 = vector.shape_cast %415 : vector<1x1x32x16xf32> to vector<32x16xf32>
    %417 = vector.shape_cast %414 : vector<32x16xf32> to vector<1x1x32x16xf32>
    tpu.vector_store %arg12[%c0_189, %c5_190, %c0_191, %c0_192], %417 {strides = array<i32>} : memref<1x8x32x16xf32, #tpu.memory_space<vmem>>, vector<1x1x32x16xf32>,
    %cst_193 = arith.constant 0.000000e+00 : f32
    %418 = vector.broadcast %cst_193 : f32 to vector<32x16xf32>
    %419 = vector.extract_strided_slice %9 {offsets = [0, 0, 0], sizes = [1, 32, 32], strides = [1, 1, 1]} : vector<3x32x32xf32> to vector<1x32x32xf32>
    %420 = vector.shape_cast %419 : vector<1x32x32xf32> to vector<32x32xf32>
    %c6_194 = arith.constant 6 : index
    %c0_195 = arith.constant 0 : index
    %c0_196 = arith.constant 0 : index
    %421 = vector.load %arg13[%c6_194, %c0_195, %c0_196] : memref<10x32x16xf32, #tpu.memory_space<vmem>>, vector<1x32x16xf32>
    %422 = vector.shape_cast %421 : vector<1x32x16xf32> to vector<32x16xf32>
    %cst_197 = arith.constant dense<0.000000e+00> : vector<32x16xf32>
    %423 = tpu.matmul %420, %422, %cst_197 {dimension_numbers = #tpu.dot_dimension_numbers<[1], [0], [0], [1], [0, 0, 1, 1], [], []>} : vector<32x32xf32>, vector<32x16xf32>, vector<32x16xf32> -> vector<32x16xf32>
    %424 = arith.addf %418, %423 : vector<32x16xf32>
    %425 = vector.extract_strided_slice %9 {offsets = [1, 0, 0], sizes = [1, 32, 32], strides = [1, 1, 1]} : vector<3x32x32xf32> to vector<1x32x32xf32>
    %426 = vector.shape_cast %425 : vector<1x32x32xf32> to vector<32x32xf32>
    %c7_198 = arith.constant 7 : index
    %c0_199 = arith.constant 0 : index
    %c0_200 = arith.constant 0 : index
    %427 = vector.load %arg13[%c7_198, %c0_199, %c0_200] : memref<10x32x16xf32, #tpu.memory_space<vmem>>, vector<1x32x16xf32>
    %428 = vector.shape_cast %427 : vector<1x32x16xf32> to vector<32x16xf32>
    %cst_201 = arith.constant dense<0.000000e+00> : vector<32x16xf32>
    %429 = tpu.matmul %426, %428, %cst_201 {dimension_numbers = #tpu.dot_dimension_numbers<[1], [0], [0], [1], [0, 0, 1, 1], [], []>} : vector<32x32xf32>, vector<32x16xf32>, vector<32x16xf32> -> vector<32x16xf32>
    %430 = arith.addf %424, %429 : vector<32x16xf32>
    %431 = vector.extract_strided_slice %9 {offsets = [2, 0, 0], sizes = [1, 32, 32], strides = [1, 1, 1]} : vector<3x32x32xf32> to vector<1x32x32xf32>
    %432 = vector.shape_cast %431 : vector<1x32x32xf32> to vector<32x32xf32>
    %c8_202 = arith.constant 8 : index
    %c0_203 = arith.constant 0 : index
    %c0_204 = arith.constant 0 : index
    %433 = vector.load %arg13[%c8_202, %c0_203, %c0_204] : memref<10x32x16xf32, #tpu.memory_space<vmem>>, vector<1x32x16xf32>
    %434 = vector.shape_cast %433 : vector<1x32x16xf32> to vector<32x16xf32>
    %cst_205 = arith.constant dense<0.000000e+00> : vector<32x16xf32>
    %435 = tpu.matmul %432, %434, %cst_205 {dimension_numbers = #tpu.dot_dimension_numbers<[1], [0], [0], [1], [0, 0, 1, 1], [], []>} : vector<32x32xf32>, vector<32x16xf32>, vector<32x16xf32> -> vector<32x16xf32>
    %436 = arith.addf %430, %435 : vector<32x16xf32>
    %437 = vector.broadcast %10 : vector<32x1xf32> to vector<32x16xf32>
    %438 = arith.addf %436, %437 : vector<32x16xf32>
    %439 = vector.broadcast %11 : vector<32x1xf32> to vector<32x16xf32>
    %440 = arith.mulf %438, %439 : vector<32x16xf32>
    %441 = vector.broadcast %12 : vector<32x1xf32> to vector<32x16xf32>
    %442 = arith.addf %440, %441 : vector<32x16xf32>
    %443 = vector.extract_strided_slice %1 {offsets = [0, 96], sizes = [32, 16], strides = [1, 1]} : vector<32x128xf32> to vector<32x16xf32>
    %444 = arith.addf %442, %443 : vector<32x16xf32>
    %cst_206 = arith.constant 0.000000e+00 : f32
    %445 = vector.broadcast %cst_206 : f32 to vector<32x16xf32>
    %446 = arith.maximumf %444, %445 : vector<32x16xf32>
    %c0_207 = arith.constant 0 : index
    %c6_208 = arith.constant 6 : index
    %c0_209 = arith.constant 0 : index
    %c0_210 = arith.constant 0 : index
    %447 = vector.load %arg12[%c0_207, %c6_208, %c0_209, %c0_210] : memref<1x8x32x16xf32, #tpu.memory_space<vmem>>, vector<1x1x32x16xf32>
    %448 = vector.shape_cast %447 : vector<1x1x32x16xf32> to vector<32x16xf32>
    %449 = vector.shape_cast %446 : vector<32x16xf32> to vector<1x1x32x16xf32>
    tpu.vector_store %arg12[%c0_207, %c6_208, %c0_209, %c0_210], %449 {strides = array<i32>} : memref<1x8x32x16xf32, #tpu.memory_space<vmem>>, vector<1x1x32x16xf32>,
    %cst_211 = arith.constant 0.000000e+00 : f32
    %450 = vector.broadcast %cst_211 : f32 to vector<32x16xf32>
    %451 = vector.extract_strided_slice %9 {offsets = [0, 0, 0], sizes = [1, 32, 32], strides = [1, 1, 1]} : vector<3x32x32xf32> to vector<1x32x32xf32>
    %452 = vector.shape_cast %451 : vector<1x32x32xf32> to vector<32x32xf32>
    %c7_212 = arith.constant 7 : index
    %c0_213 = arith.constant 0 : index
    %c0_214 = arith.constant 0 : index
    %453 = vector.load %arg13[%c7_212, %c0_213, %c0_214] : memref<10x32x16xf32, #tpu.memory_space<vmem>>, vector<1x32x16xf32>
    %454 = vector.shape_cast %453 : vector<1x32x16xf32> to vector<32x16xf32>
    %cst_215 = arith.constant dense<0.000000e+00> : vector<32x16xf32>
    %455 = tpu.matmul %452, %454, %cst_215 {dimension_numbers = #tpu.dot_dimension_numbers<[1], [0], [0], [1], [0, 0, 1, 1], [], []>} : vector<32x32xf32>, vector<32x16xf32>, vector<32x16xf32> -> vector<32x16xf32>
    %456 = arith.addf %450, %455 : vector<32x16xf32>
    %457 = vector.extract_strided_slice %9 {offsets = [1, 0, 0], sizes = [1, 32, 32], strides = [1, 1, 1]} : vector<3x32x32xf32> to vector<1x32x32xf32>
    %458 = vector.shape_cast %457 : vector<1x32x32xf32> to vector<32x32xf32>
    %c8_216 = arith.constant 8 : index
    %c0_217 = arith.constant 0 : index
    %c0_218 = arith.constant 0 : index
    %459 = vector.load %arg13[%c8_216, %c0_217, %c0_218] : memref<10x32x16xf32, #tpu.memory_space<vmem>>, vector<1x32x16xf32>
    %460 = vector.shape_cast %459 : vector<1x32x16xf32> to vector<32x16xf32>
    %cst_219 = arith.constant dense<0.000000e+00> : vector<32x16xf32>
    %461 = tpu.matmul %458, %460, %cst_219 {dimension_numbers = #tpu.dot_dimension_numbers<[1], [0], [0], [1], [0, 0, 1, 1], [], []>} : vector<32x32xf32>, vector<32x16xf32>, vector<32x16xf32> -> vector<32x16xf32>
    %462 = arith.addf %456, %461 : vector<32x16xf32>
    %463 = vector.extract_strided_slice %9 {offsets = [2, 0, 0], sizes = [1, 32, 32], strides = [1, 1, 1]} : vector<3x32x32xf32> to vector<1x32x32xf32>
    %464 = vector.shape_cast %463 : vector<1x32x32xf32> to vector<32x32xf32>
    %c9 = arith.constant 9 : index
    %c0_220 = arith.constant 0 : index
    %c0_221 = arith.constant 0 : index
    %465 = vector.load %arg13[%c9, %c0_220, %c0_221] : memref<10x32x16xf32, #tpu.memory_space<vmem>>, vector<1x32x16xf32>
    %466 = vector.shape_cast %465 : vector<1x32x16xf32> to vector<32x16xf32>
    %cst_222 = arith.constant dense<0.000000e+00> : vector<32x16xf32>
    %467 = tpu.matmul %464, %466, %cst_222 {dimension_numbers = #tpu.dot_dimension_numbers<[1], [0], [0], [1], [0, 0, 1, 1], [], []>} : vector<32x32xf32>, vector<32x16xf32>, vector<32x16xf32> -> vector<32x16xf32>
    %468 = arith.addf %462, %467 : vector<32x16xf32>
    %469 = vector.broadcast %10 : vector<32x1xf32> to vector<32x16xf32>
    %470 = arith.addf %468, %469 : vector<32x16xf32>
    %471 = vector.broadcast %11 : vector<32x1xf32> to vector<32x16xf32>
    %472 = arith.mulf %470, %471 : vector<32x16xf32>
    %473 = vector.broadcast %12 : vector<32x1xf32> to vector<32x16xf32>
    %474 = arith.addf %472, %473 : vector<32x16xf32>
    %475 = vector.extract_strided_slice %1 {offsets = [0, 112], sizes = [32, 16], strides = [1, 1]} : vector<32x128xf32> to vector<32x16xf32>
    %476 = arith.addf %474, %475 : vector<32x16xf32>
    %cst_223 = arith.constant 0.000000e+00 : f32
    %477 = vector.broadcast %cst_223 : f32 to vector<32x16xf32>
    %478 = arith.maximumf %476, %477 : vector<32x16xf32>
    %c0_224 = arith.constant 0 : index
    %c7_225 = arith.constant 7 : index
    %c0_226 = arith.constant 0 : index
    %c0_227 = arith.constant 0 : index
    %479 = vector.load %arg12[%c0_224, %c7_225, %c0_226, %c0_227] : memref<1x8x32x16xf32, #tpu.memory_space<vmem>>, vector<1x1x32x16xf32>
    %480 = vector.shape_cast %479 : vector<1x1x32x16xf32> to vector<32x16xf32>
    %481 = vector.shape_cast %478 : vector<32x16xf32> to vector<1x1x32x16xf32>
    tpu.vector_store %arg12[%c0_224, %c7_225, %c0_226, %c0_227], %481 {strides = array<i32>} : memref<1x8x32x16xf32, #tpu.memory_space<vmem>>, vector<1x1x32x16xf32>,
    return
  }
  func.func @transform_0(%arg0: i32) -> (i32, i32, i32) {
    %c0_i32 = arith.constant 0 : i32
    %c0_i32_0 = arith.constant 0 : i32
    %c0_i32_1 = arith.constant 0 : i32
    return %arg0, %c0_i32, %c0_i32_0 : i32, i32, i32
  }
  func.func @transform_1(%arg0: i32) -> (i32, i32, i32) {
    %c0_i32 = arith.constant 0 : i32
    %c0_i32_0 = arith.constant 0 : i32
    %c0_i32_1 = arith.constant 0 : i32
    %c0_i32_2 = arith.constant 0 : i32
    return %c0_i32, %c0_i32_0, %c0_i32_1 : i32, i32, i32
  }
  func.func @transform_2(%arg0: i32) -> (i32, i32, i32) {
    %c0_i32 = arith.constant 0 : i32
    %c0_i32_0 = arith.constant 0 : i32
    %c0_i32_1 = arith.constant 0 : i32
    %c0_i32_2 = arith.constant 0 : i32
    return %c0_i32, %c0_i32_0, %c0_i32_1 : i32, i32, i32
  }
  func.func @transform_3(%arg0: i32) -> (i32, i32) {
    %c0_i32 = arith.constant 0 : i32
    %c0_i32_0 = arith.constant 0 : i32
    %c0_i32_1 = arith.constant 0 : i32
    return %c0_i32, %c0_i32_0 : i32, i32
  }
  func.func @transform_4(%arg0: i32) -> (i32, i32) {
    %c0_i32 = arith.constant 0 : i32
    %c0_i32_0 = arith.constant 0 : i32
    %c0_i32_1 = arith.constant 0 : i32
    return %c0_i32, %c0_i32_0 : i32, i32
  }
  func.func @transform_5(%arg0: i32) -> (i32, i32) {
    %c0_i32 = arith.constant 0 : i32
    %c0_i32_0 = arith.constant 0 : i32
    %c0_i32_1 = arith.constant 0 : i32
    return %c0_i32, %c0_i32_0 : i32, i32
  }
  func.func @transform_6(%arg0: i32) -> (i32, i32) {
    %c0_i32 = arith.constant 0 : i32
    %c0_i32_0 = arith.constant 0 : i32
    %c0_i32_1 = arith.constant 0 : i32
    return %c0_i32, %c0_i32_0 : i32, i32
  }
  func.func @transform_7(%arg0: i32) -> (i32, i32, i32) {
    %c0_i32 = arith.constant 0 : i32
    %c0_i32_0 = arith.constant 0 : i32
    %c0_i32_1 = arith.constant 0 : i32
    %c0_i32_2 = arith.constant 0 : i32
    return %c0_i32, %c0_i32_0, %c0_i32_1 : i32, i32, i32
  }
  func.func @transform_8(%arg0: i32) -> (i32, i32) {
    %c0_i32 = arith.constant 0 : i32
    %c0_i32_0 = arith.constant 0 : i32
    %c0_i32_1 = arith.constant 0 : i32
    return %c0_i32, %c0_i32_0 : i32, i32
  }
  func.func @transform_9(%arg0: i32) -> (i32, i32) {
    %c0_i32 = arith.constant 0 : i32
    %c0_i32_0 = arith.constant 0 : i32
    %c0_i32_1 = arith.constant 0 : i32
    return %c0_i32, %c0_i32_0 : i32, i32
  }
  func.func @transform_10(%arg0: i32) -> (i32, i32) {
    %c0_i32 = arith.constant 0 : i32
    %c0_i32_0 = arith.constant 0 : i32
    %c0_i32_1 = arith.constant 0 : i32
    return %c0_i32, %c0_i32_0 : i32, i32
  }
  func.func @transform_11(%arg0: i32) -> (i32, i32, i32, i32) {
    %c0_i32 = arith.constant 0 : i32
    %c0_i32_0 = arith.constant 0 : i32
    %c0_i32_1 = arith.constant 0 : i32
    %c0_i32_2 = arith.constant 0 : i32
    return %arg0, %c0_i32, %c0_i32_0, %c0_i32_1 : i32, i32, i32, i32
  }
}

</mosaic_0001>

<llo_original>
// kernel: st_gcn_block_forward.1
$region0: #{st_gcn_block_forward.1}
  #allocation0 [shape = 'u32[]', space=smem, size = 0x4, offset = 0x4, fixed_abs, tag = 'smem constant byte address 0x4 - core index']
  #allocation1 [shape = 'u32[72,128]{1,0:T(1,128)}', space=vmem, size = 0x9000, scoped, tag = 'internal scratch']
  #allocation2 [shape = 'f32[10,32,16]{2,1,0:T(8,128)}', space=vmem, size = 0x28000, scoped, tag = 'scratch operand']
  %s0 = inlined_call_operand.vmem [shape: f32[2,32,128], index: 0, kind: input, shape index: {}]
  %s1 = inlined_call_operand.vmem [shape: f32[3,16,16], index: 1, kind: input, shape index: {}]
  %s2 = inlined_call_operand.vmem [shape: f32[3,16,16], index: 2, kind: input, shape index: {}]
  %s3 = inlined_call_operand.vmem [shape: f32[96,32], index: 3, kind: input, shape index: {}]
  %s4 = inlined_call_operand.vmem [shape: f32[96,1], index: 4, kind: input, shape index: {}]
  %s5 = inlined_call_operand.vmem [shape: f32[32,1], index: 5, kind: input, shape index: {}]
  %s6 = inlined_call_operand.vmem [shape: f32[32,1], index: 6, kind: input, shape index: {}]
  %s7 = inlined_call_operand.vmem [shape: f32[3,32,32], index: 7, kind: input, shape index: {}]
  %s8 = inlined_call_operand.vmem [shape: f32[32,1], index: 8, kind: input, shape index: {}]
  %s9 = inlined_call_operand.vmem [shape: f32[32,1], index: 9, kind: input, shape index: {}]
  %s10 = inlined_call_operand.vmem [shape: f32[32,1], index: 10, kind: input, shape index: {}]
  %s11 = inlined_call_operand.vmem [shape: f32[2,8,32,16], index: 11, kind: output, shape index: {}]
  %s12 = sld [smem:[#allocation0]]
  $region77: #{st_gcn_block_forward.1} parent=0
    _
  %s14 = ssub.s32 1, %s12
  %s15 = scalar_select 0, %s14, %s12
  loop: start=0, step=1, limit=4
  $region2: #{st_gcn_block_forward.1} parent=0 // loop_pre_header
    _
  $region3: #{st_gcn_block_forward.1} parent=0 // loop_header
    %s17 = sphi 0, %s21
    %p18 = scmp.ge.s32.totalorder %s17, 4
    %s27 = sphi 0, %s29
    %s30 = sphi 0, %s27
    %s31 = sphi 0, %s30
    %s47 = sphi 0, %s31
    %s51 = sphi 0, %s51
    %s53 = sphi 0, %s51
    %s54 = sphi 0, %s53
    %s68 = sphi 0, %s54
    %s72 = sphi 0, %s72
    %s74 = sphi 0, %s72
    %s75 = sphi 0, %s74
    %s89 = sphi 0, %s75
    %s93 = sphi 0, %s93
    %s95 = sphi 0, %s93
    %s96 = sphi 0, %s95
    %s110 = sphi 0, %s96
    %s114 = sphi 0, %s114
    %s116 = sphi 0, %s114
    %s117 = sphi 0, %s116
    %s131 = sphi 0, %s117
    %s135 = sphi 0, %s135
    %s137 = sphi 0, %s135
    %s138 = sphi 0, %s137
    %s152 = sphi 0, %s138
    %s156 = sphi 0, %s156
    %s158 = sphi 0, %s156
    %s159 = sphi 0, %s158
    %s173 = sphi 0, %s159
    %s177 = sphi 0, %s177
    %s179 = sphi 0, %s177
    %s180 = sphi 0, %s179
    %s194 = sphi 0, %s180
    %s198 = sphi 0, %s198
    %s200 = sphi 0, %s198
    %s201 = sphi 0, %s200
    %s215 = sphi 0, %s201
    %s219 = sphi 0, %s219
    %s221 = sphi 0, %s219
    %s222 = sphi 0, %s221
    %s236 = sphi 0, %s222
    %s240 = sphi 0, %s240
    %s242 = sphi 0, %s240
    %s243 = sphi 0, %s242
    %s257 = sphi 0, %s243
    %s263 = sphi 0, %s265
    %s266 = sphi 0, %s263
    %s267 = sphi 0, %s266
    %s283 = sphi 0, %s267
  $region4: #{st_gcn_block_forward.1} parent=0 // loop_header_branch
    %20 = sbr.rel (%p18) target = $region8
  $region5: #{st_gcn_block_forward.1} parent=0 // loop_body
    %s22 = ssub.s32 %s17, 1
    %s23 = ssub.s32 %s17, 2
    %s24 = sadd.s32 %s17, 1
    %s25 = ssub.s32 %s17, %s24
    %p26 = scmp.eq.s32.totalorder %s25, 0
    %s28 = sadd.s32 %s27, 1
    %s29 = scalar_select %p26, %s27, %s28
    %p32 = pneg %p26
    %p33 = scmp.eq.s32.totalorder %s17, 1
    %p34 = por %p32, %p33
    %p35 = scmp.ne.s32.totalorder %s27, %s30
    %p36 = scmp.eq.s32.totalorder %s17, 0
    %p37 = por %p35, %p36
    %p38 = scmp.ne.s32.totalorder %s27, %s30
    %p39 = scmp.eq.s32.totalorder %s22, 1
    %p40 = por %p38, %p39
    %p41 = scmp.ne.s32.totalorder %s30, %s31
    %p42 = scmp.eq.s32.totalorder %s22, 0
    %p43 = por %p41, %p42
    %p44 = scmp.ne.s32.totalorder %s30, %s31
    %p45 = scmp.eq.s32.totalorder %s23, 1
    %p46 = por %p44, %p45
    %p48 = scmp.ne.s32.totalorder %s31, %s47
    %p49 = scmp.eq.s32.totalorder %s23, 0
    %p50 = por %p48, %p49
    %s52 = sadd.s32 %s51, 1
    %p55 = scmp.eq.s32.totalorder %s17, 1
    %p56 = scmp.ne.s32.totalorder %s51, %s53
    %p57 = scmp.eq.s32.totalorder %s17, 0
    %p58 = por %p56, %p57
    %p59 = scmp.ne.s32.totalorder %s51, %s53
    %p60 = scmp.eq.s32.totalorder %s22, 1
    %p61 = por %p59, %p60
    %p62 = scmp.ne.s32.totalorder %s53, %s54
    %p63 = scmp.eq.s32.totalorder %s22, 0
    %p64 = por %p62, %p63
    %p65 = scmp.ne.s32.totalorder %s53, %s54
    %p66 = scmp.eq.s32.totalorder %s23, 1
    %p67 = por %p65, %p66
    %p69 = scmp.ne.s32.totalorder %s54, %s68
    %p70 = scmp.eq.s32.totalorder %s23, 0
    %p71 = por %p69, %p70
    %s73 = sadd.s32 %s72, 1
    %p76 = scmp.eq.s32.totalorder %s17, 1
    %p77 = scmp.ne.s32.totalorder %s72, %s74
    %p78 = scmp.eq.s32.totalorder %s17, 0
    %p79 = por %p77, %p78
    %p80 = scmp.ne.s32.totalorder %s72, %s74
    %p81 = scmp.eq.s32.totalorder %s22, 1
    %p82 = por %p80, %p81
    %p83 = scmp.ne.s32.totalorder %s74, %s75
    %p84 = scmp.eq.s32.totalorder %s22, 0
    %p85 = por %p83, %p84
    %p86 = scmp.ne.s32.totalorder %s74, %s75
    %p87 = scmp.eq.s32.totalorder %s23, 1
    %p88 = por %p86, %p87
    %p90 = scmp.ne.s32.totalorder %s75, %s89
    %p91 = scmp.eq.s32.totalorder %s23, 0
    %p92 = por %p90, %p91
    %s94 = sadd.s32 %s93, 1
    %p97 = scmp.eq.s32.totalorder %s17, 1
    %p98 = scmp.ne.s32.totalorder %s93, %s95
    %p99 = scmp.eq.s32.totalorder %s17, 0
    %p100 = por %p98, %p99
    %p101 = scmp.ne.s32.totalorder %s93, %s95
    %p102 = scmp.eq.s32.totalorder %s22, 1
    %p103 = por %p101, %p102
    %p104 = scmp.ne.s32.totalorder %s95, %s96
    %p105 = scmp.eq.s32.totalorder %s22, 0
    %p106 = por %p104, %p105
    %p107 = scmp.ne.s32.totalorder %s95, %s96
    %p108 = scmp.eq.s32.totalorder %s23, 1
    %p109 = por %p107, %p108
    %p111 = scmp.ne.s32.totalorder %s96, %s110
    %p112 = scmp.eq.s32.totalorder %s23, 0
    %p113 = por %p111, %p112
    %s115 = sadd.s32 %s114, 1
    %p118 = scmp.eq.s32.totalorder %s17, 1
    %p119 = scmp.ne.s32.totalorder %s114, %s116
    %p120 = scmp.eq.s32.totalorder %s17, 0
    %p121 = por %p119, %p120
    %p122 = scmp.ne.s32.totalorder %s114, %s116
    %p123 = scmp.eq.s32.totalorder %s22, 1
    %p124 = por %p122, %p123
    %p125 = scmp.ne.s32.totalorder %s116, %s117
    %p126 = scmp.eq.s32.totalorder %s22, 0
    %p127 = por %p125, %p126
    %p128 = scmp.ne.s32.totalorder %s116, %s117
    %p129 = scmp.eq.s32.totalorder %s23, 1
    %p130 = por %p128, %p129
    %p132 = scmp.ne.s32.totalorder %s117, %s131
    %p133 = scmp.eq.s32.totalorder %s23, 0
    %p134 = por %p132, %p133
    %s136 = sadd.s32 %s135, 1
    %p139 = scmp.eq.s32.totalorder %s17, 1
    %p140 = scmp.ne.s32.totalorder %s135, %s137
    %p141 = scmp.eq.s32.totalorder %s17, 0
    %p142 = por %p140, %p141
    %p143 = scmp.ne.s32.totalorder %s135, %s137
    %p144 = scmp.eq.s32.totalorder %s22, 1
    %p145 = por %p143, %p144
    %p146 = scmp.ne.s32.totalorder %s137, %s138
    %p147 = scmp.eq.s32.totalorder %s22, 0
    %p148 = por %p146, %p147
    %p149 = scmp.ne.s32.totalorder %s137, %s138
    %p150 = scmp.eq.s32.totalorder %s23, 1
    %p151 = por %p149, %p150
    %p153 = scmp.ne.s32.totalorder %s138, %s152
    %p154 = scmp.eq.s32.totalorder %s23, 0
    %p155 = por %p153, %p154
    %s157 = sadd.s32 %s156, 1
    %p160 = scmp.eq.s32.totalorder %s17, 1
    %p161 = scmp.ne.s32.totalorder %s156, %s158
    %p162 = scmp.eq.s32.totalorder %s17, 0
    %p163 = por %p161, %p162
    %p164 = scmp.ne.s32.totalorder %s156, %s158
    %p165 = scmp.eq.s32.totalorder %s22, 1
    %p166 = por %p164, %p165
    %p167 = scmp.ne.s32.totalorder %s158, %s159
    %p168 = scmp.eq.s32.totalorder %s22, 0
    %p169 = por %p167, %p168
    %p170 = scmp.ne.s32.totalorder %s158, %s159
    %p171 = scmp.eq.s32.totalorder %s23, 1
    %p172 = por %p170, %p171
    %p174 = scmp.ne.s32.totalorder %s159, %s173
    %p175 = scmp.eq.s32.totalorder %s23, 0
    %p176 = por %p174, %p175
    %s178 = sadd.s32 %s177, 1
    %p181 = scmp.eq.s32.totalorder %s17, 1
    %p182 = scmp.ne.s32.totalorder %s177, %s179
    %p183 = scmp.eq.s32.totalorder %s17, 0
    %p184 = por %p182, %p183
    %p185 = scmp.ne.s32.totalorder %s177, %s179
    %p186 = scmp.eq.s32.totalorder %s22, 1
    %p187 = por %p185, %p186
    %p188 = scmp.ne.s32.totalorder %s179, %s180
    %p189 = scmp.eq.s32.totalorder %s22, 0
    %p190 = por %p188, %p189
    %p191 = scmp.ne.s32.totalorder %s179, %s180
    %p192 = scmp.eq.s32.totalorder %s23, 1
    %p193 = por %p191, %p192
    %p195 = scmp.ne.s32.totalorder %s180, %s194
    %p196 = scmp.eq.s32.totalorder %s23, 0
    %p197 = por %p195, %p196
    %s199 = sadd.s32 %s198, 1
    %p202 = scmp.eq.s32.totalorder %s17, 1
    %p203 = scmp.ne.s32.totalorder %s198, %s200
    %p204 = scmp.eq.s32.totalorder %s17, 0
    %p205 = por %p203, %p204
    %p206 = scmp.ne.s32.totalorder %s198, %s200
    %p207 = scmp.eq.s32.totalorder %s22, 1
    %p208 = por %p206, %p207
    %p209 = scmp.ne.s32.totalorder %s200, %s201
    %p210 = scmp.eq.s32.totalorder %s22, 0
    %p211 = por %p209, %p210
    %p212 = scmp.ne.s32.totalorder %s200, %s201
    %p213 = scmp.eq.s32.totalorder %s23, 1
    %p214 = por %p212, %p213
    %p216 = scmp.ne.s32.totalorder %s201, %s215
    %p217 = scmp.eq.s32.totalorder %s23, 0
    %p218 = por %p216, %p217
    %s220 = sadd.s32 %s219, 1
    %p223 = scmp.eq.s32.totalorder %s17, 1
    %p224 = scmp.ne.s32.totalorder %s219, %s221
    %p225 = scmp.eq.s32.totalorder %s17, 0
    %p226 = por %p224, %p225
    %p227 = scmp.ne.s32.totalorder %s219, %s221
    %p228 = scmp.eq.s32.totalorder %s22, 1
    %p229 = por %p227, %p228
    %p230 = scmp.ne.s32.totalorder %s221, %s222
    %p231 = scmp.eq.s32.totalorder %s22, 0
    %p232 = por %p230, %p231
    %p233 = scmp.ne.s32.totalorder %s221, %s222
    %p234 = scmp.eq.s32.totalorder %s23, 1
    %p235 = por %p233, %p234
    %p237 = scmp.ne.s32.totalorder %s222, %s236
    %p238 = scmp.eq.s32.totalorder %s23, 0
    %p239 = por %p237, %p238
    %s241 = sadd.s32 %s240, 1
    %p244 = scmp.eq.s32.totalorder %s17, 1
    %p245 = scmp.ne.s32.totalorder %s240, %s242
    %p246 = scmp.eq.s32.totalorder %s17, 0
    %p247 = por %p245, %p246
    %p248 = scmp.ne.s32.totalorder %s240, %s242
    %p249 = scmp.eq.s32.totalorder %s22, 1
    %p250 = por %p248, %p249
    %p251 = scmp.ne.s32.totalorder %s242, %s243
    %p252 = scmp.eq.s32.totalorder %s22, 0
    %p253 = por %p251, %p252
    %p254 = scmp.ne.s32.totalorder %s242, %s243
    %p255 = scmp.eq.s32.totalorder %s23, 1
    %p256 = por %p254, %p255
    %p258 = scmp.ne.s32.totalorder %s243, %s257
    %p259 = scmp.eq.s32.totalorder %s23, 0
    %p260 = por %p258, %p259
    %s261 = ssub.s32 %s17, %s24
    %p262 = scmp.eq.s32.totalorder %s261, 0
    %s264 = sadd.s32 %s263, 1
    %s265 = scalar_select %p262, %s263, %s264
    %p268 = pneg %p262
    %p269 = scmp.eq.s32.totalorder %s17, 1
    %p270 = por %p268, %p269
    %p271 = scmp.ne.s32.totalorder %s263, %s266
    %p272 = scmp.eq.s32.totalorder %s17, 0
    %p273 = por %p271, %p272
    %p274 = scmp.ne.s32.totalorder %s263, %s266
    %p275 = scmp.eq.s32.totalorder %s22, 1
    %p276 = por %p274, %p275
    %p277 = scmp.ne.s32.totalorder %s266, %s267
    %p278 = scmp.eq.s32.totalorder %s22, 0
    %p279 = por %p277, %p278
    %p280 = scmp.ne.s32.totalorder %s266, %s267
    %p281 = scmp.eq.s32.totalorder %s23, 1
    %p282 = por %p280, %p281
    %p284 = scmp.ne.s32.totalorder %s267, %s283
    %p285 = scmp.eq.s32.totalorder %s23, 0
    %p286 = por %p284, %p285
    %p287 = scmp.le.s32.totalorder 1, %s17
    %p288 = scmp.lt.s32.totalorder %s17, 3
    %p289 = pnand %p287, %p288
    %p290 = pneg %p289
    // Predicated region
    $region9: #{st_gcn_block_forward.1} parent=5 // pred_check
      _
    $region10: #{st_gcn_block_forward.1} parent=5 // pred_check_branch
      %292 = sbr.rel (%p289) target = $region12
    $region11: #{st_gcn_block_forward.1} parent=5 // pred_region
      %s293 = ssub.s32 %s17, 1
      // Predicated region
      $region13: #{st_gcn_block_forward.1} parent=11 // pred_check
        %p294 = pneg %p64
      $region14: #{st_gcn_block_forward.1} parent=11 // pred_check_branch
        %296 = sbr.rel (%p294) target = $region16
      $region15: #{st_gcn_block_forward.1} parent=11 // pred_region
        _
      $region16: #{st_gcn_block_forward.1} parent=11 // pred_fallthru
        _
      // Predicated region
      $region17: #{st_gcn_block_forward.1} parent=11 // pred_check
        %p297 = pneg %p85
      $region18: #{st_gcn_block_forward.1} parent=11 // pred_check_branch
        %299 = sbr.rel (%p297) target = $region20
      $region19: #{st_gcn_block_forward.1} parent=11 // pred_region
        _
      $region20: #{st_gcn_block_forward.1} parent=11 // pred_fallthru
        _
      // Predicated region
      $region21: #{st_gcn_block_forward.1} parent=11 // pred_check
        %p300 = pneg %p106
      $region22: #{st_gcn_block_forward.1} parent=11 // pred_check_branch
        %302 = sbr.rel (%p300) target = $region24
      $region23: #{st_gcn_block_forward.1} parent=11 // pred_region
        _
      $region24: #{st_gcn_block_forward.1} parent=11 // pred_fallthru
        _
      // Predicated region
      $region25: #{st_gcn_block_forward.1} parent=11 // pred_check
        %p303 = pneg %p127
      $region26: #{st_gcn_block_forward.1} parent=11 // pred_check_branch
        %305 = sbr.rel (%p303) target = $region28
      $region27: #{st_gcn_block_forward.1} parent=11 // pred_region
        _
      $region28: #{st_gcn_block_forward.1} parent=11 // pred_fallthru
        _
      // Predicated region
      $region29: #{st_gcn_block_forward.1} parent=11 // pred_check
        %p306 = pneg %p148
      $region30: #{st_gcn_block_forward.1} parent=11 // pred_check_branch
        %308 = sbr.rel (%p306) target = $region32
      $region31: #{st_gcn_block_forward.1} parent=11 // pred_region
        _
      $region32: #{st_gcn_block_forward.1} parent=11 // pred_fallthru
        _
      // Predicated region
      $region33: #{st_gcn_block_forward.1} parent=11 // pred_check
        %p309 = pneg %p169
      $region34: #{st_gcn_block_forward.1} parent=11 // pred_check_branch
        %311 = sbr.rel (%p309) target = $region36
      $region35: #{st_gcn_block_forward.1} parent=11 // pred_region
        _
      $region36: #{st_gcn_block_forward.1} parent=11 // pred_fallthru
        _
      // Predicated region
      $region37: #{st_gcn_block_forward.1} parent=11 // pred_check
        %p312 = pneg %p190
      $region38: #{st_gcn_block_forward.1} parent=11 // pred_check_branch
        %314 = sbr.rel (%p312) target = $region40
      $region39: #{st_gcn_block_forward.1} parent=11 // pred_region
        _
      $region40: #{st_gcn_block_forward.1} parent=11 // pred_fallthru
        _
      // Predicated region
      $region41: #{st_gcn_block_forward.1} parent=11 // pred_check
        %p315 = pneg %p211
      $region42: #{st_gcn_block_forward.1} parent=11 // pred_check_branch
        %317 = sbr.rel (%p315) target = $region44
      $region43: #{st_gcn_block_forward.1} parent=11 // pred_region
        _
      $region44: #{st_gcn_block_forward.1} parent=11 // pred_fallthru
        _
      // Predicated region
      $region45: #{st_gcn_block_forward.1} parent=11 // pred_check
        %p318 = pneg %p232
      $region46: #{st_gcn_block_forward.1} parent=11 // pred_check_branch
        %320 = sbr.rel (%p318) target = $region48
      $region47: #{st_gcn_block_forward.1} parent=11 // pred_region
        _
      $region48: #{st_gcn_block_forward.1} parent=11 // pred_fallthru
        _
      // Predicated region
      $region49: #{st_gcn_block_forward.1} parent=11 // pred_check
        %p321 = pneg %p253
      $region50: #{st_gcn_block_forward.1} parent=11 // pred_check_branch
        %323 = sbr.rel (%p321) target = $region52
      $region51: #{st_gcn_block_forward.1} parent=11 // pred_region
        _
      $region52: #{st_gcn_block_forward.1} parent=11 // pred_fallthru
        _
    $region12: #{st_gcn_block_forward.1} parent=5 // pred_fallthru
      _
    %p324 = scmp.lt.s32.totalorder %s17, 2
    // Predicated region
    $region53: #{st_gcn_block_forward.1} parent=5 // pred_check
      %p325 = pneg %p324
    $region54: #{st_gcn_block_forward.1} parent=5 // pred_check_branch
      %327 = sbr.rel (%p325) target = $region56
    $region55: #{st_gcn_block_forward.1} parent=5 // pred_region
      // Predicated region
      $region57: #{st_gcn_block_forward.1} parent=55 // pred_check
        %p328 = pneg %p37
      $region58: #{st_gcn_block_forward.1} parent=55 // pred_check_branch
        %330 = sbr.rel (%p328) target = $region60
      $region59: #{st_gcn_block_forward.1} parent=55 // pred_region
        %p331 = scmp.lt.s32.totalorder %s17, 1
        %s332 = scalar_select %p331, %s17, 1
        %s333 = smul.addr %s332, 4
        %s334 = smul.addr %s333, 8
        %s335 = scalar_lea.vmem %s0, %s334
      $region60: #{st_gcn_block_forward.1} parent=55 // pred_fallthru
        _
    $region56: #{st_gcn_block_forward.1} parent=5 // pred_fallthru
      _
    %p336 = scmp.le.s32.totalorder 1, %s17
    %p337 = scmp.lt.s32.totalorder %s17, 3
    %p338 = pnand %p336, %p337
    %p339 = pneg %p338
    // Predicated region
    $region61: #{st_gcn_block_forward.1} parent=5 // pred_check
      _
    $region62: #{st_gcn_block_forward.1} parent=5 // pred_check_branch
      %341 = sbr.rel (%p338) target = $region64
    $region63: #{st_gcn_block_forward.1} parent=5 // pred_region
      %s342 = ssub.s32 %s17, 1
      %p343 = scmp.lt.s32.totalorder %s22, 1
      %s344 = scalar_select %p343, %s22, 1
      %s345 = smul.addr %s344, 4
      %s346 = smul.addr %s345, 8
      %s347 = scalar_lea.vmem %s0, %s346
      %p348 = pneg %p43
      %p349 = pneg %p40
      %p350 = pneg %p64
      %p351 = pneg %p61
      %p352 = pneg %p85
      %p353 = pneg %p82
      %p354 = pneg %p106
      %p355 = pneg %p103
      %p356 = pneg %p127
      %p357 = pneg %p124
      %p358 = pneg %p148
      %p359 = pneg %p145
      %p360 = pneg %p169
      %p361 = pneg %p166
      %p362 = pneg %p190
      %p363 = pneg %p187
      %p364 = pneg %p211
      %p365 = pneg %p208
      %p366 = pneg %p232
      %p367 = pneg %p229
      %p368 = pneg %p253
      %p369 = pneg %p250
      %p370 = pneg %p279
      %p371 = pneg %p276
      %p372 = scmp.lt.s32.totalorder %s22, 1
      %s373 = scalar_select %p372, %s22, 1
      %s374 = smul.addr %s373, 32
      %s375 = smul.addr %s374, 8
      %s376 = scalar_lea.vmem %s11, %s375
      %p377 = scmp.lt.s32.totalorder %s22, 1
      %s378 = scalar_select %p377, %s22, 1
      %s379 = smul.addr %s378, 4
      %s380 = smul.addr %s379, 8
      %s381 = scalar_lea.vmem %s0, %s380
      %p382 = scmp.lt.s32.totalorder %s22, 1
      %s383 = scalar_select %p382, %s22, 1
      %s384 = smul.addr %s383, 32
      %s385 = smul.addr %s384, 8
      %s386 = scalar_lea.vmem %s11, %s385
      %v387 = vld [vmem:[%s381] sm:$0xff]
      %v388 = vld [vmem:[%s381 + $0x8] sm:$0xff]
      %v389 = vld [vmem:[%s381 + $0x10] sm:$0xff]
      %v390 = vld [vmem:[%s381 + $0x18] sm:$0xff]
      %v391 = vld [vmem:[%s2] sm:$0xff]
      %v392 = vld [vmem:[%s2 + $0x8] sm:$0xff]
      %v393 = vld [vmem:[%s2 + $0x10] sm:$0xff]
      %v394 = vld [vmem:[%s2 + $0x18] sm:$0xff]
      %v395 = vld [vmem:[%s2 + $0x20] sm:$0xff]
      %v396 = vld [vmem:[%s2 + $0x28] sm:$0xff]
      %v397 = vld [vmem:[%s1] sm:$0xff]
      %v398 = vld [vmem:[%s1 + $0x8] sm:$0xff]
      %v399 = vld [vmem:[%s1 + $0x10] sm:$0xff]
      %v400 = vld [vmem:[%s1 + $0x18] sm:$0xff]
      %v401 = vld [vmem:[%s1 + $0x20] sm:$0xff]
      %v402 = vld [vmem:[%s1 + $0x28] sm:$0xff]
      %v403 = vmul.f32 %v391, %v397
      %v404 = vmul.f32 %v392, %v398
      %v405 = vmul.f32 %v393, %v399
      %v406 = vmul.f32 %v394, %v400
      %v407 = vmul.f32 %v395, %v401
      %v408 = vmul.f32 %v396, %v402
      %v409 = vld [vmem:[%s3] sm:$0xff]
      %v410 = vld [vmem:[%s3 + $0x8] sm:$0xff]
      %v411 = vld [vmem:[%s3 + $0x10] sm:$0xff]
      %v412 = vld [vmem:[%s3 + $0x18] sm:$0xff]
      %v413 = vld [vmem:[%s3 + $0x20] sm:$0xff]
      %v414 = vld [vmem:[%s3 + $0x28] sm:$0xff]
      %v415 = vld [vmem:[%s3 + $0x30] sm:$0xff]
      %v416 = vld [vmem:[%s3 + $0x38] sm:$0xff]
      %v417 = vld [vmem:[%s3 + $0x40] sm:$0xff]
      %v418 = vld [vmem:[%s3 + $0x48] sm:$0xff]
      %v419 = vld [vmem:[%s3 + $0x50] sm:$0xff]
      %v420 = vld [vmem:[%s3 + $0x58] sm:$0xff]
      %v421 = vld [vmem:[%s4] sm:$0xff]
      %v422 = vld [vmem:[%s4 + $0x8] sm:$0xff]
      %v423 = vld [vmem:[%s4 + $0x10] sm:$0xff]
      %v424 = vld [vmem:[%s4 + $0x18] sm:$0xff]
      %v425 = vld [vmem:[%s4 + $0x20] sm:$0xff]
      %v426 = vld [vmem:[%s4 + $0x28] sm:$0xff]
      %v427 = vld [vmem:[%s4 + $0x30] sm:$0xff]
      %v428 = vld [vmem:[%s4 + $0x38] sm:$0xff]
      %v429 = vld [vmem:[%s4 + $0x40] sm:$0xff]
      %v430 = vld [vmem:[%s4 + $0x48] sm:$0xff]
      %v431 = vld [vmem:[%s4 + $0x50] sm:$0xff]
      %v432 = vld [vmem:[%s4 + $0x58] sm:$0xff]
      %v433 = vld [vmem:[%s5] sm:$0xff]
      %v434 = vld [vmem:[%s5 + $0x8] sm:$0xff]
      %v435 = vld [vmem:[%s5 + $0x10] sm:$0xff]
      %v436 = vld [vmem:[%s5 + $0x18] sm:$0xff]
      %v437 = vld [vmem:[%s6] sm:$0xff]
      %v438 = vld [vmem:[%s6 + $0x8] sm:$0xff]
      %v439 = vld [vmem:[%s6 + $0x10] sm:$0xff]
      %v440 = vld [vmem:[%s6 + $0x18] sm:$0xff]
      %v441 = vld [vmem:[%s7] sm:$0xff]
      %v442 = vld [vmem:[%s7 + $0x8] sm:$0xff]
      %v443 = vld [vmem:[%s7 + $0x10] sm:$0xff]
      %v444 = vld [vmem:[%s7 + $0x18] sm:$0xff]
      %v445 = vld [vmem:[%s7 + $0x20] sm:$0xff]
      %v446 = vld [vmem:[%s7 + $0x28] sm:$0xff]
      %v447 = vld [vmem:[%s7 + $0x30] sm:$0xff]
      %v448 = vld [vmem:[%s7 + $0x38] sm:$0xff]
      %v449 = vld [vmem:[%s7 + $0x40] sm:$0xff]
      %v450 = vld [vmem:[%s7 + $0x48] sm:$0xff]
      %v451 = vld [vmem:[%s7 + $0x50] sm:$0xff]
      %v452 = vld [vmem:[%s7 + $0x58] sm:$0xff]
      %v453 = vld [vmem:[%s8] sm:$0xff]
      %v454 = vld [vmem:[%s8 + $0x8] sm:$0xff]
      %v455 = vld [vmem:[%s8 + $0x10] sm:$0xff]
      %v456 = vld [vmem:[%s8 + $0x18] sm:$0xff]
      %v457 = vld [vmem:[%s9] sm:$0xff]
      %v458 = vld [vmem:[%s9 + $0x8] sm:$0xff]
      %v459 = vld [vmem:[%s9 + $0x10] sm:$0xff]
      %v460 = vld [vmem:[%s9 + $0x18] sm:$0xff]
      %v461 = vld [vmem:[%s10] sm:$0xff]
      %v462 = vld [vmem:[%s10 + $0x8] sm:$0xff]
      %v463 = vld [vmem:[%s10 + $0x10] sm:$0xff]
      %v464 = vld [vmem:[%s10 + $0x18] sm:$0xff]
      %466 = vset.pattern.permute.xlu0 0
      %467 = vperm.xlu0 %466, %v421
      %v468 = vpop.permute.xlu0 %467
      %471 = vset.pattern.permute.xlu0 0
      %472 = vperm.xlu0 %471, %v422
      %v473 = vpop.permute.xlu0 %472
      %476 = vset.pattern.permute.xlu0 0
      %477 = vperm.xlu0 %476, %v423
      %v478 = vpop.permute.xlu0 %477
      %481 = vset.pattern.permute.xlu0 0
      %482 = vperm.xlu0 %481, %v424
      %v483 = vpop.permute.xlu0 %482
      %486 = vset.pattern.permute.xlu0 0
      %487 = vperm.xlu0 %486, %v425
      %v488 = vpop.permute.xlu0 %487
      %491 = vset.pattern.permute.xlu0 0
      %492 = vperm.xlu0 %491, %v426
      %v493 = vpop.permute.xlu0 %492
      %496 = vset.pattern.permute.xlu0 0
      %497 = vperm.xlu0 %496, %v427
      %v498 = vpop.permute.xlu0 %497
      %501 = vset.pattern.permute.xlu0 0
      %502 = vperm.xlu0 %501, %v428
      %v503 = vpop.permute.xlu0 %502
      %506 = vset.pattern.permute.xlu0 0
      %507 = vperm.xlu0 %506, %v429
      %v508 = vpop.permute.xlu0 %507
      %511 = vset.pattern.permute.xlu0 0
      %512 = vperm.xlu0 %511, %v430
      %v513 = vpop.permute.xlu0 %512
      %516 = vset.pattern.permute.xlu0 0
      %517 = vperm.xlu0 %516, %v431
      %v518 = vpop.permute.xlu0 %517
      %521 = vset.pattern.permute.xlu0 0
      %522 = vperm.xlu0 %521, %v432
      %v523 = vpop.permute.xlu0 %522
      %vm525 = vcmask 261120
      %v527 = vsel %vm525, %v409, 0
      %v530 = vsel %vm525, %v410, 0
      %v533 = vsel %vm525, %v411, 0
      %v536 = vsel %vm525, %v412, 0
      %v539 = vsel %vm525, %v413, 0
      %v542 = vsel %vm525, %v414, 0
      %v545 = vsel %vm525, %v415, 0
      %v548 = vsel %vm525, %v416, 0
      %v551 = vsel %vm525, %v417, 0
      %v554 = vsel %vm525, %v418, 0
      %v557 = vsel %vm525, %v419, 0
      %v560 = vsel %vm525, %v420, 0
      %562 = vmatpush.msra.mxu0 0.0
      %563 = vmatpush.msra.mxu0 0.0
      %564 = vmatpush.msra.mxu0 0.0
      %565 = vmatpush.msra.mxu0 0.0
      %566 = vmatpush.msra.mxu0 0.0
      %567 = vmatpush.msra.mxu0 0.0
      %568 = vmatpush.msra.mxu0 0.0
      %569 = vmatpush.msra.mxu0 0.0
      %570 = vmatpush.msra.mxu0 0.0
      %571 = vmatpush.msra.mxu0 0.0
      %572 = vmatpush.msra.mxu0 0.0
      %573 = vmatpush.msra.mxu0 0.0
      %574 = vmatpush.msra.mxu0 %v390
      %575 = vmatpush.msra.mxu0 %v389
      %576 = vmatpush.msra.mxu0 %v388
      %577 = vmatpush.msra.mxu0 %v387
      %578 = vmatmul.f32.gmra.mxu0 %v527
      %v579 = vpop.f32.mrf.mxu0
      %v580 = vadd.f32 %v468, %v579
      %581 = vmatmul.f32.gmra.mxu0 %v530
      %v582 = vpop.f32.mrf.mxu0
      %v583 = vadd.f32 %v473, %v582
      %584 = vmatmul.f32.gmra.mxu0 %v533
      %v585 = vpop.f32.mrf.mxu0
      %v586 = vadd.f32 %v478, %v585
      %587 = vmatmul.f32.gmra.mxu0 %v536
      %v588 = vpop.f32.mrf.mxu0
      %v589 = vadd.f32 %v483, %v588
      %590 = vmatmul.f32.gmra.mxu0 %v539
      %v591 = vpop.f32.mrf.mxu0
      %v592 = vadd.f32 %v488, %v591
      %593 = vmatmul.f32.gmra.mxu0 %v542
      %v594 = vpop.f32.mrf.mxu0
      %v595 = vadd.f32 %v493, %v594
      %596 = vmatmul.f32.gmra.mxu0 %v545
      %v597 = vpop.f32.mrf.mxu0
      %v598 = vadd.f32 %v498, %v597
      %599 = vmatmul.f32.gmra.mxu0 %v548
      %v600 = vpop.f32.mrf.mxu0
      %v601 = vadd.f32 %v503, %v600
      %602 = vmatmul.f32.gmra.mxu0 %v551
      %v603 = vpop.f32.mrf.mxu0
      %v604 = vadd.f32 %v508, %v603
      %605 = vmatmul.f32.gmra.mxu0 %v554
      %v606 = vpop.f32.mrf.mxu0
      %v607 = vadd.f32 %v513, %v606
      %608 = vmatmul.f32.gmra.mxu0 %v557
      %v609 = vpop.f32.mrf.mxu0
      %v610 = vadd.f32 %v518, %v609
      %611 = vmatmul.f32.gmra.mxu0 %v560
      %v612 = vpop.f32.mrf.mxu0
      %v613 = vadd.f32 %v523, %v612
      %614 = vdwg.mxu0
      %vm615 = vcmask 130048
      %616 = vst.msk [vmem:[#allocation2] sm:$0xff] %vm615, 0.0
      %617 = vst.msk [vmem:[#allocation2 + $0x8] sm:$0xff] %vm615, 0.0
      %618 = vst.msk [vmem:[#allocation2 + $0x10] sm:$0xff] %vm615, 0.0
      %619 = vst.msk [vmem:[#allocation2 + $0x18] sm:$0xff] %vm615, 0.0
      %620 = vst.msk [vmem:[#allocation2 + $0x20] sm:$0xff] %vm615, 0.0
      %621 = vst.msk [vmem:[#allocation2 + $0x28] sm:$0xff] %vm615, 0.0
      %622 = vst.msk [vmem:[#allocation2 + $0x30] sm:$0xff] %vm615, 0.0
      %623 = vst.msk [vmem:[#allocation2 + $0x38] sm:$0xff] %vm615, 0.0
      %624 = vst.msk [vmem:[#allocation2 + $0x40] sm:$0xff] %vm615, 0.0
      %625 = vst.msk [vmem:[#allocation2 + $0x48] sm:$0xff] %vm615, 0.0
      %626 = vst.msk [vmem:[#allocation2 + $0x50] sm:$0xff] %vm615, 0.0
      %627 = vst.msk [vmem:[#allocation2 + $0x58] sm:$0xff] %vm615, 0.0
      %628 = vst.msk [vmem:[#allocation2 + $0x60] sm:$0xff] %vm615, 0.0
      %629 = vst.msk [vmem:[#allocation2 + $0x68] sm:$0xff] %vm615, 0.0
      %630 = vst.msk [vmem:[#allocation2 + $0x70] sm:$0xff] %vm615, 0.0
      %631 = vst.msk [vmem:[#allocation2 + $0x78] sm:$0xff] %vm615, 0.0
      %632 = vst.msk [vmem:[#allocation2 + $0x80] sm:$0xff] %vm615, 0.0
      %633 = vst.msk [vmem:[#allocation2 + $0x88] sm:$0xff] %vm615, 0.0
      %634 = vst.msk [vmem:[#allocation2 + $0x90] sm:$0xff] %vm615, 0.0
      %635 = vst.msk [vmem:[#allocation2 + $0x98] sm:$0xff] %vm615, 0.0
      %636 = vst.msk [vmem:[#allocation2 + $0xa0] sm:$0xff] %vm615, 0.0
      %637 = vst.msk [vmem:[#allocation2 + $0xa8] sm:$0xff] %vm615, 0.0
      %638 = vst.msk [vmem:[#allocation2 + $0xb0] sm:$0xff] %vm615, 0.0
      %639 = vst.msk [vmem:[#allocation2 + $0xb8] sm:$0xff] %vm615, 0.0
      %640 = vst.msk [vmem:[#allocation2 + $0xc0] sm:$0xff] %vm615, 0.0
      %641 = vst.msk [vmem:[#allocation2 + $0xc8] sm:$0xff] %vm615, 0.0
      %642 = vst.msk [vmem:[#allocation2 + $0xd0] sm:$0xff] %vm615, 0.0
      %643 = vst.msk [vmem:[#allocation2 + $0xd8] sm:$0xff] %vm615, 0.0
      %644 = vst.msk [vmem:[#allocation2 + $0xe0] sm:$0xff] %vm615, 0.0
      %645 = vst.msk [vmem:[#allocation2 + $0xe8] sm:$0xff] %vm615, 0.0
      %646 = vst.msk [vmem:[#allocation2 + $0xf0] sm:$0xff] %vm615, 0.0
      %647 = vst.msk [vmem:[#allocation2 + $0xf8] sm:$0xff] %vm615, 0.0
      %648 = vst.msk [vmem:[#allocation2 + $0x100] sm:$0xff] %vm615, 0.0
      %649 = vst.msk [vmem:[#allocation2 + $0x108] sm:$0xff] %vm615, 0.0
      %650 = vst.msk [vmem:[#allocation2 + $0x110] sm:$0xff] %vm615, 0.0
      %651 = vst.msk [vmem:[#allocation2 + $0x118] sm:$0xff] %vm615, 0.0
      %652 = vst.msk [vmem:[#allocation2 + $0x120] sm:$0xff] %vm615, 0.0
      %653 = vst.msk [vmem:[#allocation2 + $0x128] sm:$0xff] %vm615, 0.0
      %654 = vst.msk [vmem:[#allocation2 + $0x130] sm:$0xff] %vm615, 0.0
      %655 = vst.msk [vmem:[#allocation2 + $0x138] sm:$0xff] %vm615, 0.0
      %v657 = vsel %vm615, %v592, 0
      %v660 = vsel %vm615, %v595, 0
      %v663 = vsel %vm615, %v598, 0
      %v666 = vsel %vm615, %v601, 0
      %668 = vmatpush.msra.mxu0 0.0
      %669 = vmatpush.msra.mxu0 0.0
      %670 = vmatpush.msra.mxu0 0.0
      %671 = vmatpush.msra.mxu0 0.0
      %672 = vmatpush.msra.mxu0 0.0
      %673 = vmatpush.msra.mxu0 0.0
      %674 = vmatpush.msra.mxu0 0.0
      %675 = vmatpush.msra.mxu0 0.0
      %676 = vmatpush.msra.mxu0 0.0
      %677 = vmatpush.msra.mxu0 0.0
      %678 = vmatpush.msra.mxu0 0.0
      %679 = vmatpush.msra.mxu0 0.0
      %680 = vmatpush.msra.mxu0 0.0
      %681 = vmatpush.msra.mxu0 0.0
      %682 = vmatpush.msra.mxu0 %v406
      %683 = vmatpush.msra.mxu0 %v405
      %684 = vmatmul.f32.gmra.mxu0 %v657
      %v685 = vpop.f32.mrf.mxu0
      %v686 = vadd.f32 0.0, %v685
      %687 = vmatmul.f32.gmra.mxu0 %v660
      %v688 = vpop.f32.mrf.mxu0
      %v689 = vadd.f32 0.0, %v688
      %690 = vmatmul.f32.gmra.mxu0 %v663
      %v691 = vpop.f32.mrf.mxu0
      %v692 = vadd.f32 0.0, %v691
      %693 = vmatmul.f32.gmra.mxu0 %v666
      %v694 = vpop.f32.mrf.mxu0
      %v695 = vadd.f32 0.0, %v694
      %696 = vdwg.mxu0
      %v698 = vsel %vm615, %v580, 0
      %v701 = vsel %vm615, %v583, 0
      %v704 = vsel %vm615, %v586, 0
      %v707 = vsel %vm615, %v589, 0
      %709 = vmatpush.msra.mxu0 0.0
      %710 = vmatpush.msra.mxu0 0.0
      %711 = vmatpush.msra.mxu0 0.0
      %712 = vmatpush.msra.mxu0 0.0
      %713 = vmatpush.msra.mxu0 0.0
      %714 = vmatpush.msra.mxu0 0.0
      %715 = vmatpush.msra.mxu0 0.0
      %716 = vmatpush.msra.mxu0 0.0
      %717 = vmatpush.msra.mxu0 0.0
      %718 = vmatpush.msra.mxu0 0.0
      %719 = vmatpush.msra.mxu0 0.0
      %720 = vmatpush.msra.mxu0 0.0
      %721 = vmatpush.msra.mxu0 0.0
      %722 = vmatpush.msra.mxu0 0.0
      %723 = vmatpush.msra.mxu0 %v404
      %724 = vmatpush.msra.mxu0 %v403
      %725 = vmatmul.f32.gmra.mxu0 %v698
      %v726 = vpop.f32.mrf.mxu0
      %v727 = vadd.f32 %v686, %v726
      %728 = vmatmul.f32.gmra.mxu0 %v701
      %v729 = vpop.f32.mrf.mxu0
      %v730 = vadd.f32 %v689, %v729
      %731 = vmatmul.f32.gmra.mxu0 %v704
      %v732 = vpop.f32.mrf.mxu0
      %v733 = vadd.f32 %v692, %v732
      %734 = vmatmul.f32.gmra.mxu0 %v707
      %v735 = vpop.f32.mrf.mxu0
      %v736 = vadd.f32 %v695, %v735
      %737 = vdwg.mxu0
      %v739 = vsel %vm615, %v604, 0
      %v742 = vsel %vm615, %v607, 0
      %v745 = vsel %vm615, %v610, 0
      %v748 = vsel %vm615, %v613, 0
      %750 = vmatpush.msra.mxu0 0.0
      %751 = vmatpush.msra.mxu0 0.0
      %752 = vmatpush.msra.mxu0 0.0
      %753 = vmatpush.msra.mxu0 0.0
      %754 = vmatpush.msra.mxu0 0.0
      %755 = vmatpush.msra.mxu0 0.0
      %756 = vmatpush.msra.mxu0 0.0
      %757 = vmatpush.msra.mxu0 0.0
      %758 = vmatpush.msra.mxu0 0.0
      %759 = vmatpush.msra.mxu0 0.0
      %760 = vmatpush.msra.mxu0 0.0
      %761 = vmatpush.msra.mxu0 0.0
      %762 = vmatpush.msra.mxu0 0.0
      %763 = vmatpush.msra.mxu0 0.0
      %764 = vmatpush.msra.mxu0 %v408
      %765 = vmatpush.msra.mxu0 %v407
      %766 = vmatmul.f32.gmra.mxu0 %v739
      %v767 = vpop.f32.mrf.mxu0
      %v768 = vadd.f32 0.0, %v767
      %769 = vmatmul.f32.gmra.mxu0 %v742
      %v770 = vpop.f32.mrf.mxu0
      %v771 = vadd.f32 0.0, %v770
      %772 = vmatmul.f32.gmra.mxu0 %v745
      %v773 = vpop.f32.mrf.mxu0
      %v774 = vadd.f32 0.0, %v773
      %775 = vmatmul.f32.gmra.mxu0 %v748
      %v776 = vpop.f32.mrf.mxu0
      %v777 = vadd.f32 0.0, %v776
      %778 = vdwg.mxu0
      %v779 = vadd.f32 %v727, %v768
      %v780 = vadd.f32 %v730, %v771
      %v781 = vadd.f32 %v733, %v774
      %v782 = vadd.f32 %v736, %v777
      %784 = vset.pattern.permute.xlu0 0
      %785 = vperm.xlu0 %784, %v433
      %v786 = vpop.permute.xlu0 %785
      %789 = vset.pattern.permute.xlu0 0
      %790 = vperm.xlu0 %789, %v434
      %v791 = vpop.permute.xlu0 %790
      %794 = vset.pattern.permute.xlu0 0
      %795 = vperm.xlu0 %794, %v435
      %v796 = vpop.permute.xlu0 %795
      %799 = vset.pattern.permute.xlu0 0
      %800 = vperm.xlu0 %799, %v436
      %v801 = vpop.permute.xlu0 %800
      %v803 = vmul.f32 %v779, %v786
      %v804 = vmul.f32 %v780, %v791
      %v805 = vmul.f32 %v781, %v796
      %v806 = vmul.f32 %v782, %v801
      %808 = vset.pattern.permute.xlu0 0
      %809 = vperm.xlu0 %808, %v437
      %v810 = vpop.permute.xlu0 %809
      %813 = vset.pattern.permute.xlu0 0
      %814 = vperm.xlu0 %813, %v438
      %v815 = vpop.permute.xlu0 %814
      %818 = vset.pattern.permute.xlu0 0
      %819 = vperm.xlu0 %818, %v439
      %v820 = vpop.permute.xlu0 %819
      %823 = vset.pattern.permute.xlu0 0
      %824 = vperm.xlu0 %823, %v440
      %v825 = vpop.permute.xlu0 %824
      %v827 = vadd.f32 %v803, %v810
      %v828 = vadd.f32 %v804, %v815
      %v829 = vadd.f32 %v805, %v820
      %v830 = vadd.f32 %v806, %v825
      %v831 = vmax.f32 %v827, 0.0
      %v832 = vmax.f32 %v828, 0.0
      %v833 = vmax.f32 %v829, 0.0
      %v834 = vmax.f32 %v830, 0.0
      %s835 = scalar_lea.vmem [#allocation2], 32
      %836 = vst.msk [vmem:[%s835] sm:$0xff] %vm615, %v831
      %837 = vst.msk [vmem:[%s835 + $0x8] sm:$0xff] %vm615, %v832
      %838 = vst.msk [vmem:[%s835 + $0x10] sm:$0xff] %vm615, %v833
      %839 = vst.msk [vmem:[%s835 + $0x18] sm:$0xff] %vm615, %v834
      %840 = vrot.lane.b32.xlu0 %v592, 112
      %v841 = vpop.permute.xlu0 %840
      %842 = vrot.lane.b32.xlu0 %v595, 112
      %v843 = vpop.permute.xlu0 %842
      %844 = vrot.lane.b32.xlu0 %v598, 112
      %v845 = vpop.permute.xlu0 %844
      %846 = vrot.lane.b32.xlu0 %v601, 112
      %v847 = vpop.permute.xlu0 %846
      %v848 = vsel %vm615, %v841, 0
      %v850 = vsel %vm615, %v843, 0
      %v852 = vsel %vm615, %v845, 0
      %v854 = vsel %vm615, %v847, 0
      %856 = vmatpush.msra.mxu0 0.0
      %857 = vmatpush.msra.mxu0 0.0
      %858 = vmatpush.msra.mxu0 0.0
      %859 = vmatpush.msra.mxu0 0.0
      %860 = vmatpush.msra.mxu0 0.0
      %861 = vmatpush.msra.mxu0 0.0
      %862 = vmatpush.msra.mxu0 0.0
      %863 = vmatpush.msra.mxu0 0.0
      %864 = vmatpush.msra.mxu0 0.0
      %865 = vmatpush.msra.mxu0 0.0
      %866 = vmatpush.msra.mxu0 0.0
      %867 = vmatpush.msra.mxu0 0.0
      %868 = vmatpush.msra.mxu0 0.0
      %869 = vmatpush.msra.mxu0 0.0
      %870 = vmatpush.msra.mxu0 %v406
      %871 = vmatpush.msra.mxu0 %v405
      %872 = vmatmul.f32.gmra.mxu0 %v848
      %v873 = vpop.f32.mrf.mxu0
      %v874 = vadd.f32 0.0, %v873
      %875 = vmatmul.f32.gmra.mxu0 %v850
      %v876 = vpop.f32.mrf.mxu0
      %v877 = vadd.f32 0.0, %v876
      %878 = vmatmul.f32.gmra.mxu0 %v852
      %v879 = vpop.f32.mrf.mxu0
      %v880 = vadd.f32 0.0, %v879
      %881 = vmatmul.f32.gmra.mxu0 %v854
      %v882 = vpop.f32.mrf.mxu0
      %v883 = vadd.f32 0.0, %v882
      %884 = vdwg.mxu0
      %885 = vrot.lane.b32.xlu0 %v580, 112
      %v886 = vpop.permute.xlu0 %885
      %887 = vrot.lane.b32.xlu0 %v583, 112
      %v888 = vpop.permute.xlu0 %887
      %889 = vrot.lane.b32.xlu0 %v586, 112
      %v890 = vpop.permute.xlu0 %889
      %891 = vrot.lane.b32.xlu0 %v589, 112
      %v892 = vpop.permute.xlu0 %891
      %v893 = vsel %vm615, %v886, 0
      %v895 = vsel %vm615, %v888, 0
      %v897 = vsel %vm615, %v890, 0
      %v899 = vsel %vm615, %v892, 0
      %901 = vmatpush.msra.mxu0 0.0
      %902 = vmatpush.msra.mxu0 0.0
      %903 = vmatpush.msra.mxu0 0.0
      %904 = vmatpush.msra.mxu0 0.0
      %905 = vmatpush.msra.mxu0 0.0
      %906 = vmatpush.msra.mxu0 0.0
      %907 = vmatpush.msra.mxu0 0.0
      %908 = vmatpush.msra.mxu0 0.0
      %909 = vmatpush.msra.mxu0 0.0
      %910 = vmatpush.msra.mxu0 0.0
      %911 = vmatpush.msra.mxu0 0.0
      %912 = vmatpush.msra.mxu0 0.0
      %913 = vmatpush.msra.mxu0 0.0
      %914 = vmatpush.msra.mxu0 0.0
      %915 = vmatpush.msra.mxu0 %v404
      %916 = vmatpush.msra.mxu0 %v403
      %917 = vmatmul.f32.gmra.mxu0 %v893
      %v918 = vpop.f32.mrf.mxu0
      %v919 = vadd.f32 %v874, %v918
      %920 = vmatmul.f32.gmra.mxu0 %v895
      %v921 = vpop.f32.mrf.mxu0
      %v922 = vadd.f32 %v877, %v921
      %923 = vmatmul.f32.gmra.mxu0 %v897
      %v924 = vpop.f32.mrf.mxu0
      %v925 = vadd.f32 %v880, %v924
      %926 = vmatmul.f32.gmra.mxu0 %v899
      %v927 = vpop.f32.mrf.mxu0
      %v928 = vadd.f32 %v883, %v927
      %929 = vdwg.mxu0
      %930 = vrot.lane.b32.xlu0 %v604, 112
      %v931 = vpop.permute.xlu0 %930
      %932 = vrot.lane.b32.xlu0 %v607, 112
      %v933 = vpop.permute.xlu0 %932
      %934 = vrot.lane.b32.xlu0 %v610, 112
      %v935 = vpop.permute.xlu0 %934
      %936 = vrot.lane.b32.xlu0 %v613, 112
      %v937 = vpop.permute.xlu0 %936
      %v938 = vsel %vm615, %v931, 0
      %v940 = vsel %vm615, %v933, 0
      %v942 = vsel %vm615, %v935, 0
      %v944 = vsel %vm615, %v937, 0
      %946 = vmatpush.msra.mxu0 0.0
      %947 = vmatpush.msra.mxu0 0.0
      %948 = vmatpush.msra.mxu0 0.0
      %949 = vmatpush.msra.mxu0 0.0
      %950 = vmatpush.msra.mxu0 0.0
      %951 = vmatpush.msra.mxu0 0.0
      %952 = vmatpush.msra.mxu0 0.0
      %953 = vmatpush.msra.mxu0 0.0
      %954 = vmatpush.msra.mxu0 0.0
      %955 = vmatpush.msra.mxu0 0.0
      %956 = vmatpush.msra.mxu0 0.0
      %957 = vmatpush.msra.mxu0 0.0
      %958 = vmatpush.msra.mxu0 0.0
      %959 = vmatpush.msra.mxu0 0.0
      %960 = vmatpush.msra.mxu0 %v408
      %961 = vmatpush.msra.mxu0 %v407
      %962 = vmatmul.f32.gmra.mxu0 %v938
      %v963 = vpop.f32.mrf.mxu0
      %v964 = vadd.f32 0.0, %v963
      %965 = vmatmul.f32.gmra.mxu0 %v940
      %v966 = vpop.f32.mrf.mxu0
      %v967 = vadd.f32 0.0, %v966
      %968 = vmatmul.f32.gmra.mxu0 %v942
      %v969 = vpop.f32.mrf.mxu0
      %v970 = vadd.f32 0.0, %v969
      %971 = vmatmul.f32.gmra.mxu0 %v944
      %v972 = vpop.f32.mrf.mxu0
      %v973 = vadd.f32 0.0, %v972
      %974 = vdwg.mxu0
      %v975 = vadd.f32 %v919, %v964
      %v976 = vadd.f32 %v922, %v967
      %v977 = vadd.f32 %v925, %v970
      %v978 = vadd.f32 %v928, %v973
      %v979 = vmul.f32 %v975, %v786
      %v980 = vmul.f32 %v976, %v791
      %v981 = vmul.f32 %v977, %v796
      %v982 = vmul.f32 %v978, %v801
      %v983 = vadd.f32 %v979, %v810
      %v984 = vadd.f32 %v980, %v815
      %v985 = vadd.f32 %v981, %v820
      %v986 = vadd.f32 %v982, %v825
      %v987 = vmax.f32 %v983, 0.0
      %v988 = vmax.f32 %v984, 0.0
      %v989 = vmax.f32 %v985, 0.0
      %v990 = vmax.f32 %v986, 0.0
      %s991 = scalar_lea.vmem [#allocation2], 64
      %992 = vst.msk [vmem:[%s991] sm:$0xff] %vm615, %v987
      %993 = vst.msk [vmem:[%s991 + $0x8] sm:$0xff] %vm615, %v988
      %994 = vst.msk [vmem:[%s991 + $0x10] sm:$0xff] %vm615, %v989
      %995 = vst.msk [vmem:[%s991 + $0x18] sm:$0xff] %vm615, %v990
      %996 = vrot.lane.b32.xlu0 %v592, 96
      %v997 = vpop.permute.xlu0 %996
      %998 = vrot.lane.b32.xlu0 %v595, 96
      %v999 = vpop.permute.xlu0 %998
      %1000 = vrot.lane.b32.xlu0 %v598, 96
      %v1001 = vpop.permute.xlu0 %1000
      %1002 = vrot.lane.b32.xlu0 %v601, 96
      %v1003 = vpop.permute.xlu0 %1002
      %v1004 = vsel %vm615, %v997, 0
      %v1006 = vsel %vm615, %v999, 0
      %v1008 = vsel %vm615, %v1001, 0
      %v1010 = vsel %vm615, %v1003, 0
      %1012 = vmatpush.msra.mxu0 0.0
      %1013 = vmatpush.msra.mxu0 0.0
      %1014 = vmatpush.msra.mxu0 0.0
      %1015 = vmatpush.msra.mxu0 0.0
      %1016 = vmatpush.msra.mxu0 0.0
      %1017 = vmatpush.msra.mxu0 0.0
      %1018 = vmatpush.msra.mxu0 0.0
      %1019 = vmatpush.msra.mxu0 0.0
      %1020 = vmatpush.msra.mxu0 0.0
      %1021 = vmatpush.msra.mxu0 0.0
      %1022 = vmatpush.msra.mxu0 0.0
      %1023 = vmatpush.msra.mxu0 0.0
      %1024 = vmatpush.msra.mxu0 0.0
      %1025 = vmatpush.msra.mxu0 0.0
      %1026 = vmatpush.msra.mxu0 %v406
      %1027 = vmatpush.msra.mxu0 %v405
      %1028 = vmatmul.f32.gmra.mxu0 %v1004
      %v1029 = vpop.f32.mrf.mxu0
      %v1030 = vadd.f32 0.0, %v1029
      %1031 = vmatmul.f32.gmra.mxu0 %v1006
      %v1032 = vpop.f32.mrf.mxu0
      %v1033 = vadd.f32 0.0, %v1032
      %1034 = vmatmul.f32.gmra.mxu0 %v1008
      %v1035 = vpop.f32.mrf.mxu0
      %v1036 = vadd.f32 0.0, %v1035
      %1037 = vmatmul.f32.gmra.mxu0 %v1010
      %v1038 = vpop.f32.mrf.mxu0
      %v1039 = vadd.f32 0.0, %v1038
      %1040 = vdwg.mxu0
      %1041 = vrot.lane.b32.xlu0 %v580, 96
      %v1042 = vpop.permute.xlu0 %1041
      %1043 = vrot.lane.b32.xlu0 %v583, 96
      %v1044 = vpop.permute.xlu0 %1043
      %1045 = vrot.lane.b32.xlu0 %v586, 96
      %v1046 = vpop.permute.xlu0 %1045
      %1047 = vrot.lane.b32.xlu0 %v589, 96
      %v1048 = vpop.permute.xlu0 %1047
      %v1049 = vsel %vm615, %v1042, 0
      %v1051 = vsel %vm615, %v1044, 0
      %v1053 = vsel %vm615, %v1046, 0
      %v1055 = vsel %vm615, %v1048, 0
      %1057 = vmatpush.msra.mxu0 0.0
      %1058 = vmatpush.msra.mxu0 0.0
      %1059 = vmatpush.msra.mxu0 0.0
      %1060 = vmatpush.msra.mxu0 0.0
      %1061 = vmatpush.msra.mxu0 0.0
      %1062 = vmatpush.msra.mxu0 0.0
      %1063 = vmatpush.msra.mxu0 0.0
      %1064 = vmatpush.msra.mxu0 0.0
      %1065 = vmatpush.msra.mxu0 0.0
      %1066 = vmatpush.msra.mxu0 0.0
      %1067 = vmatpush.msra.mxu0 0.0
      %1068 = vmatpush.msra.mxu0 0.0
      %1069 = vmatpush.msra.mxu0 0.0
      %1070 = vmatpush.msra.mxu0 0.0
      %1071 = vmatpush.msra.mxu0 %v404
      %1072 = vmatpush.msra.mxu0 %v403
      %1073 = vmatmul.f32.gmra.mxu0 %v1049
      %v1074 = vpop.f32.mrf.mxu0
      %v1075 = vadd.f32 %v1030, %v1074
      %1076 = vmatmul.f32.gmra.mxu0 %v1051
      %v1077 = vpop.f32.mrf.mxu0
      %v1078 = vadd.f32 %v1033, %v1077
      %1079 = vmatmul.f32.gmra.mxu0 %v1053
      %v1080 = vpop.f32.mrf.mxu0
      %v1081 = vadd.f32 %v1036, %v1080
      %1082 = vmatmul.f32.gmra.mxu0 %v1055
      %v1083 = vpop.f32.mrf.mxu0
      %v1084 = vadd.f32 %v1039, %v1083
      %1085 = vdwg.mxu0
      %1086 = vrot.lane.b32.xlu0 %v604, 96
      %v1087 = vpop.permute.xlu0 %1086
      %1088 = vrot.lane.b32.xlu0 %v607, 96
      %v1089 = vpop.permute.xlu0 %1088
      %1090 = vrot.lane.b32.xlu0 %v610, 96
      %v1091 = vpop.permute.xlu0 %1090
      %1092 = vrot.lane.b32.xlu0 %v613, 96
      %v1093 = vpop.permute.xlu0 %1092
      %v1094 = vsel %vm615, %v1087, 0
      %v1096 = vsel %vm615, %v1089, 0
      %v1098 = vsel %vm615, %v1091, 0
      %v1100 = vsel %vm615, %v1093, 0
      %1102 = vmatpush.msra.mxu0 0.0
      %1103 = vmatpush.msra.mxu0 0.0
      %1104 = vmatpush.msra.mxu0 0.0
      %1105 = vmatpush.msra.mxu0 0.0
      %1106 = vmatpush.msra.mxu0 0.0
      %1107 = vmatpush.msra.mxu0 0.0
      %1108 = vmatpush.msra.mxu0 0.0
      %1109 = vmatpush.msra.mxu0 0.0
      %1110 = vmatpush.msra.mxu0 0.0
      %1111 = vmatpush.msra.mxu0 0.0
      %1112 = vmatpush.msra.mxu0 0.0
      %1113 = vmatpush.msra.mxu0 0.0
      %1114 = vmatpush.msra.mxu0 0.0
      %1115 = vmatpush.msra.mxu0 0.0
      %1116 = vmatpush.msra.mxu0 %v408
      %1117 = vmatpush.msra.mxu0 %v407
      %1118 = vmatmul.f32.gmra.mxu0 %v1094
      %v1119 = vpop.f32.mrf.mxu0
      %v1120 = vadd.f32 0.0, %v1119
      %1121 = vmatmul.f32.gmra.mxu0 %v1096
      %v1122 = vpop.f32.mrf.mxu0
      %v1123 = vadd.f32 0.0, %v1122
      %1124 = vmatmul.f32.gmra.mxu0 %v1098
      %v1125 = vpop.f32.mrf.mxu0
      %v1126 = vadd.f32 0.0, %v1125
      %1127 = vmatmul.f32.gmra.mxu0 %v1100
      %v1128 = vpop.f32.mrf.mxu0
      %v1129 = vadd.f32 0.0, %v1128
      %1130 = vdwg.mxu0
      %v1131 = vadd.f32 %v1075, %v1120
      %v1132 = vadd.f32 %v1078, %v1123
      %v1133 = vadd.f32 %v1081, %v1126
      %v1134 = vadd.f32 %v1084, %v1129
      %v1135 = vmul.f32 %v1131, %v786
      %v1136 = vmul.f32 %v1132, %v791
      %v1137 = vmul.f32 %v1133, %v796
      %v1138 = vmul.f32 %v1134, %v801
      %v1139 = vadd.f32 %v1135, %v810
      %v1140 = vadd.f32 %v1136, %v815
      %v1141 = vadd.f32 %v1137, %v820
      %v1142 = vadd.f32 %v1138, %v825
      %v1143 = vmax.f32 %v1139, 0.0
      %v1144 = vmax.f32 %v1140, 0.0
      %v1145 = vmax.f32 %v1141, 0.0
      %v1146 = vmax.f32 %v1142, 0.0
      %s1147 = scalar_lea.vmem [#allocation2], 96
      %1148 = vst.msk [vmem:[%s1147] sm:$0xff] %vm615, %v1143
      %1149 = vst.msk [vmem:[%s1147 + $0x8] sm:$0xff] %vm615, %v1144
      %1150 = vst.msk [vmem:[%s1147 + $0x10] sm:$0xff] %vm615, %v1145
      %1151 = vst.msk [vmem:[%s1147 + $0x18] sm:$0xff] %vm615, %v1146
      %1152 = vrot.lane.b32.xlu0 %v592, 80
      %v1153 = vpop.permute.xlu0 %1152
      %1154 = vrot.lane.b32.xlu0 %v595, 80
      %v1155 = vpop.permute.xlu0 %1154
      %1156 = vrot.lane.b32.xlu0 %v598, 80
      %v1157 = vpop.permute.xlu0 %1156
      %1158 = vrot.lane.b32.xlu0 %v601, 80
      %v1159 = vpop.permute.xlu0 %1158
      %v1160 = vsel %vm615, %v1153, 0
      %v1162 = vsel %vm615, %v1155, 0
      %v1164 = vsel %vm615, %v1157, 0
      %v1166 = vsel %vm615, %v1159, 0
      %1168 = vmatpush.msra.mxu0 0.0
      %1169 = vmatpush.msra.mxu0 0.0
      %1170 = vmatpush.msra.mxu0 0.0
      %1171 = vmatpush.msra.mxu0 0.0
      %1172 = vmatpush.msra.mxu0 0.0
      %1173 = vmatpush.msra.mxu0 0.0
      %1174 = vmatpush.msra.mxu0 0.0
      %1175 = vmatpush.msra.mxu0 0.0
      %1176 = vmatpush.msra.mxu0 0.0
      %1177 = vmatpush.msra.mxu0 0.0
      %1178 = vmatpush.msra.mxu0 0.0
      %1179 = vmatpush.msra.mxu0 0.0
      %1180 = vmatpush.msra.mxu0 0.0
      %1181 = vmatpush.msra.mxu0 0.0
      %1182 = vmatpush.msra.mxu0 %v406
      %1183 = vmatpush.msra.mxu0 %v405
      %1184 = vmatmul.f32.gmra.mxu0 %v1160
      %v1185 = vpop.f32.mrf.mxu0
      %v1186 = vadd.f32 0.0, %v1185
      %1187 = vmatmul.f32.gmra.mxu0 %v1162
      %v1188 = vpop.f32.mrf.mxu0
      %v1189 = vadd.f32 0.0, %v1188
      %1190 = vmatmul.f32.gmra.mxu0 %v1164
      %v1191 = vpop.f32.mrf.mxu0
      %v1192 = vadd.f32 0.0, %v1191
      %1193 = vmatmul.f32.gmra.mxu0 %v1166
      %v1194 = vpop.f32.mrf.mxu0
      %v1195 = vadd.f32 0.0, %v1194
      %1196 = vdwg.mxu0
      %1197 = vrot.lane.b32.xlu0 %v580, 80
      %v1198 = vpop.permute.xlu0 %1197
      %1199 = vrot.lane.b32.xlu0 %v583, 80
      %v1200 = vpop.permute.xlu0 %1199
      %1201 = vrot.lane.b32.xlu0 %v586, 80
      %v1202 = vpop.permute.xlu0 %1201
      %1203 = vrot.lane.b32.xlu0 %v589, 80
      %v1204 = vpop.permute.xlu0 %1203
      %v1205 = vsel %vm615, %v1198, 0
      %v1207 = vsel %vm615, %v1200, 0
      %v1209 = vsel %vm615, %v1202, 0
      %v1211 = vsel %vm615, %v1204, 0
      %1213 = vmatpush.msra.mxu0 0.0
      %1214 = vmatpush.msra.mxu0 0.0
      %1215 = vmatpush.msra.mxu0 0.0
      %1216 = vmatpush.msra.mxu0 0.0
      %1217 = vmatpush.msra.mxu0 0.0
      %1218 = vmatpush.msra.mxu0 0.0
      %1219 = vmatpush.msra.mxu0 0.0
      %1220 = vmatpush.msra.mxu0 0.0
      %1221 = vmatpush.msra.mxu0 0.0
      %1222 = vmatpush.msra.mxu0 0.0
      %1223 = vmatpush.msra.mxu0 0.0
      %1224 = vmatpush.msra.mxu0 0.0
      %1225 = vmatpush.msra.mxu0 0.0
      %1226 = vmatpush.msra.mxu0 0.0
      %1227 = vmatpush.msra.mxu0 %v404
      %1228 = vmatpush.msra.mxu0 %v403
      %1229 = vmatmul.f32.gmra.mxu0 %v1205
      %v1230 = vpop.f32.mrf.mxu0
      %v1231 = vadd.f32 %v1186, %v1230
      %1232 = vmatmul.f32.gmra.mxu0 %v1207
      %v1233 = vpop.f32.mrf.mxu0
      %v1234 = vadd.f32 %v1189, %v1233
      %1235 = vmatmul.f32.gmra.mxu0 %v1209
      %v1236 = vpop.f32.mrf.mxu0
      %v1237 = vadd.f32 %v1192, %v1236
      %1238 = vmatmul.f32.gmra.mxu0 %v1211
      %v1239 = vpop.f32.mrf.mxu0
      %v1240 = vadd.f32 %v1195, %v1239
      %1241 = vdwg.mxu0
      %1242 = vrot.lane.b32.xlu0 %v604, 80
      %v1243 = vpop.permute.xlu0 %1242
      %1244 = vrot.lane.b32.xlu0 %v607, 80
      %v1245 = vpop.permute.xlu0 %1244
      %1246 = vrot.lane.b32.xlu0 %v610, 80
      %v1247 = vpop.permute.xlu0 %1246
      %1248 = vrot.lane.b32.xlu0 %v613, 80
      %v1249 = vpop.permute.xlu0 %1248
      %v1250 = vsel %vm615, %v1243, 0
      %v1252 = vsel %vm615, %v1245, 0
      %v1254 = vsel %vm615, %v1247, 0
      %v1256 = vsel %vm615, %v1249, 0
      %1258 = vmatpush.msra.mxu0 0.0
      %1259 = vmatpush.msra.mxu0 0.0
      %1260 = vmatpush.msra.mxu0 0.0
      %1261 = vmatpush.msra.mxu0 0.0
      %1262 = vmatpush.msra.mxu0 0.0
      %1263 = vmatpush.msra.mxu0 0.0
      %1264 = vmatpush.msra.mxu0 0.0
      %1265 = vmatpush.msra.mxu0 0.0
      %1266 = vmatpush.msra.mxu0 0.0
      %1267 = vmatpush.msra.mxu0 0.0
      %1268 = vmatpush.msra.mxu0 0.0
      %1269 = vmatpush.msra.mxu0 0.0
      %1270 = vmatpush.msra.mxu0 0.0
      %1271 = vmatpush.msra.mxu0 0.0
      %1272 = vmatpush.msra.mxu0 %v408
      %1273 = vmatpush.msra.mxu0 %v407
      %1274 = vmatmul.f32.gmra.mxu0 %v1250
      %v1275 = vpop.f32.mrf.mxu0
      %v1276 = vadd.f32 0.0, %v1275
      %1277 = vmatmul.f32.gmra.mxu0 %v1252
      %v1278 = vpop.f32.mrf.mxu0
      %v1279 = vadd.f32 0.0, %v1278
      %1280 = vmatmul.f32.gmra.mxu0 %v1254
      %v1281 = vpop.f32.mrf.mxu0
      %v1282 = vadd.f32 0.0, %v1281
      %1283 = vmatmul.f32.gmra.mxu0 %v1256
      %v1284 = vpop.f32.mrf.mxu0
      %v1285 = vadd.f32 0.0, %v1284
      %1286 = vdwg.mxu0
      %v1287 = vadd.f32 %v1231, %v1276
      %v1288 = vadd.f32 %v1234, %v1279
      %v1289 = vadd.f32 %v1237, %v1282
      %v1290 = vadd.f32 %v1240, %v1285
      %v1291 = vmul.f32 %v1287, %v786
      %v1292 = vmul.f32 %v1288, %v791
      %v1293 = vmul.f32 %v1289, %v796
      %v1294 = vmul.f32 %v1290, %v801
      %v1295 = vadd.f32 %v1291, %v810
      %v1296 = vadd.f32 %v1292, %v815
      %v1297 = vadd.f32 %v1293, %v820
      %v1298 = vadd.f32 %v1294, %v825
      %v1299 = vmax.f32 %v1295, 0.0
      %v1300 = vmax.f32 %v1296, 0.0
      %v1301 = vmax.f32 %v1297, 0.0
      %v1302 = vmax.f32 %v1298, 0.0
      %s1303 = scalar_lea.vmem [#allocation2], 128
      %1304 = vst.msk [vmem:[%s1303] sm:$0xff] %vm615, %v1299
      %1305 = vst.msk [vmem:[%s1303 + $0x8] sm:$0xff] %vm615, %v1300
      %1306 = vst.msk [vmem:[%s1303 + $0x10] sm:$0xff] %vm615, %v1301
      %1307 = vst.msk [vmem:[%s1303 + $0x18] sm:$0xff] %vm615, %v1302
      %1308 = vrot.lane.b32.xlu0 %v592, 64
      %v1309 = vpop.permute.xlu0 %1308
      %1310 = vrot.lane.b32.xlu0 %v595, 64
      %v1311 = vpop.permute.xlu0 %1310
      %1312 = vrot.lane.b32.xlu0 %v598, 64
      %v1313 = vpop.permute.xlu0 %1312
      %1314 = vrot.lane.b32.xlu0 %v601, 64
      %v1315 = vpop.permute.xlu0 %1314
      %v1316 = vsel %vm615, %v1309, 0
      %v1318 = vsel %vm615, %v1311, 0
      %v1320 = vsel %vm615, %v1313, 0
      %v1322 = vsel %vm615, %v1315, 0
      %1324 = vmatpush.msra.mxu0 0.0
      %1325 = vmatpush.msra.mxu0 0.0
      %1326 = vmatpush.msra.mxu0 0.0
      %1327 = vmatpush.msra.mxu0 0.0
      %1328 = vmatpush.msra.mxu0 0.0
      %1329 = vmatpush.msra.mxu0 0.0
      %1330 = vmatpush.msra.mxu0 0.0
      %1331 = vmatpush.msra.mxu0 0.0
      %1332 = vmatpush.msra.mxu0 0.0
      %1333 = vmatpush.msra.mxu0 0.0
      %1334 = vmatpush.msra.mxu0 0.0
      %1335 = vmatpush.msra.mxu0 0.0
      %1336 = vmatpush.msra.mxu0 0.0
      %1337 = vmatpush.msra.mxu0 0.0
      %1338 = vmatpush.msra.mxu0 %v406
      %1339 = vmatpush.msra.mxu0 %v405
      %1340 = vmatmul.f32.gmra.mxu0 %v1316
      %v1341 = vpop.f32.mrf.mxu0
      %v1342 = vadd.f32 0.0, %v1341
      %1343 = vmatmul.f32.gmra.mxu0 %v1318
      %v1344 = vpop.f32.mrf.mxu0
      %v1345 = vadd.f32 0.0, %v1344
      %1346 = vmatmul.f32.gmra.mxu0 %v1320
      %v1347 = vpop.f32.mrf.mxu0
      %v1348 = vadd.f32 0.0, %v1347
      %1349 = vmatmul.f32.gmra.mxu0 %v1322
      %v1350 = vpop.f32.mrf.mxu0
      %v1351 = vadd.f32 0.0, %v1350
      %1352 = vdwg.mxu0
      %1353 = vrot.lane.b32.xlu0 %v580, 64
      %v1354 = vpop.permute.xlu0 %1353
      %1355 = vrot.lane.b32.xlu0 %v583, 64
      %v1356 = vpop.permute.xlu0 %1355
      %1357 = vrot.lane.b32.xlu0 %v586, 64
      %v1358 = vpop.permute.xlu0 %1357
      %1359 = vrot.lane.b32.xlu0 %v589, 64
      %v1360 = vpop.permute.xlu0 %1359
      %v1361 = vsel %vm615, %v1354, 0
      %v1363 = vsel %vm615, %v1356, 0
      %v1365 = vsel %vm615, %v1358, 0
      %v1367 = vsel %vm615, %v1360, 0
      %1369 = vmatpush.msra.mxu0 0.0
      %1370 = vmatpush.msra.mxu0 0.0
      %1371 = vmatpush.msra.mxu0 0.0
      %1372 = vmatpush.msra.mxu0 0.0
      %1373 = vmatpush.msra.mxu0 0.0
      %1374 = vmatpush.msra.mxu0 0.0
      %1375 = vmatpush.msra.mxu0 0.0
      %1376 = vmatpush.msra.mxu0 0.0
      %1377 = vmatpush.msra.mxu0 0.0
      %1378 = vmatpush.msra.mxu0 0.0
      %1379 = vmatpush.msra.mxu0 0.0
      %1380 = vmatpush.msra.mxu0 0.0
      %1381 = vmatpush.msra.mxu0 0.0
      %1382 = vmatpush.msra.mxu0 0.0
      %1383 = vmatpush.msra.mxu0 %v404
      %1384 = vmatpush.msra.mxu0 %v403
      %1385 = vmatmul.f32.gmra.mxu0 %v1361
      %v1386 = vpop.f32.mrf.mxu0
      %v1387 = vadd.f32 %v1342, %v1386
      %1388 = vmatmul.f32.gmra.mxu0 %v1363
      %v1389 = vpop.f32.mrf.mxu0
      %v1390 = vadd.f32 %v1345, %v1389
      %1391 = vmatmul.f32.gmra.mxu0 %v1365
      %v1392 = vpop.f32.mrf.mxu0
      %v1393 = vadd.f32 %v1348, %v1392
      %1394 = vmatmul.f32.gmra.mxu0 %v1367
      %v1395 = vpop.f32.mrf.mxu0
      %v1396 = vadd.f32 %v1351, %v1395
      %1397 = vdwg.mxu0
      %1398 = vrot.lane.b32.xlu0 %v604, 64
      %v1399 = vpop.permute.xlu0 %1398
      %1400 = vrot.lane.b32.xlu0 %v607, 64
      %v1401 = vpop.permute.xlu0 %1400
      %1402 = vrot.lane.b32.xlu0 %v610, 64
      %v1403 = vpop.permute.xlu0 %1402
      %1404 = vrot.lane.b32.xlu0 %v613, 64
      %v1405 = vpop.permute.xlu0 %1404
      %v1406 = vsel %vm615, %v1399, 0
      %v1408 = vsel %vm615, %v1401, 0
      %v1410 = vsel %vm615, %v1403, 0
      %v1412 = vsel %vm615, %v1405, 0
      %1414 = vmatpush.msra.mxu0 0.0
      %1415 = vmatpush.msra.mxu0 0.0
      %1416 = vmatpush.msra.mxu0 0.0
      %1417 = vmatpush.msra.mxu0 0.0
      %1418 = vmatpush.msra.mxu0 0.0
      %1419 = vmatpush.msra.mxu0 0.0
      %1420 = vmatpush.msra.mxu0 0.0
      %1421 = vmatpush.msra.mxu0 0.0
      %1422 = vmatpush.msra.mxu0 0.0
      %1423 = vmatpush.msra.mxu0 0.0
      %1424 = vmatpush.msra.mxu0 0.0
      %1425 = vmatpush.msra.mxu0 0.0
      %1426 = vmatpush.msra.mxu0 0.0
      %1427 = vmatpush.msra.mxu0 0.0
      %1428 = vmatpush.msra.mxu0 %v408
      %1429 = vmatpush.msra.mxu0 %v407
      %1430 = vmatmul.f32.gmra.mxu0 %v1406
      %v1431 = vpop.f32.mrf.mxu0
      %v1432 = vadd.f32 0.0, %v1431
      %1433 = vmatmul.f32.gmra.mxu0 %v1408
      %v1434 = vpop.f32.mrf.mxu0
      %v1435 = vadd.f32 0.0, %v1434
      %1436 = vmatmul.f32.gmra.mxu0 %v1410
      %v1437 = vpop.f32.mrf.mxu0
      %v1438 = vadd.f32 0.0, %v1437
      %1439 = vmatmul.f32.gmra.mxu0 %v1412
      %v1440 = vpop.f32.mrf.mxu0
      %v1441 = vadd.f32 0.0, %v1440
      %1442 = vdwg.mxu0
      %v1443 = vadd.f32 %v1387, %v1432
      %v1444 = vadd.f32 %v1390, %v1435
      %v1445 = vadd.f32 %v1393, %v1438
      %v1446 = vadd.f32 %v1396, %v1441
      %v1447 = vmul.f32 %v1443, %v786
      %v1448 = vmul.f32 %v1444, %v791
      %v1449 = vmul.f32 %v1445, %v796
      %v1450 = vmul.f32 %v1446, %v801
      %v1451 = vadd.f32 %v1447, %v810
      %v1452 = vadd.f32 %v1448, %v815
      %v1453 = vadd.f32 %v1449, %v820
      %v1454 = vadd.f32 %v1450, %v825
      %v1455 = vmax.f32 %v1451, 0.0
      %v1456 = vmax.f32 %v1452, 0.0
      %v1457 = vmax.f32 %v1453, 0.0
      %v1458 = vmax.f32 %v1454, 0.0
      %s1459 = scalar_lea.vmem [#allocation2], 160
      %1460 = vst.msk [vmem:[%s1459] sm:$0xff] %vm615, %v1455
      %1461 = vst.msk [vmem:[%s1459 + $0x8] sm:$0xff] %vm615, %v1456
      %1462 = vst.msk [vmem:[%s1459 + $0x10] sm:$0xff] %vm615, %v1457
      %1463 = vst.msk [vmem:[%s1459 + $0x18] sm:$0xff] %vm615, %v1458
      %1464 = vrot.lane.b32.xlu0 %v592, 48
      %v1465 = vpop.permute.xlu0 %1464
      %1466 = vrot.lane.b32.xlu0 %v595, 48
      %v1467 = vpop.permute.xlu0 %1466
      %1468 = vrot.lane.b32.xlu0 %v598, 48
      %v1469 = vpop.permute.xlu0 %1468
      %1470 = vrot.lane.b32.xlu0 %v601, 48
      %v1471 = vpop.permute.xlu0 %1470
      %v1472 = vsel %vm615, %v1465, 0
      %v1474 = vsel %vm615, %v1467, 0
      %v1476 = vsel %vm615, %v1469, 0
      %v1478 = vsel %vm615, %v1471, 0
      %1480 = vmatpush.msra.mxu0 0.0
      %1481 = vmatpush.msra.mxu0 0.0
      %1482 = vmatpush.msra.mxu0 0.0
      %1483 = vmatpush.msra.mxu0 0.0
      %1484 = vmatpush.msra.mxu0 0.0
      %1485 = vmatpush.msra.mxu0 0.0
      %1486 = vmatpush.msra.mxu0 0.0
      %1487 = vmatpush.msra.mxu0 0.0
      %1488 = vmatpush.msra.mxu0 0.0
      %1489 = vmatpush.msra.mxu0 0.0
      %1490 = vmatpush.msra.mxu0 0.0
      %1491 = vmatpush.msra.mxu0 0.0
      %1492 = vmatpush.msra.mxu0 0.0
      %1493 = vmatpush.msra.mxu0 0.0
      %1494 = vmatpush.msra.mxu0 %v406
      %1495 = vmatpush.msra.mxu0 %v405
      %1496 = vmatmul.f32.gmra.mxu0 %v1472
      %v1497 = vpop.f32.mrf.mxu0
      %v1498 = vadd.f32 0.0, %v1497
      %1499 = vmatmul.f32.gmra.mxu0 %v1474
      %v1500 = vpop.f32.mrf.mxu0
      %v1501 = vadd.f32 0.0, %v1500
      %1502 = vmatmul.f32.gmra.mxu0 %v1476
      %v1503 = vpop.f32.mrf.mxu0
      %v1504 = vadd.f32 0.0, %v1503
      %1505 = vmatmul.f32.gmra.mxu0 %v1478
      %v1506 = vpop.f32.mrf.mxu0
      %v1507 = vadd.f32 0.0, %v1506
      %1508 = vdwg.mxu0
      %1509 = vrot.lane.b32.xlu0 %v580, 48
      %v1510 = vpop.permute.xlu0 %1509
      %1511 = vrot.lane.b32.xlu0 %v583, 48
      %v1512 = vpop.permute.xlu0 %1511
      %1513 = vrot.lane.b32.xlu0 %v586, 48
      %v1514 = vpop.permute.xlu0 %1513
      %1515 = vrot.lane.b32.xlu0 %v589, 48
      %v1516 = vpop.permute.xlu0 %1515
      %v1517 = vsel %vm615, %v1510, 0
      %v1519 = vsel %vm615, %v1512, 0
      %v1521 = vsel %vm615, %v1514, 0
      %v1523 = vsel %vm615, %v1516, 0
      %1525 = vmatpush.msra.mxu0 0.0
      %1526 = vmatpush.msra.mxu0 0.0
      %1527 = vmatpush.msra.mxu0 0.0
      %1528 = vmatpush.msra.mxu0 0.0
      %1529 = vmatpush.msra.mxu0 0.0
      %1530 = vmatpush.msra.mxu0 0.0
      %1531 = vmatpush.msra.mxu0 0.0
      %1532 = vmatpush.msra.mxu0 0.0
      %1533 = vmatpush.msra.mxu0 0.0
      %1534 = vmatpush.msra.mxu0 0.0
      %1535 = vmatpush.msra.mxu0 0.0
      %1536 = vmatpush.msra.mxu0 0.0
      %1537 = vmatpush.msra.mxu0 0.0
      %1538 = vmatpush.msra.mxu0 0.0
      %1539 = vmatpush.msra.mxu0 %v404
      %1540 = vmatpush.msra.mxu0 %v403
      %1541 = vmatmul.f32.gmra.mxu0 %v1517
      %v1542 = vpop.f32.mrf.mxu0
      %v1543 = vadd.f32 %v1498, %v1542
      %1544 = vmatmul.f32.gmra.mxu0 %v1519
      %v1545 = vpop.f32.mrf.mxu0
      %v1546 = vadd.f32 %v1501, %v1545
      %1547 = vmatmul.f32.gmra.mxu0 %v1521
      %v1548 = vpop.f32.mrf.mxu0
      %v1549 = vadd.f32 %v1504, %v1548
      %1550 = vmatmul.f32.gmra.mxu0 %v1523
      %v1551 = vpop.f32.mrf.mxu0
      %v1552 = vadd.f32 %v1507, %v1551
      %1553 = vdwg.mxu0
      %1554 = vrot.lane.b32.xlu0 %v604, 48
      %v1555 = vpop.permute.xlu0 %1554
      %1556 = vrot.lane.b32.xlu0 %v607, 48
      %v1557 = vpop.permute.xlu0 %1556
      %1558 = vrot.lane.b32.xlu0 %v610, 48
      %v1559 = vpop.permute.xlu0 %1558
      %1560 = vrot.lane.b32.xlu0 %v613, 48
      %v1561 = vpop.permute.xlu0 %1560
      %v1562 = vsel %vm615, %v1555, 0
      %v1564 = vsel %vm615, %v1557, 0
      %v1566 = vsel %vm615, %v1559, 0
      %v1568 = vsel %vm615, %v1561, 0
      %1570 = vmatpush.msra.mxu0 0.0
      %1571 = vmatpush.msra.mxu0 0.0
      %1572 = vmatpush.msra.mxu0 0.0
      %1573 = vmatpush.msra.mxu0 0.0
      %1574 = vmatpush.msra.mxu0 0.0
      %1575 = vmatpush.msra.mxu0 0.0
      %1576 = vmatpush.msra.mxu0 0.0
      %1577 = vmatpush.msra.mxu0 0.0
      %1578 = vmatpush.msra.mxu0 0.0
      %1579 = vmatpush.msra.mxu0 0.0
      %1580 = vmatpush.msra.mxu0 0.0
      %1581 = vmatpush.msra.mxu0 0.0
      %1582 = vmatpush.msra.mxu0 0.0
      %1583 = vmatpush.msra.mxu0 0.0
      %1584 = vmatpush.msra.mxu0 %v408
      %1585 = vmatpush.msra.mxu0 %v407
      %1586 = vmatmul.f32.gmra.mxu0 %v1562
      %v1587 = vpop.f32.mrf.mxu0
      %v1588 = vadd.f32 0.0, %v1587
      %1589 = vmatmul.f32.gmra.mxu0 %v1564
      %v1590 = vpop.f32.mrf.mxu0
      %v1591 = vadd.f32 0.0, %v1590
      %1592 = vmatmul.f32.gmra.mxu0 %v1566
      %v1593 = vpop.f32.mrf.mxu0
      %v1594 = vadd.f32 0.0, %v1593
      %1595 = vmatmul.f32.gmra.mxu0 %v1568
      %v1596 = vpop.f32.mrf.mxu0
      %v1597 = vadd.f32 0.0, %v1596
      %1598 = vdwg.mxu0
      %v1599 = vadd.f32 %v1543, %v1588
      %v1600 = vadd.f32 %v1546, %v1591
      %v1601 = vadd.f32 %v1549, %v1594
      %v1602 = vadd.f32 %v1552, %v1597
      %v1603 = vmul.f32 %v1599, %v786
      %v1604 = vmul.f32 %v1600, %v791
      %v1605 = vmul.f32 %v1601, %v796
      %v1606 = vmul.f32 %v1602, %v801
      %v1607 = vadd.f32 %v1603, %v810
      %v1608 = vadd.f32 %v1604, %v815
      %v1609 = vadd.f32 %v1605, %v820
      %v1610 = vadd.f32 %v1606, %v825
      %v1611 = vmax.f32 %v1607, 0.0
      %v1612 = vmax.f32 %v1608, 0.0
      %v1613 = vmax.f32 %v1609, 0.0
      %v1614 = vmax.f32 %v1610, 0.0
      %s1615 = scalar_lea.vmem [#allocation2], 192
      %1616 = vst.msk [vmem:[%s1615] sm:$0xff] %vm615, %v1611
      %1617 = vst.msk [vmem:[%s1615 + $0x8] sm:$0xff] %vm615, %v1612
      %1618 = vst.msk [vmem:[%s1615 + $0x10] sm:$0xff] %vm615, %v1613
      %1619 = vst.msk [vmem:[%s1615 + $0x18] sm:$0xff] %vm615, %v1614
      %1620 = vrot.lane.b32.xlu0 %v592, 32
      %v1621 = vpop.permute.xlu0 %1620
      %1622 = vrot.lane.b32.xlu0 %v595, 32
      %v1623 = vpop.permute.xlu0 %1622
      %1624 = vrot.lane.b32.xlu0 %v598, 32
      %v1625 = vpop.permute.xlu0 %1624
      %1626 = vrot.lane.b32.xlu0 %v601, 32
      %v1627 = vpop.permute.xlu0 %1626
      %v1628 = vsel %vm615, %v1621, 0
      %v1630 = vsel %vm615, %v1623, 0
      %v1632 = vsel %vm615, %v1625, 0
      %v1634 = vsel %vm615, %v1627, 0
      %1636 = vmatpush.msra.mxu0 0.0
      %1637 = vmatpush.msra.mxu0 0.0
      %1638 = vmatpush.msra.mxu0 0.0
      %1639 = vmatpush.msra.mxu0 0.0
      %1640 = vmatpush.msra.mxu0 0.0
      %1641 = vmatpush.msra.mxu0 0.0
      %1642 = vmatpush.msra.mxu0 0.0
      %1643 = vmatpush.msra.mxu0 0.0
      %1644 = vmatpush.msra.mxu0 0.0
      %1645 = vmatpush.msra.mxu0 0.0
      %1646 = vmatpush.msra.mxu0 0.0
      %1647 = vmatpush.msra.mxu0 0.0
      %1648 = vmatpush.msra.mxu0 0.0
      %1649 = vmatpush.msra.mxu0 0.0
      %1650 = vmatpush.msra.mxu0 %v406
      %1651 = vmatpush.msra.mxu0 %v405
      %1652 = vmatmul.f32.gmra.mxu0 %v1628
      %v1653 = vpop.f32.mrf.mxu0
      %v1654 = vadd.f32 0.0, %v1653
      %1655 = vmatmul.f32.gmra.mxu0 %v1630
      %v1656 = vpop.f32.mrf.mxu0
      %v1657 = vadd.f32 0.0, %v1656
      %1658 = vmatmul.f32.gmra.mxu0 %v1632
      %v1659 = vpop.f32.mrf.mxu0
      %v1660 = vadd.f32 0.0, %v1659
      %1661 = vmatmul.f32.gmra.mxu0 %v1634
      %v1662 = vpop.f32.mrf.mxu0
      %v1663 = vadd.f32 0.0, %v1662
      %1664 = vdwg.mxu0
      %1665 = vrot.lane.b32.xlu0 %v580, 32
      %v1666 = vpop.permute.xlu0 %1665
      %1667 = vrot.lane.b32.xlu0 %v583, 32
      %v1668 = vpop.permute.xlu0 %1667
      %1669 = vrot.lane.b32.xlu0 %v586, 32
      %v1670 = vpop.permute.xlu0 %1669
      %1671 = vrot.lane.b32.xlu0 %v589, 32
      %v1672 = vpop.permute.xlu0 %1671
      %v1673 = vsel %vm615, %v1666, 0
      %v1675 = vsel %vm615, %v1668, 0
      %v1677 = vsel %vm615, %v1670, 0
      %v1679 = vsel %vm615, %v1672, 0
      %1681 = vmatpush.msra.mxu0 0.0
      %1682 = vmatpush.msra.mxu0 0.0
      %1683 = vmatpush.msra.mxu0 0.0
      %1684 = vmatpush.msra.mxu0 0.0
      %1685 = vmatpush.msra.mxu0 0.0
      %1686 = vmatpush.msra.mxu0 0.0
      %1687 = vmatpush.msra.mxu0 0.0
      %1688 = vmatpush.msra.mxu0 0.0
      %1689 = vmatpush.msra.mxu0 0.0
      %1690 = vmatpush.msra.mxu0 0.0
      %1691 = vmatpush.msra.mxu0 0.0
      %1692 = vmatpush.msra.mxu0 0.0
      %1693 = vmatpush.msra.mxu0 0.0
      %1694 = vmatpush.msra.mxu0 0.0
      %1695 = vmatpush.msra.mxu0 %v404
      %1696 = vmatpush.msra.mxu0 %v403
      %1697 = vmatmul.f32.gmra.mxu0 %v1673
      %v1698 = vpop.f32.mrf.mxu0
      %v1699 = vadd.f32 %v1654, %v1698
      %1700 = vmatmul.f32.gmra.mxu0 %v1675
      %v1701 = vpop.f32.mrf.mxu0
      %v1702 = vadd.f32 %v1657, %v1701
      %1703 = vmatmul.f32.gmra.mxu0 %v1677
      %v1704 = vpop.f32.mrf.mxu0
      %v1705 = vadd.f32 %v1660, %v1704
      %1706 = vmatmul.f32.gmra.mxu0 %v1679
      %v1707 = vpop.f32.mrf.mxu0
      %v1708 = vadd.f32 %v1663, %v1707
      %1709 = vdwg.mxu0
      %1710 = vrot.lane.b32.xlu0 %v604, 32
      %v1711 = vpop.permute.xlu0 %1710
      %1712 = vrot.lane.b32.xlu0 %v607, 32
      %v1713 = vpop.permute.xlu0 %1712
      %1714 = vrot.lane.b32.xlu0 %v610, 32
      %v1715 = vpop.permute.xlu0 %1714
      %1716 = vrot.lane.b32.xlu0 %v613, 32
      %v1717 = vpop.permute.xlu0 %1716
      %v1718 = vsel %vm615, %v1711, 0
      %v1720 = vsel %vm615, %v1713, 0
      %v1722 = vsel %vm615, %v1715, 0
      %v1724 = vsel %vm615, %v1717, 0
      %1726 = vmatpush.msra.mxu0 0.0
      %1727 = vmatpush.msra.mxu0 0.0
      %1728 = vmatpush.msra.mxu0 0.0
      %1729 = vmatpush.msra.mxu0 0.0
      %1730 = vmatpush.msra.mxu0 0.0
      %1731 = vmatpush.msra.mxu0 0.0
      %1732 = vmatpush.msra.mxu0 0.0
      %1733 = vmatpush.msra.mxu0 0.0
      %1734 = vmatpush.msra.mxu0 0.0
      %1735 = vmatpush.msra.mxu0 0.0
      %1736 = vmatpush.msra.mxu0 0.0
      %1737 = vmatpush.msra.mxu0 0.0
      %1738 = vmatpush.msra.mxu0 0.0
      %1739 = vmatpush.msra.mxu0 0.0
      %1740 = vmatpush.msra.mxu0 %v408
      %1741 = vmatpush.msra.mxu0 %v407
      %1742 = vmatmul.f32.gmra.mxu0 %v1718
      %v1743 = vpop.f32.mrf.mxu0
      %v1744 = vadd.f32 0.0, %v1743
      %1745 = vmatmul.f32.gmra.mxu0 %v1720
      %v1746 = vpop.f32.mrf.mxu0
      %v1747 = vadd.f32 0.0, %v1746
      %1748 = vmatmul.f32.gmra.mxu0 %v1722
      %v1749 = vpop.f32.mrf.mxu0
      %v1750 = vadd.f32 0.0, %v1749
      %1751 = vmatmul.f32.gmra.mxu0 %v1724
      %v1752 = vpop.f32.mrf.mxu0
      %v1753 = vadd.f32 0.0, %v1752
      %1754 = vdwg.mxu0
      %v1755 = vadd.f32 %v1699, %v1744
      %v1756 = vadd.f32 %v1702, %v1747
      %v1757 = vadd.f32 %v1705, %v1750
      %v1758 = vadd.f32 %v1708, %v1753
      %v1759 = vmul.f32 %v1755, %v786
      %v1760 = vmul.f32 %v1756, %v791
      %v1761 = vmul.f32 %v1757, %v796
      %v1762 = vmul.f32 %v1758, %v801
      %v1763 = vadd.f32 %v1759, %v810
      %v1764 = vadd.f32 %v1760, %v815
      %v1765 = vadd.f32 %v1761, %v820
      %v1766 = vadd.f32 %v1762, %v825
      %v1767 = vmax.f32 %v1763, 0.0
      %v1768 = vmax.f32 %v1764, 0.0
      %v1769 = vmax.f32 %v1765, 0.0
      %v1770 = vmax.f32 %v1766, 0.0
      %s1771 = scalar_lea.vmem [#allocation2], 224
      %1772 = vst.msk [vmem:[%s1771] sm:$0xff] %vm615, %v1767
      %1773 = vst.msk [vmem:[%s1771 + $0x8] sm:$0xff] %vm615, %v1768
      %1774 = vst.msk [vmem:[%s1771 + $0x10] sm:$0xff] %vm615, %v1769
      %1775 = vst.msk [vmem:[%s1771 + $0x18] sm:$0xff] %vm615, %v1770
      %1776 = vrot.lane.b32.xlu0 %v592, 16
      %v1777 = vpop.permute.xlu0 %1776
      %1778 = vrot.lane.b32.xlu0 %v595, 16
      %v1779 = vpop.permute.xlu0 %1778
      %1780 = vrot.lane.b32.xlu0 %v598, 16
      %v1781 = vpop.permute.xlu0 %1780
      %1782 = vrot.lane.b32.xlu0 %v601, 16
      %v1783 = vpop.permute.xlu0 %1782
      %v1784 = vsel %vm615, %v1777, 0
      %v1786 = vsel %vm615, %v1779, 0
      %v1788 = vsel %vm615, %v1781, 0
      %v1790 = vsel %vm615, %v1783, 0
      %1792 = vmatpush.msra.mxu0 0.0
      %1793 = vmatpush.msra.mxu0 0.0
      %1794 = vmatpush.msra.mxu0 0.0
      %1795 = vmatpush.msra.mxu0 0.0
      %1796 = vmatpush.msra.mxu0 0.0
      %1797 = vmatpush.msra.mxu0 0.0
      %1798 = vmatpush.msra.mxu0 0.0
      %1799 = vmatpush.msra.mxu0 0.0
      %1800 = vmatpush.msra.mxu0 0.0
      %1801 = vmatpush.msra.mxu0 0.0
      %1802 = vmatpush.msra.mxu0 0.0
      %1803 = vmatpush.msra.mxu0 0.0
      %1804 = vmatpush.msra.mxu0 0.0
      %1805 = vmatpush.msra.mxu0 0.0
      %1806 = vmatpush.msra.mxu0 %v406
      %1807 = vmatpush.msra.mxu0 %v405
      %1808 = vmatmul.f32.gmra.mxu0 %v1784
      %v1809 = vpop.f32.mrf.mxu0
      %v1810 = vadd.f32 0.0, %v1809
      %1811 = vmatmul.f32.gmra.mxu0 %v1786
      %v1812 = vpop.f32.mrf.mxu0
      %v1813 = vadd.f32 0.0, %v1812
      %1814 = vmatmul.f32.gmra.mxu0 %v1788
      %v1815 = vpop.f32.mrf.mxu0
      %v1816 = vadd.f32 0.0, %v1815
      %1817 = vmatmul.f32.gmra.mxu0 %v1790
      %v1818 = vpop.f32.mrf.mxu0
      %v1819 = vadd.f32 0.0, %v1818
      %1820 = vdwg.mxu0
      %1821 = vrot.lane.b32.xlu0 %v580, 16
      %v1822 = vpop.permute.xlu0 %1821
      %1823 = vrot.lane.b32.xlu0 %v583, 16
      %v1824 = vpop.permute.xlu0 %1823
      %1825 = vrot.lane.b32.xlu0 %v586, 16
      %v1826 = vpop.permute.xlu0 %1825
      %1827 = vrot.lane.b32.xlu0 %v589, 16
      %v1828 = vpop.permute.xlu0 %1827
      %v1829 = vsel %vm615, %v1822, 0
      %v1831 = vsel %vm615, %v1824, 0
      %v1833 = vsel %vm615, %v1826, 0
      %v1835 = vsel %vm615, %v1828, 0
      %1837 = vmatpush.msra.mxu0 0.0
      %1838 = vmatpush.msra.mxu0 0.0
      %1839 = vmatpush.msra.mxu0 0.0
      %1840 = vmatpush.msra.mxu0 0.0
      %1841 = vmatpush.msra.mxu0 0.0
      %1842 = vmatpush.msra.mxu0 0.0
      %1843 = vmatpush.msra.mxu0 0.0
      %1844 = vmatpush.msra.mxu0 0.0
      %1845 = vmatpush.msra.mxu0 0.0
      %1846 = vmatpush.msra.mxu0 0.0
      %1847 = vmatpush.msra.mxu0 0.0
      %1848 = vmatpush.msra.mxu0 0.0
      %1849 = vmatpush.msra.mxu0 0.0
      %1850 = vmatpush.msra.mxu0 0.0
      %1851 = vmatpush.msra.mxu0 %v404
      %1852 = vmatpush.msra.mxu0 %v403
      %1853 = vmatmul.f32.gmra.mxu0 %v1829
      %v1854 = vpop.f32.mrf.mxu0
      %v1855 = vadd.f32 %v1810, %v1854
      %1856 = vmatmul.f32.gmra.mxu0 %v1831
      %v1857 = vpop.f32.mrf.mxu0
      %v1858 = vadd.f32 %v1813, %v1857
      %1859 = vmatmul.f32.gmra.mxu0 %v1833
      %v1860 = vpop.f32.mrf.mxu0
      %v1861 = vadd.f32 %v1816, %v1860
      %1862 = vmatmul.f32.gmra.mxu0 %v1835
      %v1863 = vpop.f32.mrf.mxu0
      %v1864 = vadd.f32 %v1819, %v1863
      %1865 = vdwg.mxu0
      %1866 = vrot.lane.b32.xlu0 %v604, 16
      %v1867 = vpop.permute.xlu0 %1866
      %1868 = vrot.lane.b32.xlu0 %v607, 16
      %v1869 = vpop.permute.xlu0 %1868
      %1870 = vrot.lane.b32.xlu0 %v610, 16
      %v1871 = vpop.permute.xlu0 %1870
      %1872 = vrot.lane.b32.xlu0 %v613, 16
      %v1873 = vpop.permute.xlu0 %1872
      %v1874 = vsel %vm615, %v1867, 0
      %v1876 = vsel %vm615, %v1869, 0
      %v1878 = vsel %vm615, %v1871, 0
      %v1880 = vsel %vm615, %v1873, 0
      %1882 = vmatpush.msra.mxu0 0.0
      %1883 = vmatpush.msra.mxu0 0.0
      %1884 = vmatpush.msra.mxu0 0.0
      %1885 = vmatpush.msra.mxu0 0.0
      %1886 = vmatpush.msra.mxu0 0.0
      %1887 = vmatpush.msra.mxu0 0.0
      %1888 = vmatpush.msra.mxu0 0.0
      %1889 = vmatpush.msra.mxu0 0.0
      %1890 = vmatpush.msra.mxu0 0.0
      %1891 = vmatpush.msra.mxu0 0.0
      %1892 = vmatpush.msra.mxu0 0.0
      %1893 = vmatpush.msra.mxu0 0.0
      %1894 = vmatpush.msra.mxu0 0.0
      %1895 = vmatpush.msra.mxu0 0.0
      %1896 = vmatpush.msra.mxu0 %v408
      %1897 = vmatpush.msra.mxu0 %v407
      %1898 = vmatmul.f32.gmra.mxu0 %v1874
      %v1899 = vpop.f32.mrf.mxu0
      %v1900 = vadd.f32 0.0, %v1899
      %1901 = vmatmul.f32.gmra.mxu0 %v1876
      %v1902 = vpop.f32.mrf.mxu0
      %v1903 = vadd.f32 0.0, %v1902
      %1904 = vmatmul.f32.gmra.mxu0 %v1878
      %v1905 = vpop.f32.mrf.mxu0
      %v1906 = vadd.f32 0.0, %v1905
      %1907 = vmatmul.f32.gmra.mxu0 %v1880
      %v1908 = vpop.f32.mrf.mxu0
      %v1909 = vadd.f32 0.0, %v1908
      %1910 = vdwg.mxu0
      %v1911 = vadd.f32 %v1855, %v1900
      %v1912 = vadd.f32 %v1858, %v1903
      %v1913 = vadd.f32 %v1861, %v1906
      %v1914 = vadd.f32 %v1864, %v1909
      %v1915 = vmul.f32 %v1911, %v786
      %v1916 = vmul.f32 %v1912, %v791
      %v1917 = vmul.f32 %v1913, %v796
      %v1918 = vmul.f32 %v1914, %v801
      %v1919 = vadd.f32 %v1915, %v810
      %v1920 = vadd.f32 %v1916, %v815
      %v1921 = vadd.f32 %v1917, %v820
      %v1922 = vadd.f32 %v1918, %v825
      %v1923 = vmax.f32 %v1919, 0.0
      %v1924 = vmax.f32 %v1920, 0.0
      %v1925 = vmax.f32 %v1921, 0.0
      %v1926 = vmax.f32 %v1922, 0.0
      %s1927 = scalar_lea.vmem [#allocation2], 256
      %1928 = vst.msk [vmem:[%s1927] sm:$0xff] %vm615, %v1923
      %1929 = vst.msk [vmem:[%s1927 + $0x8] sm:$0xff] %vm615, %v1924
      %1930 = vst.msk [vmem:[%s1927 + $0x10] sm:$0xff] %vm615, %v1925
      %1931 = vst.msk [vmem:[%s1927 + $0x18] sm:$0xff] %vm615, %v1926
      %v1932 = vld [vmem:[#allocation2] sm:$0xff]
      %v1933 = vld [vmem:[#allocation2 + $0x8] sm:$0xff]
      %v1934 = vld [vmem:[#allocation2 + $0x10] sm:$0xff]
      %v1935 = vld [vmem:[#allocation2 + $0x18] sm:$0xff]
      %v1936 = vld [vmem:[%s835] sm:$0xff]
      %v1937 = vld [vmem:[%s835 + $0x8] sm:$0xff]
      %v1938 = vld [vmem:[%s835 + $0x10] sm:$0xff]
      %v1939 = vld [vmem:[%s835 + $0x18] sm:$0xff]
      %v1941 = vsel %vm525, %v445, 0
      %v1944 = vsel %vm525, %v446, 0
      %v1947 = vsel %vm525, %v447, 0
      %v1950 = vsel %vm525, %v448, 0
      %1952 = vmatpush.msra.mxu0 0.0
      %1953 = vmatpush.msra.mxu0 0.0
      %1954 = vmatpush.msra.mxu0 0.0
      %1955 = vmatpush.msra.mxu0 0.0
      %1956 = vmatpush.msra.mxu0 0.0
      %1957 = vmatpush.msra.mxu0 0.0
      %1958 = vmatpush.msra.mxu0 0.0
      %1959 = vmatpush.msra.mxu0 0.0
      %1960 = vmatpush.msra.mxu0 0.0
      %1961 = vmatpush.msra.mxu0 0.0
      %1962 = vmatpush.msra.mxu0 0.0
      %1963 = vmatpush.msra.mxu0 0.0
      %1964 = vmatpush.msra.mxu0 %v1939
      %1965 = vmatpush.msra.mxu0 %v1938
      %1966 = vmatpush.msra.mxu0 %v1937
      %1967 = vmatpush.msra.mxu0 %v1936
      %1968 = vmatmul.f32.gmra.mxu0 %v1941
      %v1969 = vpop.f32.mrf.mxu0
      %v1970 = vadd.f32 0.0, %v1969
      %1971 = vmatmul.f32.gmra.mxu0 %v1944
      %v1972 = vpop.f32.mrf.mxu0
      %v1973 = vadd.f32 0.0, %v1972
      %1974 = vmatmul.f32.gmra.mxu0 %v1947
      %v1975 = vpop.f32.mrf.mxu0
      %v1976 = vadd.f32 0.0, %v1975
      %1977 = vmatmul.f32.gmra.mxu0 %v1950
      %v1978 = vpop.f32.mrf.mxu0
      %v1979 = vadd.f32 0.0, %v1978
      %1980 = vdwg.mxu0
      %v1982 = vsel %vm525, %v441, 0
      %v1985 = vsel %vm525, %v442, 0
      %v1988 = vsel %vm525, %v443, 0
      %v1991 = vsel %vm525, %v444, 0
      %1993 = vmatpush.msra.mxu0 0.0
      %1994 = vmatpush.msra.mxu0 0.0
      %1995 = vmatpush.msra.mxu0 0.0
      %1996 = vmatpush.msra.mxu0 0.0
      %1997 = vmatpush.msra.mxu0 0.0
      %1998 = vmatpush.msra.mxu0 0.0
      %1999 = vmatpush.msra.mxu0 0.0
      %2000 = vmatpush.msra.mxu0 0.0
      %2001 = vmatpush.msra.mxu0 0.0
      %2002 = vmatpush.msra.mxu0 0.0
      %2003 = vmatpush.msra.mxu0 0.0
      %2004 = vmatpush.msra.mxu0 0.0
      %2005 = vmatpush.msra.mxu0 %v1935
      %2006 = vmatpush.msra.mxu0 %v1934
      %2007 = vmatpush.msra.mxu0 %v1933
      %2008 = vmatpush.msra.mxu0 %v1932
      %2009 = vmatmul.f32.gmra.mxu0 %v1982
      %v2010 = vpop.f32.mrf.mxu0
      %v2011 = vadd.f32 %v1970, %v2010
      %2012 = vmatmul.f32.gmra.mxu0 %v1985
      %v2013 = vpop.f32.mrf.mxu0
      %v2014 = vadd.f32 %v1973, %v2013
      %2015 = vmatmul.f32.gmra.mxu0 %v1988
      %v2016 = vpop.f32.mrf.mxu0
      %v2017 = vadd.f32 %v1976, %v2016
      %2018 = vmatmul.f32.gmra.mxu0 %v1991
      %v2019 = vpop.f32.mrf.mxu0
      %v2020 = vadd.f32 %v1979, %v2019
      %2021 = vdwg.mxu0
      %v2022 = vld [vmem:[%s991] sm:$0xff]
      %v2023 = vld [vmem:[%s991 + $0x8] sm:$0xff]
      %v2024 = vld [vmem:[%s991 + $0x10] sm:$0xff]
      %v2025 = vld [vmem:[%s991 + $0x18] sm:$0xff]
      %v2027 = vsel %vm525, %v449, 0
      %v2030 = vsel %vm525, %v450, 0
      %v2033 = vsel %vm525, %v451, 0
      %v2036 = vsel %vm525, %v452, 0
      %2038 = vmatpush.msra.mxu0 0.0
      %2039 = vmatpush.msra.mxu0 0.0
      %2040 = vmatpush.msra.mxu0 0.0
      %2041 = vmatpush.msra.mxu0 0.0
      %2042 = vmatpush.msra.mxu0 0.0
      %2043 = vmatpush.msra.mxu0 0.0
      %2044 = vmatpush.msra.mxu0 0.0
      %2045 = vmatpush.msra.mxu0 0.0
      %2046 = vmatpush.msra.mxu0 0.0
      %2047 = vmatpush.msra.mxu0 0.0
      %2048 = vmatpush.msra.mxu0 0.0
      %2049 = vmatpush.msra.mxu0 0.0
      %2050 = vmatpush.msra.mxu0 %v2025
      %2051 = vmatpush.msra.mxu0 %v2024
      %2052 = vmatpush.msra.mxu0 %v2023
      %2053 = vmatpush.msra.mxu0 %v2022
      %2054 = vmatmul.f32.gmra.mxu0 %v2027
      %v2055 = vpop.f32.mrf.mxu0
      %v2056 = vadd.f32 0.0, %v2055
      %2057 = vmatmul.f32.gmra.mxu0 %v2030
      %v2058 = vpop.f32.mrf.mxu0
      %v2059 = vadd.f32 0.0, %v2058
      %2060 = vmatmul.f32.gmra.mxu0 %v2033
      %v2061 = vpop.f32.mrf.mxu0
      %v2062 = vadd.f32 0.0, %v2061
      %2063 = vmatmul.f32.gmra.mxu0 %v2036
      %v2064 = vpop.f32.mrf.mxu0
      %v2065 = vadd.f32 0.0, %v2064
      %2066 = vdwg.mxu0
      %v2067 = vadd.f32 %v2011, %v2056
      %v2068 = vadd.f32 %v2014, %v2059
      %v2069 = vadd.f32 %v2017, %v2062
      %v2070 = vadd.f32 %v2020, %v2065
      %2072 = vset.pattern.permute.xlu0 0
      %2073 = vperm.xlu0 %2072, %v453
      %v2074 = vpop.permute.xlu0 %2073
      %2077 = vset.pattern.permute.xlu0 0
      %2078 = vperm.xlu0 %2077, %v454
      %v2079 = vpop.permute.xlu0 %2078
      %2082 = vset.pattern.permute.xlu0 0
      %2083 = vperm.xlu0 %2082, %v455
      %v2084 = vpop.permute.xlu0 %2083
      %2087 = vset.pattern.permute.xlu0 0
      %2088 = vperm.xlu0 %2087, %v456
      %v2089 = vpop.permute.xlu0 %2088
      %v2091 = vadd.f32 %v2067, %v2074
      %v2092 = vadd.f32 %v2068, %v2079
      %v2093 = vadd.f32 %v2069, %v2084
      %v2094 = vadd.f32 %v2070, %v2089
      %2096 = vset.pattern.permute.xlu0 0
      %2097 = vperm.xlu0 %2096, %v457
      %v2098 = vpop.permute.xlu0 %2097
      %2101 = vset.pattern.permute.xlu0 0
      %2102 = vperm.xlu0 %2101, %v458
      %v2103 = vpop.permute.xlu0 %2102
      %2106 = vset.pattern.permute.xlu0 0
      %2107 = vperm.xlu0 %2106, %v459
      %v2108 = vpop.permute.xlu0 %2107
      %2111 = vset.pattern.permute.xlu0 0
      %2112 = vperm.xlu0 %2111, %v460
      %v2113 = vpop.permute.xlu0 %2112
      %v2115 = vmul.f32 %v2091, %v2098
      %v2116 = vmul.f32 %v2092, %v2103
      %v2117 = vmul.f32 %v2093, %v2108
      %v2118 = vmul.f32 %v2094, %v2113
      %2120 = vset.pattern.permute.xlu0 0
      %2121 = vperm.xlu0 %2120, %v461
      %v2122 = vpop.permute.xlu0 %2121
      %2125 = vset.pattern.permute.xlu0 0
      %2126 = vperm.xlu0 %2125, %v462
      %v2127 = vpop.permute.xlu0 %2126
      %2130 = vset.pattern.permute.xlu0 0
      %2131 = vperm.xlu0 %2130, %v463
      %v2132 = vpop.permute.xlu0 %2131
      %2135 = vset.pattern.permute.xlu0 0
      %2136 = vperm.xlu0 %2135, %v464
      %v2137 = vpop.permute.xlu0 %2136
      %v2139 = vadd.f32 %v2115, %v2122
      %v2140 = vadd.f32 %v2116, %v2127
      %v2141 = vadd.f32 %v2117, %v2132
      %v2142 = vadd.f32 %v2118, %v2137
      %v2143 = vadd.f32 %v2139, %v387
      %v2144 = vadd.f32 %v2140, %v388
      %v2145 = vadd.f32 %v2141, %v389
      %v2146 = vadd.f32 %v2142, %v390
      %v2147 = vmax.f32 %v2143, 0.0
      %v2148 = vmax.f32 %v2144, 0.0
      %v2149 = vmax.f32 %v2145, 0.0
      %v2150 = vmax.f32 %v2146, 0.0
      %2151 = vst.msk [vmem:[%s386] sm:$0xff] %vm615, %v2147
      %2152 = vst.msk [vmem:[%s386 + $0x8] sm:$0xff] %vm615, %v2148
      %2153 = vst.msk [vmem:[%s386 + $0x10] sm:$0xff] %vm615, %v2149
      %2154 = vst.msk [vmem:[%s386 + $0x18] sm:$0xff] %vm615, %v2150
      %v2155 = vld [vmem:[%s835] sm:$0xff]
      %v2156 = vld [vmem:[%s835 + $0x8] sm:$0xff]
      %v2157 = vld [vmem:[%s835 + $0x10] sm:$0xff]
      %v2158 = vld [vmem:[%s835 + $0x18] sm:$0xff]
      %v2159 = vld [vmem:[%s991] sm:$0xff]
      %v2160 = vld [vmem:[%s991 + $0x8] sm:$0xff]
      %v2161 = vld [vmem:[%s991 + $0x10] sm:$0xff]
      %v2162 = vld [vmem:[%s991 + $0x18] sm:$0xff]
      %2163 = vmatpush.msra.mxu0 0.0
      %2164 = vmatpush.msra.mxu0 0.0
      %2165 = vmatpush.msra.mxu0 0.0
      %2166 = vmatpush.msra.mxu0 0.0
      %2167 = vmatpush.msra.mxu0 0.0
      %2168 = vmatpush.msra.mxu0 0.0
      %2169 = vmatpush.msra.mxu0 0.0
      %2170 = vmatpush.msra.mxu0 0.0
      %2171 = vmatpush.msra.mxu0 0.0
      %2172 = vmatpush.msra.mxu0 0.0
      %2173 = vmatpush.msra.mxu0 0.0
      %2174 = vmatpush.msra.mxu0 0.0
      %2175 = vmatpush.msra.mxu0 %v2162
      %2176 = vmatpush.msra.mxu0 %v2161
      %2177 = vmatpush.msra.mxu0 %v2160
      %2178 = vmatpush.msra.mxu0 %v2159
      %2179 = vmatmul.f32.gmra.mxu0 %v1941
      %v2180 = vpop.f32.mrf.mxu0
      %v2181 = vadd.f32 0.0, %v2180
      %2182 = vmatmul.f32.gmra.mxu0 %v1944
      %v2183 = vpop.f32.mrf.mxu0
      %v2184 = vadd.f32 0.0, %v2183
      %2185 = vmatmul.f32.gmra.mxu0 %v1947
      %v2186 = vpop.f32.mrf.mxu0
      %v2187 = vadd.f32 0.0, %v2186
      %2188 = vmatmul.f32.gmra.mxu0 %v1950
      %v2189 = vpop.f32.mrf.mxu0
      %v2190 = vadd.f32 0.0, %v2189
      %2191 = vdwg.mxu0
      %2192 = vmatpush.msra.mxu0 0.0
      %2193 = vmatpush.msra.mxu0 0.0
      %2194 = vmatpush.msra.mxu0 0.0
      %2195 = vmatpush.msra.mxu0 0.0
      %2196 = vmatpush.msra.mxu0 0.0
      %2197 = vmatpush.msra.mxu0 0.0
      %2198 = vmatpush.msra.mxu0 0.0
      %2199 = vmatpush.msra.mxu0 0.0
      %2200 = vmatpush.msra.mxu0 0.0
      %2201 = vmatpush.msra.mxu0 0.0
      %2202 = vmatpush.msra.mxu0 0.0
      %2203 = vmatpush.msra.mxu0 0.0
      %2204 = vmatpush.msra.mxu0 %v2158
      %2205 = vmatpush.msra.mxu0 %v2157
      %2206 = vmatpush.msra.mxu0 %v2156
      %2207 = vmatpush.msra.mxu0 %v2155
      %2208 = vmatmul.f32.gmra.mxu0 %v1982
      %v2209 = vpop.f32.mrf.mxu0
      %v2210 = vadd.f32 %v2181, %v2209
      %2211 = vmatmul.f32.gmra.mxu0 %v1985
      %v2212 = vpop.f32.mrf.mxu0
      %v2213 = vadd.f32 %v2184, %v2212
      %2214 = vmatmul.f32.gmra.mxu0 %v1988
      %v2215 = vpop.f32.mrf.mxu0
      %v2216 = vadd.f32 %v2187, %v2215
      %2217 = vmatmul.f32.gmra.mxu0 %v1991
      %v2218 = vpop.f32.mrf.mxu0
      %v2219 = vadd.f32 %v2190, %v2218
      %2220 = vdwg.mxu0
      %v2221 = vld [vmem:[%s1147] sm:$0xff]
      %v2222 = vld [vmem:[%s1147 + $0x8] sm:$0xff]
      %v2223 = vld [vmem:[%s1147 + $0x10] sm:$0xff]
      %v2224 = vld [vmem:[%s1147 + $0x18] sm:$0xff]
      %2225 = vmatpush.msra.mxu0 0.0
      %2226 = vmatpush.msra.mxu0 0.0
      %2227 = vmatpush.msra.mxu0 0.0
      %2228 = vmatpush.msra.mxu0 0.0
      %2229 = vmatpush.msra.mxu0 0.0
      %2230 = vmatpush.msra.mxu0 0.0
      %2231 = vmatpush.msra.mxu0 0.0
      %2232 = vmatpush.msra.mxu0 0.0
      %2233 = vmatpush.msra.mxu0 0.0
      %2234 = vmatpush.msra.mxu0 0.0
      %2235 = vmatpush.msra.mxu0 0.0
      %2236 = vmatpush.msra.mxu0 0.0
      %2237 = vmatpush.msra.mxu0 %v2224
      %2238 = vmatpush.msra.mxu0 %v2223
      %2239 = vmatpush.msra.mxu0 %v2222
      %2240 = vmatpush.msra.mxu0 %v2221
      %2241 = vmatmul.f32.gmra.mxu0 %v2027
      %v2242 = vpop.f32.mrf.mxu0
      %v2243 = vadd.f32 0.0, %v2242
      %2244 = vmatmul.f32.gmra.mxu0 %v2030
      %v2245 = vpop.f32.mrf.mxu0
      %v2246 = vadd.f32 0.0, %v2245
      %2247 = vmatmul.f32.gmra.mxu0 %v2033
      %v2248 = vpop.f32.mrf.mxu0
      %v2249 = vadd.f32 0.0, %v2248
      %2250 = vmatmul.f32.gmra.mxu0 %v2036
      %v2251 = vpop.f32.mrf.mxu0
      %v2252 = vadd.f32 0.0, %v2251
      %2253 = vdwg.mxu0
      %v2254 = vadd.f32 %v2210, %v2243
      %v2255 = vadd.f32 %v2213, %v2246
      %v2256 = vadd.f32 %v2216, %v2249
      %v2257 = vadd.f32 %v2219, %v2252
      %v2258 = vadd.f32 %v2254, %v2074
      %v2259 = vadd.f32 %v2255, %v2079
      %v2260 = vadd.f32 %v2256, %v2084
      %v2261 = vadd.f32 %v2257, %v2089
      %v2262 = vmul.f32 %v2258, %v2098
      %v2263 = vmul.f32 %v2259, %v2103
      %v2264 = vmul.f32 %v2260, %v2108
      %v2265 = vmul.f32 %v2261, %v2113
      %v2266 = vadd.f32 %v2262, %v2122
      %v2267 = vadd.f32 %v2263, %v2127
      %v2268 = vadd.f32 %v2264, %v2132
      %v2269 = vadd.f32 %v2265, %v2137
      %2274 = vrot.lane.b32.xlu0 %v387, 112
      %v2275 = vpop.permute.xlu0 %2274
      %2276 = vrot.lane.b32.xlu0 %v388, 112
      %v2277 = vpop.permute.xlu0 %2276
      %2278 = vrot.lane.b32.xlu0 %v389, 112
      %v2279 = vpop.permute.xlu0 %2278
      %2280 = vrot.lane.b32.xlu0 %v390, 112
      %v2281 = vpop.permute.xlu0 %2280
      %v2286 = vadd.f32 %v2266, %v2275
      %v2287 = vadd.f32 %v2267, %v2277
      %v2288 = vadd.f32 %v2268, %v2279
      %v2289 = vadd.f32 %v2269, %v2281
      %v2290 = vmax.f32 %v2286, 0.0
      %v2291 = vmax.f32 %v2287, 0.0
      %v2292 = vmax.f32 %v2288, 0.0
      %v2293 = vmax.f32 %v2289, 0.0
      %s2294 = scalar_lea.vmem %s386, 32
      %2295 = vst.msk [vmem:[%s2294] sm:$0xff] %vm615, %v2290
      %2296 = vst.msk [vmem:[%s2294 + $0x8] sm:$0xff] %vm615, %v2291
      %2297 = vst.msk [vmem:[%s2294 + $0x10] sm:$0xff] %vm615, %v2292
      %2298 = vst.msk [vmem:[%s2294 + $0x18] sm:$0xff] %vm615, %v2293
      %v2299 = vld [vmem:[%s991] sm:$0xff]
      %v2300 = vld [vmem:[%s991 + $0x8] sm:$0xff]
      %v2301 = vld [vmem:[%s991 + $0x10] sm:$0xff]
      %v2302 = vld [vmem:[%s991 + $0x18] sm:$0xff]
      %v2303 = vld [vmem:[%s1147] sm:$0xff]
      %v2304 = vld [vmem:[%s1147 + $0x8] sm:$0xff]
      %v2305 = vld [vmem:[%s1147 + $0x10] sm:$0xff]
      %v2306 = vld [vmem:[%s1147 + $0x18] sm:$0xff]
      %2307 = vmatpush.msra.mxu0 0.0
      %2308 = vmatpush.msra.mxu0 0.0
      %2309 = vmatpush.msra.mxu0 0.0
      %2310 = vmatpush.msra.mxu0 0.0
      %2311 = vmatpush.msra.mxu0 0.0
      %2312 = vmatpush.msra.mxu0 0.0
      %2313 = vmatpush.msra.mxu0 0.0
      %2314 = vmatpush.msra.mxu0 0.0
      %2315 = vmatpush.msra.mxu0 0.0
      %2316 = vmatpush.msra.mxu0 0.0
      %2317 = vmatpush.msra.mxu0 0.0
      %2318 = vmatpush.msra.mxu0 0.0
      %2319 = vmatpush.msra.mxu0 %v2306
      %2320 = vmatpush.msra.mxu0 %v2305
      %2321 = vmatpush.msra.mxu0 %v2304
      %2322 = vmatpush.msra.mxu0 %v2303
      %2323 = vmatmul.f32.gmra.mxu0 %v1941
      %v2324 = vpop.f32.mrf.mxu0
      %v2325 = vadd.f32 0.0, %v2324
      %2326 = vmatmul.f32.gmra.mxu0 %v1944
      %v2327 = vpop.f32.mrf.mxu0
      %v2328 = vadd.f32 0.0, %v2327
      %2329 = vmatmul.f32.gmra.mxu0 %v1947
      %v2330 = vpop.f32.mrf.mxu0
      %v2331 = vadd.f32 0.0, %v2330
      %2332 = vmatmul.f32.gmra.mxu0 %v1950
      %v2333 = vpop.f32.mrf.mxu0
      %v2334 = vadd.f32 0.0, %v2333
      %2335 = vdwg.mxu0
      %2336 = vmatpush.msra.mxu0 0.0
      %2337 = vmatpush.msra.mxu0 0.0
      %2338 = vmatpush.msra.mxu0 0.0
      %2339 = vmatpush.msra.mxu0 0.0
      %2340 = vmatpush.msra.mxu0 0.0
      %2341 = vmatpush.msra.mxu0 0.0
      %2342 = vmatpush.msra.mxu0 0.0
      %2343 = vmatpush.msra.mxu0 0.0
      %2344 = vmatpush.msra.mxu0 0.0
      %2345 = vmatpush.msra.mxu0 0.0
      %2346 = vmatpush.msra.mxu0 0.0
      %2347 = vmatpush.msra.mxu0 0.0
      %2348 = vmatpush.msra.mxu0 %v2302
      %2349 = vmatpush.msra.mxu0 %v2301
      %2350 = vmatpush.msra.mxu0 %v2300
      %2351 = vmatpush.msra.mxu0 %v2299
      %2352 = vmatmul.f32.gmra.mxu0 %v1982
      %v2353 = vpop.f32.mrf.mxu0
      %v2354 = vadd.f32 %v2325, %v2353
      %2355 = vmatmul.f32.gmra.mxu0 %v1985
      %v2356 = vpop.f32.mrf.mxu0
      %v2357 = vadd.f32 %v2328, %v2356
      %2358 = vmatmul.f32.gmra.mxu0 %v1988
      %v2359 = vpop.f32.mrf.mxu0
      %v2360 = vadd.f32 %v2331, %v2359
      %2361 = vmatmul.f32.gmra.mxu0 %v1991
      %v2362 = vpop.f32.mrf.mxu0
      %v2363 = vadd.f32 %v2334, %v2362
      %2364 = vdwg.mxu0
      %v2365 = vld [vmem:[%s1303] sm:$0xff]
      %v2366 = vld [vmem:[%s1303 + $0x8] sm:$0xff]
      %v2367 = vld [vmem:[%s1303 + $0x10] sm:$0xff]
      %v2368 = vld [vmem:[%s1303 + $0x18] sm:$0xff]
      %2369 = vmatpush.msra.mxu0 0.0
      %2370 = vmatpush.msra.mxu0 0.0
      %2371 = vmatpush.msra.mxu0 0.0
      %2372 = vmatpush.msra.mxu0 0.0
      %2373 = vmatpush.msra.mxu0 0.0
      %2374 = vmatpush.msra.mxu0 0.0
      %2375 = vmatpush.msra.mxu0 0.0
      %2376 = vmatpush.msra.mxu0 0.0
      %2377 = vmatpush.msra.mxu0 0.0
      %2378 = vmatpush.msra.mxu0 0.0
      %2379 = vmatpush.msra.mxu0 0.0
      %2380 = vmatpush.msra.mxu0 0.0
      %2381 = vmatpush.msra.mxu0 %v2368
      %2382 = vmatpush.msra.mxu0 %v2367
      %2383 = vmatpush.msra.mxu0 %v2366
      %2384 = vmatpush.msra.mxu0 %v2365
      %2385 = vmatmul.f32.gmra.mxu0 %v2027
      %v2386 = vpop.f32.mrf.mxu0
      %v2387 = vadd.f32 0.0, %v2386
      %2388 = vmatmul.f32.gmra.mxu0 %v2030
      %v2389 = vpop.f32.mrf.mxu0
      %v2390 = vadd.f32 0.0, %v2389
      %2391 = vmatmul.f32.gmra.mxu0 %v2033
      %v2392 = vpop.f32.mrf.mxu0
      %v2393 = vadd.f32 0.0, %v2392
      %2394 = vmatmul.f32.gmra.mxu0 %v2036
      %v2395 = vpop.f32.mrf.mxu0
      %v2396 = vadd.f32 0.0, %v2395
      %2397 = vdwg.mxu0
      %v2398 = vadd.f32 %v2354, %v2387
      %v2399 = vadd.f32 %v2357, %v2390
      %v2400 = vadd.f32 %v2360, %v2393
      %v2401 = vadd.f32 %v2363, %v2396
      %v2402 = vadd.f32 %v2398, %v2074
      %v2403 = vadd.f32 %v2399, %v2079
      %v2404 = vadd.f32 %v2400, %v2084
      %v2405 = vadd.f32 %v2401, %v2089
      %v2406 = vmul.f32 %v2402, %v2098
      %v2407 = vmul.f32 %v2403, %v2103
      %v2408 = vmul.f32 %v2404, %v2108
      %v2409 = vmul.f32 %v2405, %v2113
      %v2410 = vadd.f32 %v2406, %v2122
      %v2411 = vadd.f32 %v2407, %v2127
      %v2412 = vadd.f32 %v2408, %v2132
      %v2413 = vadd.f32 %v2409, %v2137
      %2414 = vrot.lane.b32.xlu0 %v387, 96
      %v2415 = vpop.permute.xlu0 %2414
      %2416 = vrot.lane.b32.xlu0 %v388, 96
      %v2417 = vpop.permute.xlu0 %2416
      %2418 = vrot.lane.b32.xlu0 %v389, 96
      %v2419 = vpop.permute.xlu0 %2418
      %2420 = vrot.lane.b32.xlu0 %v390, 96
      %v2421 = vpop.permute.xlu0 %2420
      %v2426 = vadd.f32 %v2410, %v2415
      %v2427 = vadd.f32 %v2411, %v2417
      %v2428 = vadd.f32 %v2412, %v2419
      %v2429 = vadd.f32 %v2413, %v2421
      %v2430 = vmax.f32 %v2426, 0.0
      %v2431 = vmax.f32 %v2427, 0.0
      %v2432 = vmax.f32 %v2428, 0.0
      %v2433 = vmax.f32 %v2429, 0.0
      %s2434 = scalar_lea.vmem %s386, 64
      %2435 = vst.msk [vmem:[%s2434] sm:$0xff] %vm615, %v2430
      %2436 = vst.msk [vmem:[%s2434 + $0x8] sm:$0xff] %vm615, %v2431
      %2437 = vst.msk [vmem:[%s2434 + $0x10] sm:$0xff] %vm615, %v2432
      %2438 = vst.msk [vmem:[%s2434 + $0x18] sm:$0xff] %vm615, %v2433
      %v2439 = vld [vmem:[%s1147] sm:$0xff]
      %v2440 = vld [vmem:[%s1147 + $0x8] sm:$0xff]
      %v2441 = vld [vmem:[%s1147 + $0x10] sm:$0xff]
      %v2442 = vld [vmem:[%s1147 + $0x18] sm:$0xff]
      %v2443 = vld [vmem:[%s1303] sm:$0xff]
      %v2444 = vld [vmem:[%s1303 + $0x8] sm:$0xff]
      %v2445 = vld [vmem:[%s1303 + $0x10] sm:$0xff]
      %v2446 = vld [vmem:[%s1303 + $0x18] sm:$0xff]
      %2447 = vmatpush.msra.mxu0 0.0
      %2448 = vmatpush.msra.mxu0 0.0
      %2449 = vmatpush.msra.mxu0 0.0
      %2450 = vmatpush.msra.mxu0 0.0
      %2451 = vmatpush.msra.mxu0 0.0
      %2452 = vmatpush.msra.mxu0 0.0
      %2453 = vmatpush.msra.mxu0 0.0
      %2454 = vmatpush.msra.mxu0 0.0
      %2455 = vmatpush.msra.mxu0 0.0
      %2456 = vmatpush.msra.mxu0 0.0
      %2457 = vmatpush.msra.mxu0 0.0
      %2458 = vmatpush.msra.mxu0 0.0
      %2459 = vmatpush.msra.mxu0 %v2446
      %2460 = vmatpush.msra.mxu0 %v2445
      %2461 = vmatpush.msra.mxu0 %v2444
      %2462 = vmatpush.msra.mxu0 %v2443
      %2463 = vmatmul.f32.gmra.mxu0 %v1941
      %v2464 = vpop.f32.mrf.mxu0
      %v2465 = vadd.f32 0.0, %v2464
      %2466 = vmatmul.f32.gmra.mxu0 %v1944
      %v2467 = vpop.f32.mrf.mxu0
      %v2468 = vadd.f32 0.0, %v2467
      %2469 = vmatmul.f32.gmra.mxu0 %v1947
      %v2470 = vpop.f32.mrf.mxu0
      %v2471 = vadd.f32 0.0, %v2470
      %2472 = vmatmul.f32.gmra.mxu0 %v1950
      %v2473 = vpop.f32.mrf.mxu0
      %v2474 = vadd.f32 0.0, %v2473
      %2475 = vdwg.mxu0
      %2476 = vmatpush.msra.mxu0 0.0
      %2477 = vmatpush.msra.mxu0 0.0
      %2478 = vmatpush.msra.mxu0 0.0
      %2479 = vmatpush.msra.mxu0 0.0
      %2480 = vmatpush.msra.mxu0 0.0
      %2481 = vmatpush.msra.mxu0 0.0
      %2482 = vmatpush.msra.mxu0 0.0
      %2483 = vmatpush.msra.mxu0 0.0
      %2484 = vmatpush.msra.mxu0 0.0
      %2485 = vmatpush.msra.mxu0 0.0
      %2486 = vmatpush.msra.mxu0 0.0
      %2487 = vmatpush.msra.mxu0 0.0
      %2488 = vmatpush.msra.mxu0 %v2442
      %2489 = vmatpush.msra.mxu0 %v2441
      %2490 = vmatpush.msra.mxu0 %v2440
      %2491 = vmatpush.msra.mxu0 %v2439
      %2492 = vmatmul.f32.gmra.mxu0 %v1982
      %v2493 = vpop.f32.mrf.mxu0
      %v2494 = vadd.f32 %v2465, %v2493
      %2495 = vmatmul.f32.gmra.mxu0 %v1985
      %v2496 = vpop.f32.mrf.mxu0
      %v2497 = vadd.f32 %v2468, %v2496
      %2498 = vmatmul.f32.gmra.mxu0 %v1988
      %v2499 = vpop.f32.mrf.mxu0
      %v2500 = vadd.f32 %v2471, %v2499
      %2501 = vmatmul.f32.gmra.mxu0 %v1991
      %v2502 = vpop.f32.mrf.mxu0
      %v2503 = vadd.f32 %v2474, %v2502
      %2504 = vdwg.mxu0
      %v2505 = vld [vmem:[%s1459] sm:$0xff]
      %v2506 = vld [vmem:[%s1459 + $0x8] sm:$0xff]
      %v2507 = vld [vmem:[%s1459 + $0x10] sm:$0xff]
      %v2508 = vld [vmem:[%s1459 + $0x18] sm:$0xff]
      %2509 = vmatpush.msra.mxu0 0.0
      %2510 = vmatpush.msra.mxu0 0.0
      %2511 = vmatpush.msra.mxu0 0.0
      %2512 = vmatpush.msra.mxu0 0.0
      %2513 = vmatpush.msra.mxu0 0.0
      %2514 = vmatpush.msra.mxu0 0.0
      %2515 = vmatpush.msra.mxu0 0.0
      %2516 = vmatpush.msra.mxu0 0.0
      %2517 = vmatpush.msra.mxu0 0.0
      %2518 = vmatpush.msra.mxu0 0.0
      %2519 = vmatpush.msra.mxu0 0.0
      %2520 = vmatpush.msra.mxu0 0.0
      %2521 = vmatpush.msra.mxu0 %v2508
      %2522 = vmatpush.msra.mxu0 %v2507
      %2523 = vmatpush.msra.mxu0 %v2506
      %2524 = vmatpush.msra.mxu0 %v2505
      %2525 = vmatmul.f32.gmra.mxu0 %v2027
      %v2526 = vpop.f32.mrf.mxu0
      %v2527 = vadd.f32 0.0, %v2526
      %2528 = vmatmul.f32.gmra.mxu0 %v2030
      %v2529 = vpop.f32.mrf.mxu0
      %v2530 = vadd.f32 0.0, %v2529
      %2531 = vmatmul.f32.gmra.mxu0 %v2033
      %v2532 = vpop.f32.mrf.mxu0
      %v2533 = vadd.f32 0.0, %v2532
      %2534 = vmatmul.f32.gmra.mxu0 %v2036
      %v2535 = vpop.f32.mrf.mxu0
      %v2536 = vadd.f32 0.0, %v2535
      %2537 = vdwg.mxu0
      %v2538 = vadd.f32 %v2494, %v2527
      %v2539 = vadd.f32 %v2497, %v2530
      %v2540 = vadd.f32 %v2500, %v2533
      %v2541 = vadd.f32 %v2503, %v2536
      %v2542 = vadd.f32 %v2538, %v2074
      %v2543 = vadd.f32 %v2539, %v2079
      %v2544 = vadd.f32 %v2540, %v2084
      %v2545 = vadd.f32 %v2541, %v2089
      %v2546 = vmul.f32 %v2542, %v2098
      %v2547 = vmul.f32 %v2543, %v2103
      %v2548 = vmul.f32 %v2544, %v2108
      %v2549 = vmul.f32 %v2545, %v2113
      %v2550 = vadd.f32 %v2546, %v2122
      %v2551 = vadd.f32 %v2547, %v2127
      %v2552 = vadd.f32 %v2548, %v2132
      %v2553 = vadd.f32 %v2549, %v2137
      %2554 = vrot.lane.b32.xlu0 %v387, 80
      %v2555 = vpop.permute.xlu0 %2554
      %2556 = vrot.lane.b32.xlu0 %v388, 80
      %v2557 = vpop.permute.xlu0 %2556
      %2558 = vrot.lane.b32.xlu0 %v389, 80
      %v2559 = vpop.permute.xlu0 %2558
      %2560 = vrot.lane.b32.xlu0 %v390, 80
      %v2561 = vpop.permute.xlu0 %2560
      %v2566 = vadd.f32 %v2550, %v2555
      %v2567 = vadd.f32 %v2551, %v2557
      %v2568 = vadd.f32 %v2552, %v2559
      %v2569 = vadd.f32 %v2553, %v2561
      %v2570 = vmax.f32 %v2566, 0.0
      %v2571 = vmax.f32 %v2567, 0.0
      %v2572 = vmax.f32 %v2568, 0.0
      %v2573 = vmax.f32 %v2569, 0.0
      %s2574 = scalar_lea.vmem %s386, 96
      %2575 = vst.msk [vmem:[%s2574] sm:$0xff] %vm615, %v2570
      %2576 = vst.msk [vmem:[%s2574 + $0x8] sm:$0xff] %vm615, %v2571
      %2577 = vst.msk [vmem:[%s2574 + $0x10] sm:$0xff] %vm615, %v2572
      %2578 = vst.msk [vmem:[%s2574 + $0x18] sm:$0xff] %vm615, %v2573
      %v2579 = vld [vmem:[%s1303] sm:$0xff]
      %v2580 = vld [vmem:[%s1303 + $0x8] sm:$0xff]
      %v2581 = vld [vmem:[%s1303 + $0x10] sm:$0xff]
      %v2582 = vld [vmem:[%s1303 + $0x18] sm:$0xff]
      %v2583 = vld [vmem:[%s1459] sm:$0xff]
      %v2584 = vld [vmem:[%s1459 + $0x8] sm:$0xff]
      %v2585 = vld [vmem:[%s1459 + $0x10] sm:$0xff]
      %v2586 = vld [vmem:[%s1459 + $0x18] sm:$0xff]
      %2587 = vmatpush.msra.mxu0 0.0
      %2588 = vmatpush.msra.mxu0 0.0
      %2589 = vmatpush.msra.mxu0 0.0
      %2590 = vmatpush.msra.mxu0 0.0
      %2591 = vmatpush.msra.mxu0 0.0
      %2592 = vmatpush.msra.mxu0 0.0
      %2593 = vmatpush.msra.mxu0 0.0
      %2594 = vmatpush.msra.mxu0 0.0
      %2595 = vmatpush.msra.mxu0 0.0
      %2596 = vmatpush.msra.mxu0 0.0
      %2597 = vmatpush.msra.mxu0 0.0
      %2598 = vmatpush.msra.mxu0 0.0
      %2599 = vmatpush.msra.mxu0 %v2586
      %2600 = vmatpush.msra.mxu0 %v2585
      %2601 = vmatpush.msra.mxu0 %v2584
      %2602 = vmatpush.msra.mxu0 %v2583
      %2603 = vmatmul.f32.gmra.mxu0 %v1941
      %v2604 = vpop.f32.mrf.mxu0
      %v2605 = vadd.f32 0.0, %v2604
      %2606 = vmatmul.f32.gmra.mxu0 %v1944
      %v2607 = vpop.f32.mrf.mxu0
      %v2608 = vadd.f32 0.0, %v2607
      %2609 = vmatmul.f32.gmra.mxu0 %v1947
      %v2610 = vpop.f32.mrf.mxu0
      %v2611 = vadd.f32 0.0, %v2610
      %2612 = vmatmul.f32.gmra.mxu0 %v1950
      %v2613 = vpop.f32.mrf.mxu0
      %v2614 = vadd.f32 0.0, %v2613
      %2615 = vdwg.mxu0
      %2616 = vmatpush.msra.mxu0 0.0
      %2617 = vmatpush.msra.mxu0 0.0
      %2618 = vmatpush.msra.mxu0 0.0
      %2619 = vmatpush.msra.mxu0 0.0
      %2620 = vmatpush.msra.mxu0 0.0
      %2621 = vmatpush.msra.mxu0 0.0
      %2622 = vmatpush.msra.mxu0 0.0
      %2623 = vmatpush.msra.mxu0 0.0
      %2624 = vmatpush.msra.mxu0 0.0
      %2625 = vmatpush.msra.mxu0 0.0
      %2626 = vmatpush.msra.mxu0 0.0
      %2627 = vmatpush.msra.mxu0 0.0
      %2628 = vmatpush.msra.mxu0 %v2582
      %2629 = vmatpush.msra.mxu0 %v2581
      %2630 = vmatpush.msra.mxu0 %v2580
      %2631 = vmatpush.msra.mxu0 %v2579
      %2632 = vmatmul.f32.gmra.mxu0 %v1982
      %v2633 = vpop.f32.mrf.mxu0
      %v2634 = vadd.f32 %v2605, %v2633
      %2635 = vmatmul.f32.gmra.mxu0 %v1985
      %v2636 = vpop.f32.mrf.mxu0
      %v2637 = vadd.f32 %v2608, %v2636
      %2638 = vmatmul.f32.gmra.mxu0 %v1988
      %v2639 = vpop.f32.mrf.mxu0
      %v2640 = vadd.f32 %v2611, %v2639
      %2641 = vmatmul.f32.gmra.mxu0 %v1991
      %v2642 = vpop.f32.mrf.mxu0
      %v2643 = vadd.f32 %v2614, %v2642
      %2644 = vdwg.mxu0
      %v2645 = vld [vmem:[%s1615] sm:$0xff]
      %v2646 = vld [vmem:[%s1615 + $0x8] sm:$0xff]
      %v2647 = vld [vmem:[%s1615 + $0x10] sm:$0xff]
      %v2648 = vld [vmem:[%s1615 + $0x18] sm:$0xff]
      %2649 = vmatpush.msra.mxu0 0.0
      %2650 = vmatpush.msra.mxu0 0.0
      %2651 = vmatpush.msra.mxu0 0.0
      %2652 = vmatpush.msra.mxu0 0.0
      %2653 = vmatpush.msra.mxu0 0.0
      %2654 = vmatpush.msra.mxu0 0.0
      %2655 = vmatpush.msra.mxu0 0.0
      %2656 = vmatpush.msra.mxu0 0.0
      %2657 = vmatpush.msra.mxu0 0.0
      %2658 = vmatpush.msra.mxu0 0.0
      %2659 = vmatpush.msra.mxu0 0.0
      %2660 = vmatpush.msra.mxu0 0.0
      %2661 = vmatpush.msra.mxu0 %v2648
      %2662 = vmatpush.msra.mxu0 %v2647
      %2663 = vmatpush.msra.mxu0 %v2646
      %2664 = vmatpush.msra.mxu0 %v2645
      %2665 = vmatmul.f32.gmra.mxu0 %v2027
      %v2666 = vpop.f32.mrf.mxu0
      %v2667 = vadd.f32 0.0, %v2666
      %2668 = vmatmul.f32.gmra.mxu0 %v2030
      %v2669 = vpop.f32.mrf.mxu0
      %v2670 = vadd.f32 0.0, %v2669
      %2671 = vmatmul.f32.gmra.mxu0 %v2033
      %v2672 = vpop.f32.mrf.mxu0
      %v2673 = vadd.f32 0.0, %v2672
      %2674 = vmatmul.f32.gmra.mxu0 %v2036
      %v2675 = vpop.f32.mrf.mxu0
      %v2676 = vadd.f32 0.0, %v2675
      %2677 = vdwg.mxu0
      %v2678 = vadd.f32 %v2634, %v2667
      %v2679 = vadd.f32 %v2637, %v2670
      %v2680 = vadd.f32 %v2640, %v2673
      %v2681 = vadd.f32 %v2643, %v2676
      %v2682 = vadd.f32 %v2678, %v2074
      %v2683 = vadd.f32 %v2679, %v2079
      %v2684 = vadd.f32 %v2680, %v2084
      %v2685 = vadd.f32 %v2681, %v2089
      %v2686 = vmul.f32 %v2682, %v2098
      %v2687 = vmul.f32 %v2683, %v2103
      %v2688 = vmul.f32 %v2684, %v2108
      %v2689 = vmul.f32 %v2685, %v2113
      %v2690 = vadd.f32 %v2686, %v2122
      %v2691 = vadd.f32 %v2687, %v2127
      %v2692 = vadd.f32 %v2688, %v2132
      %v2693 = vadd.f32 %v2689, %v2137
      %2694 = vrot.lane.b32.xlu0 %v387, 64
      %v2695 = vpop.permute.xlu0 %2694
      %2696 = vrot.lane.b32.xlu0 %v388, 64
      %v2697 = vpop.permute.xlu0 %2696
      %2698 = vrot.lane.b32.xlu0 %v389, 64
      %v2699 = vpop.permute.xlu0 %2698
      %2700 = vrot.lane.b32.xlu0 %v390, 64
      %v2701 = vpop.permute.xlu0 %2700
      %v2706 = vadd.f32 %v2690, %v2695
      %v2707 = vadd.f32 %v2691, %v2697
      %v2708 = vadd.f32 %v2692, %v2699
      %v2709 = vadd.f32 %v2693, %v2701
      %v2710 = vmax.f32 %v2706, 0.0
      %v2711 = vmax.f32 %v2707, 0.0
      %v2712 = vmax.f32 %v2708, 0.0
      %v2713 = vmax.f32 %v2709, 0.0
      %s2714 = scalar_lea.vmem %s386, 128
      %2715 = vst.msk [vmem:[%s2714] sm:$0xff] %vm615, %v2710
      %2716 = vst.msk [vmem:[%s2714 + $0x8] sm:$0xff] %vm615, %v2711
      %2717 = vst.msk [vmem:[%s2714 + $0x10] sm:$0xff] %vm615, %v2712
      %2718 = vst.msk [vmem:[%s2714 + $0x18] sm:$0xff] %vm615, %v2713
      %v2719 = vld [vmem:[%s1459] sm:$0xff]
      %v2720 = vld [vmem:[%s1459 + $0x8] sm:$0xff]
      %v2721 = vld [vmem:[%s1459 + $0x10] sm:$0xff]
      %v2722 = vld [vmem:[%s1459 + $0x18] sm:$0xff]
      %v2723 = vld [vmem:[%s1615] sm:$0xff]
      %v2724 = vld [vmem:[%s1615 + $0x8] sm:$0xff]
      %v2725 = vld [vmem:[%s1615 + $0x10] sm:$0xff]
      %v2726 = vld [vmem:[%s1615 + $0x18] sm:$0xff]
      %2727 = vmatpush.msra.mxu0 0.0
      %2728 = vmatpush.msra.mxu0 0.0
      %2729 = vmatpush.msra.mxu0 0.0
      %2730 = vmatpush.msra.mxu0 0.0
      %2731 = vmatpush.msra.mxu0 0.0
      %2732 = vmatpush.msra.mxu0 0.0
      %2733 = vmatpush.msra.mxu0 0.0
      %2734 = vmatpush.msra.mxu0 0.0
      %2735 = vmatpush.msra.mxu0 0.0
      %2736 = vmatpush.msra.mxu0 0.0
      %2737 = vmatpush.msra.mxu0 0.0
      %2738 = vmatpush.msra.mxu0 0.0
      %2739 = vmatpush.msra.mxu0 %v2726
      %2740 = vmatpush.msra.mxu0 %v2725
      %2741 = vmatpush.msra.mxu0 %v2724
      %2742 = vmatpush.msra.mxu0 %v2723
      %2743 = vmatmul.f32.gmra.mxu0 %v1941
      %v2744 = vpop.f32.mrf.mxu0
      %v2745 = vadd.f32 0.0, %v2744
      %2746 = vmatmul.f32.gmra.mxu0 %v1944
      %v2747 = vpop.f32.mrf.mxu0
      %v2748 = vadd.f32 0.0, %v2747
      %2749 = vmatmul.f32.gmra.mxu0 %v1947
      %v2750 = vpop.f32.mrf.mxu0
      %v2751 = vadd.f32 0.0, %v2750
      %2752 = vmatmul.f32.gmra.mxu0 %v1950
      %v2753 = vpop.f32.mrf.mxu0
      %v2754 = vadd.f32 0.0, %v2753
      %2755 = vdwg.mxu0
      %2756 = vmatpush.msra.mxu0 0.0
      %2757 = vmatpush.msra.mxu0 0.0
      %2758 = vmatpush.msra.mxu0 0.0
      %2759 = vmatpush.msra.mxu0 0.0
      %2760 = vmatpush.msra.mxu0 0.0
      %2761 = vmatpush.msra.mxu0 0.0
      %2762 = vmatpush.msra.mxu0 0.0
      %2763 = vmatpush.msra.mxu0 0.0
      %2764 = vmatpush.msra.mxu0 0.0
      %2765 = vmatpush.msra.mxu0 0.0
      %2766 = vmatpush.msra.mxu0 0.0
      %2767 = vmatpush.msra.mxu0 0.0
      %2768 = vmatpush.msra.mxu0 %v2722
      %2769 = vmatpush.msra.mxu0 %v2721
      %2770 = vmatpush.msra.mxu0 %v2720
      %2771 = vmatpush.msra.mxu0 %v2719
      %2772 = vmatmul.f32.gmra.mxu0 %v1982
      %v2773 = vpop.f32.mrf.mxu0
      %v2774 = vadd.f32 %v2745, %v2773
      %2775 = vmatmul.f32.gmra.mxu0 %v1985
      %v2776 = vpop.f32.mrf.mxu0
      %v2777 = vadd.f32 %v2748, %v2776
      %2778 = vmatmul.f32.gmra.mxu0 %v1988
      %v2779 = vpop.f32.mrf.mxu0
      %v2780 = vadd.f32 %v2751, %v2779
      %2781 = vmatmul.f32.gmra.mxu0 %v1991
      %v2782 = vpop.f32.mrf.mxu0
      %v2783 = vadd.f32 %v2754, %v2782
      %2784 = vdwg.mxu0
      %v2785 = vld [vmem:[%s1771] sm:$0xff]
      %v2786 = vld [vmem:[%s1771 + $0x8] sm:$0xff]
      %v2787 = vld [vmem:[%s1771 + $0x10] sm:$0xff]
      %v2788 = vld [vmem:[%s1771 + $0x18] sm:$0xff]
      %2789 = vmatpush.msra.mxu0 0.0
      %2790 = vmatpush.msra.mxu0 0.0
      %2791 = vmatpush.msra.mxu0 0.0
      %2792 = vmatpush.msra.mxu0 0.0
      %2793 = vmatpush.msra.mxu0 0.0
      %2794 = vmatpush.msra.mxu0 0.0
      %2795 = vmatpush.msra.mxu0 0.0
      %2796 = vmatpush.msra.mxu0 0.0
      %2797 = vmatpush.msra.mxu0 0.0
      %2798 = vmatpush.msra.mxu0 0.0
      %2799 = vmatpush.msra.mxu0 0.0
      %2800 = vmatpush.msra.mxu0 0.0
      %2801 = vmatpush.msra.mxu0 %v2788
      %2802 = vmatpush.msra.mxu0 %v2787
      %2803 = vmatpush.msra.mxu0 %v2786
      %2804 = vmatpush.msra.mxu0 %v2785
      %2805 = vmatmul.f32.gmra.mxu0 %v2027
      %v2806 = vpop.f32.mrf.mxu0
      %v2807 = vadd.f32 0.0, %v2806
      %2808 = vmatmul.f32.gmra.mxu0 %v2030
      %v2809 = vpop.f32.mrf.mxu0
      %v2810 = vadd.f32 0.0, %v2809
      %2811 = vmatmul.f32.gmra.mxu0 %v2033
      %v2812 = vpop.f32.mrf.mxu0
      %v2813 = vadd.f32 0.0, %v2812
      %2814 = vmatmul.f32.gmra.mxu0 %v2036
      %v2815 = vpop.f32.mrf.mxu0
      %v2816 = vadd.f32 0.0, %v2815
      %2817 = vdwg.mxu0
      %v2818 = vadd.f32 %v2774, %v2807
      %v2819 = vadd.f32 %v2777, %v2810
      %v2820 = vadd.f32 %v2780, %v2813
      %v2821 = vadd.f32 %v2783, %v2816
      %v2822 = vadd.f32 %v2818, %v2074
      %v2823 = vadd.f32 %v2819, %v2079
      %v2824 = vadd.f32 %v2820, %v2084
      %v2825 = vadd.f32 %v2821, %v2089
      %v2826 = vmul.f32 %v2822, %v2098
      %v2827 = vmul.f32 %v2823, %v2103
      %v2828 = vmul.f32 %v2824, %v2108
      %v2829 = vmul.f32 %v2825, %v2113
      %v2830 = vadd.f32 %v2826, %v2122
      %v2831 = vadd.f32 %v2827, %v2127
      %v2832 = vadd.f32 %v2828, %v2132
      %v2833 = vadd.f32 %v2829, %v2137
      %2834 = vrot.lane.b32.xlu0 %v387, 48
      %v2835 = vpop.permute.xlu0 %2834
      %2836 = vrot.lane.b32.xlu0 %v388, 48
      %v2837 = vpop.permute.xlu0 %2836
      %2838 = vrot.lane.b32.xlu0 %v389, 48
      %v2839 = vpop.permute.xlu0 %2838
      %2840 = vrot.lane.b32.xlu0 %v390, 48
      %v2841 = vpop.permute.xlu0 %2840
      %v2846 = vadd.f32 %v2830, %v2835
      %v2847 = vadd.f32 %v2831, %v2837
      %v2848 = vadd.f32 %v2832, %v2839
      %v2849 = vadd.f32 %v2833, %v2841
      %v2850 = vmax.f32 %v2846, 0.0
      %v2851 = vmax.f32 %v2847, 0.0
      %v2852 = vmax.f32 %v2848, 0.0
      %v2853 = vmax.f32 %v2849, 0.0
      %s2854 = scalar_lea.vmem %s386, 160
      %2855 = vst.msk [vmem:[%s2854] sm:$0xff] %vm615, %v2850
      %2856 = vst.msk [vmem:[%s2854 + $0x8] sm:$0xff] %vm615, %v2851
      %2857 = vst.msk [vmem:[%s2854 + $0x10] sm:$0xff] %vm615, %v2852
      %2858 = vst.msk [vmem:[%s2854 + $0x18] sm:$0xff] %vm615, %v2853
      %v2859 = vld [vmem:[%s1615] sm:$0xff]
      %v2860 = vld [vmem:[%s1615 + $0x8] sm:$0xff]
      %v2861 = vld [vmem:[%s1615 + $0x10] sm:$0xff]
      %v2862 = vld [vmem:[%s1615 + $0x18] sm:$0xff]
      %v2863 = vld [vmem:[%s1771] sm:$0xff]
      %v2864 = vld [vmem:[%s1771 + $0x8] sm:$0xff]
      %v2865 = vld [vmem:[%s1771 + $0x10] sm:$0xff]
      %v2866 = vld [vmem:[%s1771 + $0x18] sm:$0xff]
      %2867 = vmatpush.msra.mxu0 0.0
      %2868 = vmatpush.msra.mxu0 0.0
      %2869 = vmatpush.msra.mxu0 0.0
      %2870 = vmatpush.msra.mxu0 0.0
      %2871 = vmatpush.msra.mxu0 0.0
      %2872 = vmatpush.msra.mxu0 0.0
      %2873 = vmatpush.msra.mxu0 0.0
      %2874 = vmatpush.msra.mxu0 0.0
      %2875 = vmatpush.msra.mxu0 0.0
      %2876 = vmatpush.msra.mxu0 0.0
      %2877 = vmatpush.msra.mxu0 0.0
      %2878 = vmatpush.msra.mxu0 0.0
      %2879 = vmatpush.msra.mxu0 %v2866
      %2880 = vmatpush.msra.mxu0 %v2865
      %2881 = vmatpush.msra.mxu0 %v2864
      %2882 = vmatpush.msra.mxu0 %v2863
      %2883 = vmatmul.f32.gmra.mxu0 %v1941
      %v2884 = vpop.f32.mrf.mxu0
      %v2885 = vadd.f32 0.0, %v2884
      %2886 = vmatmul.f32.gmra.mxu0 %v1944
      %v2887 = vpop.f32.mrf.mxu0
      %v2888 = vadd.f32 0.0, %v2887
      %2889 = vmatmul.f32.gmra.mxu0 %v1947
      %v2890 = vpop.f32.mrf.mxu0
      %v2891 = vadd.f32 0.0, %v2890
      %2892 = vmatmul.f32.gmra.mxu0 %v1950
      %v2893 = vpop.f32.mrf.mxu0
      %v2894 = vadd.f32 0.0, %v2893
      %2895 = vdwg.mxu0
      %2896 = vmatpush.msra.mxu0 0.0
      %2897 = vmatpush.msra.mxu0 0.0
      %2898 = vmatpush.msra.mxu0 0.0
      %2899 = vmatpush.msra.mxu0 0.0
      %2900 = vmatpush.msra.mxu0 0.0
      %2901 = vmatpush.msra.mxu0 0.0
      %2902 = vmatpush.msra.mxu0 0.0
      %2903 = vmatpush.msra.mxu0 0.0
      %2904 = vmatpush.msra.mxu0 0.0
      %2905 = vmatpush.msra.mxu0 0.0
      %2906 = vmatpush.msra.mxu0 0.0
      %2907 = vmatpush.msra.mxu0 0.0
      %2908 = vmatpush.msra.mxu0 %v2862
      %2909 = vmatpush.msra.mxu0 %v2861
      %2910 = vmatpush.msra.mxu0 %v2860
      %2911 = vmatpush.msra.mxu0 %v2859
      %2912 = vmatmul.f32.gmra.mxu0 %v1982
      %v2913 = vpop.f32.mrf.mxu0
      %v2914 = vadd.f32 %v2885, %v2913
      %2915 = vmatmul.f32.gmra.mxu0 %v1985
      %v2916 = vpop.f32.mrf.mxu0
      %v2917 = vadd.f32 %v2888, %v2916
      %2918 = vmatmul.f32.gmra.mxu0 %v1988
      %v2919 = vpop.f32.mrf.mxu0
      %v2920 = vadd.f32 %v2891, %v2919
      %2921 = vmatmul.f32.gmra.mxu0 %v1991
      %v2922 = vpop.f32.mrf.mxu0
      %v2923 = vadd.f32 %v2894, %v2922
      %2924 = vdwg.mxu0
      %v2925 = vld [vmem:[%s1927] sm:$0xff]
      %v2926 = vld [vmem:[%s1927 + $0x8] sm:$0xff]
      %v2927 = vld [vmem:[%s1927 + $0x10] sm:$0xff]
      %v2928 = vld [vmem:[%s1927 + $0x18] sm:$0xff]
      %2929 = vmatpush.msra.mxu0 0.0
      %2930 = vmatpush.msra.mxu0 0.0
      %2931 = vmatpush.msra.mxu0 0.0
      %2932 = vmatpush.msra.mxu0 0.0
      %2933 = vmatpush.msra.mxu0 0.0
      %2934 = vmatpush.msra.mxu0 0.0
      %2935 = vmatpush.msra.mxu0 0.0
      %2936 = vmatpush.msra.mxu0 0.0
      %2937 = vmatpush.msra.mxu0 0.0
      %2938 = vmatpush.msra.mxu0 0.0
      %2939 = vmatpush.msra.mxu0 0.0
      %2940 = vmatpush.msra.mxu0 0.0
      %2941 = vmatpush.msra.mxu0 %v2928
      %2942 = vmatpush.msra.mxu0 %v2927
      %2943 = vmatpush.msra.mxu0 %v2926
      %2944 = vmatpush.msra.mxu0 %v2925
      %2945 = vmatmul.f32.gmra.mxu0 %v2027
      %v2946 = vpop.f32.mrf.mxu0
      %v2947 = vadd.f32 0.0, %v2946
      %2948 = vmatmul.f32.gmra.mxu0 %v2030
      %v2949 = vpop.f32.mrf.mxu0
      %v2950 = vadd.f32 0.0, %v2949
      %2951 = vmatmul.f32.gmra.mxu0 %v2033
      %v2952 = vpop.f32.mrf.mxu0
      %v2953 = vadd.f32 0.0, %v2952
      %2954 = vmatmul.f32.gmra.mxu0 %v2036
      %v2955 = vpop.f32.mrf.mxu0
      %v2956 = vadd.f32 0.0, %v2955
      %2957 = vdwg.mxu0
      %v2958 = vadd.f32 %v2914, %v2947
      %v2959 = vadd.f32 %v2917, %v2950
      %v2960 = vadd.f32 %v2920, %v2953
      %v2961 = vadd.f32 %v2923, %v2956
      %v2962 = vadd.f32 %v2958, %v2074
      %v2963 = vadd.f32 %v2959, %v2079
      %v2964 = vadd.f32 %v2960, %v2084
      %v2965 = vadd.f32 %v2961, %v2089
      %v2966 = vmul.f32 %v2962, %v2098
      %v2967 = vmul.f32 %v2963, %v2103
      %v2968 = vmul.f32 %v2964, %v2108
      %v2969 = vmul.f32 %v2965, %v2113
      %v2970 = vadd.f32 %v2966, %v2122
      %v2971 = vadd.f32 %v2967, %v2127
      %v2972 = vadd.f32 %v2968, %v2132
      %v2973 = vadd.f32 %v2969, %v2137
      %2974 = vrot.lane.b32.xlu0 %v387, 32
      %v2975 = vpop.permute.xlu0 %2974
      %2976 = vrot.lane.b32.xlu0 %v388, 32
      %v2977 = vpop.permute.xlu0 %2976
      %2978 = vrot.lane.b32.xlu0 %v389, 32
      %v2979 = vpop.permute.xlu0 %2978
      %2980 = vrot.lane.b32.xlu0 %v390, 32
      %v2981 = vpop.permute.xlu0 %2980
      %v2986 = vadd.f32 %v2970, %v2975
      %v2987 = vadd.f32 %v2971, %v2977
      %v2988 = vadd.f32 %v2972, %v2979
      %v2989 = vadd.f32 %v2973, %v2981
      %v2990 = vmax.f32 %v2986, 0.0
      %v2991 = vmax.f32 %v2987, 0.0
      %v2992 = vmax.f32 %v2988, 0.0
      %v2993 = vmax.f32 %v2989, 0.0
      %s2994 = scalar_lea.vmem %s386, 192
      %2995 = vst.msk [vmem:[%s2994] sm:$0xff] %vm615, %v2990
      %2996 = vst.msk [vmem:[%s2994 + $0x8] sm:$0xff] %vm615, %v2991
      %2997 = vst.msk [vmem:[%s2994 + $0x10] sm:$0xff] %vm615, %v2992
      %2998 = vst.msk [vmem:[%s2994 + $0x18] sm:$0xff] %vm615, %v2993
      %v2999 = vld [vmem:[%s1771] sm:$0xff]
      %v3000 = vld [vmem:[%s1771 + $0x8] sm:$0xff]
      %v3001 = vld [vmem:[%s1771 + $0x10] sm:$0xff]
      %v3002 = vld [vmem:[%s1771 + $0x18] sm:$0xff]
      %v3003 = vld [vmem:[%s1927] sm:$0xff]
      %v3004 = vld [vmem:[%s1927 + $0x8] sm:$0xff]
      %v3005 = vld [vmem:[%s1927 + $0x10] sm:$0xff]
      %v3006 = vld [vmem:[%s1927 + $0x18] sm:$0xff]
      %3007 = vmatpush.msra.mxu0 0.0
      %3008 = vmatpush.msra.mxu0 0.0
      %3009 = vmatpush.msra.mxu0 0.0
      %3010 = vmatpush.msra.mxu0 0.0
      %3011 = vmatpush.msra.mxu0 0.0
      %3012 = vmatpush.msra.mxu0 0.0
      %3013 = vmatpush.msra.mxu0 0.0
      %3014 = vmatpush.msra.mxu0 0.0
      %3015 = vmatpush.msra.mxu0 0.0
      %3016 = vmatpush.msra.mxu0 0.0
      %3017 = vmatpush.msra.mxu0 0.0
      %3018 = vmatpush.msra.mxu0 0.0
      %3019 = vmatpush.msra.mxu0 %v3006
      %3020 = vmatpush.msra.mxu0 %v3005
      %3021 = vmatpush.msra.mxu0 %v3004
      %3022 = vmatpush.msra.mxu0 %v3003
      %3023 = vmatmul.f32.gmra.mxu0 %v1941
      %v3024 = vpop.f32.mrf.mxu0
      %v3025 = vadd.f32 0.0, %v3024
      %3026 = vmatmul.f32.gmra.mxu0 %v1944
      %v3027 = vpop.f32.mrf.mxu0
      %v3028 = vadd.f32 0.0, %v3027
      %3029 = vmatmul.f32.gmra.mxu0 %v1947
      %v3030 = vpop.f32.mrf.mxu0
      %v3031 = vadd.f32 0.0, %v3030
      %3032 = vmatmul.f32.gmra.mxu0 %v1950
      %v3033 = vpop.f32.mrf.mxu0
      %v3034 = vadd.f32 0.0, %v3033
      %3035 = vdwg.mxu0
      %3036 = vmatpush.msra.mxu0 0.0
      %3037 = vmatpush.msra.mxu0 0.0
      %3038 = vmatpush.msra.mxu0 0.0
      %3039 = vmatpush.msra.mxu0 0.0
      %3040 = vmatpush.msra.mxu0 0.0
      %3041 = vmatpush.msra.mxu0 0.0
      %3042 = vmatpush.msra.mxu0 0.0
      %3043 = vmatpush.msra.mxu0 0.0
      %3044 = vmatpush.msra.mxu0 0.0
      %3045 = vmatpush.msra.mxu0 0.0
      %3046 = vmatpush.msra.mxu0 0.0
      %3047 = vmatpush.msra.mxu0 0.0
      %3048 = vmatpush.msra.mxu0 %v3002
      %3049 = vmatpush.msra.mxu0 %v3001
      %3050 = vmatpush.msra.mxu0 %v3000
      %3051 = vmatpush.msra.mxu0 %v2999
      %3052 = vmatmul.f32.gmra.mxu0 %v1982
      %v3053 = vpop.f32.mrf.mxu0
      %v3054 = vadd.f32 %v3025, %v3053
      %3055 = vmatmul.f32.gmra.mxu0 %v1985
      %v3056 = vpop.f32.mrf.mxu0
      %v3057 = vadd.f32 %v3028, %v3056
      %3058 = vmatmul.f32.gmra.mxu0 %v1988
      %v3059 = vpop.f32.mrf.mxu0
      %v3060 = vadd.f32 %v3031, %v3059
      %3061 = vmatmul.f32.gmra.mxu0 %v1991
      %v3062 = vpop.f32.mrf.mxu0
      %v3063 = vadd.f32 %v3034, %v3062
      %3064 = vdwg.mxu0
      %s3065 = scalar_lea.vmem [#allocation2], 288
      %v3066 = vld [vmem:[%s3065] sm:$0xff]
      %v3067 = vld [vmem:[%s3065 + $0x8] sm:$0xff]
      %v3068 = vld [vmem:[%s3065 + $0x10] sm:$0xff]
      %v3069 = vld [vmem:[%s3065 + $0x18] sm:$0xff]
      %3070 = vmatpush.msra.mxu0 0.0
      %3071 = vmatpush.msra.mxu0 0.0
      %3072 = vmatpush.msra.mxu0 0.0
      %3073 = vmatpush.msra.mxu0 0.0
      %3074 = vmatpush.msra.mxu0 0.0
      %3075 = vmatpush.msra.mxu0 0.0
      %3076 = vmatpush.msra.mxu0 0.0
      %3077 = vmatpush.msra.mxu0 0.0
      %3078 = vmatpush.msra.mxu0 0.0
      %3079 = vmatpush.msra.mxu0 0.0
      %3080 = vmatpush.msra.mxu0 0.0
      %3081 = vmatpush.msra.mxu0 0.0
      %3082 = vmatpush.msra.mxu0 %v3069
      %3083 = vmatpush.msra.mxu0 %v3068
      %3084 = vmatpush.msra.mxu0 %v3067
      %3085 = vmatpush.msra.mxu0 %v3066
      %3086 = vmatmul.f32.gmra.mxu0 %v2027
      %v3087 = vpop.f32.mrf.mxu0
      %v3088 = vadd.f32 0.0, %v3087
      %3089 = vmatmul.f32.gmra.mxu0 %v2030
      %v3090 = vpop.f32.mrf.mxu0
      %v3091 = vadd.f32 0.0, %v3090
      %3092 = vmatmul.f32.gmra.mxu0 %v2033
      %v3093 = vpop.f32.mrf.mxu0
      %v3094 = vadd.f32 0.0, %v3093
      %3095 = vmatmul.f32.gmra.mxu0 %v2036
      %v3096 = vpop.f32.mrf.mxu0
      %v3097 = vadd.f32 0.0, %v3096
      %3098 = vdwg.mxu0
      %v3099 = vadd.f32 %v3054, %v3088
      %v3100 = vadd.f32 %v3057, %v3091
      %v3101 = vadd.f32 %v3060, %v3094
      %v3102 = vadd.f32 %v3063, %v3097
      %v3103 = vadd.f32 %v3099, %v2074
      %v3104 = vadd.f32 %v3100, %v2079
      %v3105 = vadd.f32 %v3101, %v2084
      %v3106 = vadd.f32 %v3102, %v2089
      %v3107 = vmul.f32 %v3103, %v2098
      %v3108 = vmul.f32 %v3104, %v2103
      %v3109 = vmul.f32 %v3105, %v2108
      %v3110 = vmul.f32 %v3106, %v2113
      %v3111 = vadd.f32 %v3107, %v2122
      %v3112 = vadd.f32 %v3108, %v2127
      %v3113 = vadd.f32 %v3109, %v2132
      %v3114 = vadd.f32 %v3110, %v2137
      %3115 = vrot.lane.b32.xlu0 %v387, 16
      %v3116 = vpop.permute.xlu0 %3115
      %3117 = vrot.lane.b32.xlu0 %v388, 16
      %v3118 = vpop.permute.xlu0 %3117
      %3119 = vrot.lane.b32.xlu0 %v389, 16
      %v3120 = vpop.permute.xlu0 %3119
      %3121 = vrot.lane.b32.xlu0 %v390, 16
      %v3122 = vpop.permute.xlu0 %3121
      %v3127 = vadd.f32 %v3111, %v3116
      %v3128 = vadd.f32 %v3112, %v3118
      %v3129 = vadd.f32 %v3113, %v3120
      %v3130 = vadd.f32 %v3114, %v3122
      %v3131 = vmax.f32 %v3127, 0.0
      %v3132 = vmax.f32 %v3128, 0.0
      %v3133 = vmax.f32 %v3129, 0.0
      %v3134 = vmax.f32 %v3130, 0.0
      %s3135 = scalar_lea.vmem %s386, 224
      %3136 = vst.msk [vmem:[%s3135] sm:$0xff] %vm615, %v3131
      %3137 = vst.msk [vmem:[%s3135 + $0x8] sm:$0xff] %vm615, %v3132
      %3138 = vst.msk [vmem:[%s3135 + $0x10] sm:$0xff] %vm615, %v3133
      %3139 = vst.msk [vmem:[%s3135 + $0x18] sm:$0xff] %vm615, %v3134
      %p3140 = scmp.lt.s32.totalorder %s22, 1
      %s3141 = scalar_select %p3140, %s22, 1
      %s3142 = smul.addr %s3141, 32
      %s3143 = smul.addr %s3142, 8
      %s3144 = scalar_lea.vmem %s11, %s3143
      // Predicated region
      $region65: #{st_gcn_block_forward.1} parent=63 // pred_check
        %p3145 = pneg %p276
      $region66: #{st_gcn_block_forward.1} parent=63 // pred_check_branch
        %3147 = sbr.rel (%p3145) target = $region68
      $region67: #{st_gcn_block_forward.1} parent=63 // pred_region
        _
      $region68: #{st_gcn_block_forward.1} parent=63 // pred_fallthru
        _
    $region64: #{st_gcn_block_forward.1} parent=5 // pred_fallthru
      _
    %p3148 = scmp.le.s32.totalorder 2, %s17
    // Predicated region
    $region69: #{st_gcn_block_forward.1} parent=5 // pred_check
      %p3149 = pneg %p3148
    $region70: #{st_gcn_block_forward.1} parent=5 // pred_check_branch
      %3151 = sbr.rel (%p3149) target = $region72
    $region71: #{st_gcn_block_forward.1} parent=5 // pred_region
      %s3152 = ssub.s32 %s17, 2
      // Predicated region
      $region73: #{st_gcn_block_forward.1} parent=71 // pred_check
        %p3153 = pneg %p282
      $region74: #{st_gcn_block_forward.1} parent=71 // pred_check_branch
        %3155 = sbr.rel (%p3153) target = $region76
      $region75: #{st_gcn_block_forward.1} parent=71 // pred_region
        %p3156 = scmp.lt.s32.totalorder %s23, 1
        %s3157 = scalar_select %p3156, %s23, 1
        %s3158 = smul.addr %s3157, 32
        %s3159 = smul.addr %s3158, 8
        %s3160 = scalar_lea.vmem %s11, %s3159
      $region76: #{st_gcn_block_forward.1} parent=71 // pred_fallthru
        _
    $region72: #{st_gcn_block_forward.1} parent=5 // pred_fallthru
      _
  $region6: #{st_gcn_block_forward.1} parent=0 // loop_footer
    %s21 = sadd.s32 1, %s17
  $region7: #{st_gcn_block_forward.1} parent=0 // loop_footer_branch
    %16 = sbr.rel target = $region3
  $region8: #{st_gcn_block_forward.1} parent=0 // loop_exit
    _

</llo_original>
